<compile_context>
chip_gen: v6e
topology: v6e:2x2x1
jax: 0.10.0
libtpu: 0.0.40
codegen_flags: <defaults>
</compile_context>

<pallas_src>
import jax
import jax.numpy as jnp
import numpy as np
from jax.experimental import pallas as pl
from jax.experimental.pallas import tpu as pltpu


# ---------------------------------------------------------------------------
# Fused Pallas kernel: all layers + all time steps in one invocation.
# ---------------------------------------------------------------------------
def _encoder_gru_kernel(x2_ref,        # (T*B, I)           seq-major flattened input
                        wih0_ref,      # (I, 3H)            layer-0 input weights, gate-fused [r|z|n]
                        wihr_ref,      # (max(L-1,1), H, 3H) input weights of layers 1..L-1
                        whh_ref,       # (L, H, 3H)          hidden weights, gate-fused
                        bi_ref,        # (L, 1, 3H)          [b_ir+b_hr | b_iz+b_hz | b_in]
                        bhn_ref,       # (L, 1, H)           b_hn (stays under r * (...))
                        out_ref,       # (T*B, H)            last-layer hidden, every step
                        hT_ref,        # (L*B, H)            final hidden of every layer
                        giA, giB):     # (T*B, 3H)           ping-pong gate scratch
    TB, H = out_ref.shape
    L = whh_ref.shape[0]
    B = hT_ref.shape[0] // L
    T = TB // B
    H3 = 3 * H
    gi_bufs = (giA, giB)

    # Layer 0: one batched, gate-fused input projection for ALL time steps
    # (independent of h); fused bias added with a single hoisted broadcast.
    giA[...] = (jnp.dot(x2_ref[...], wih0_ref[...],
                        preferred_element_type=jnp.float32)
                + jnp.broadcast_to(bi_ref[0], (TB, H3)))

    # TODO(synk): loops are statically unrolled (T=8, L=2); for much larger T
    # switch the time loop to lax.fori_loop(..., unroll=k) to bound code size.
    for l in range(L):                               # static unroll over layers
        gi_cur = gi_bufs[l % 2]
        gi_nxt = gi_bufs[(l + 1) % 2]
        w_hh = whh_ref[l]                            # (H, 3H), loaded once per layer
        b_hn = jnp.broadcast_to(bhn_ref[l], (B, H))  # hoisted broadcast
        last = (l == L - 1)
        if not last:
            w_ih_n = wihr_ref[l]                     # next layer's (H, 3H) input weights
            bi_n = jnp.broadcast_to(bi_ref[l + 1], (B, H3))

        h = jnp.zeros((B, H), jnp.float32)           # h_{-1} == 0
        for t in range(T):                           # static unroll over time
            gi_t = gi_cur[pl.ds(t * B, B), :]        # (B, 3H) precomputed input gates
            if t == 0:
                # h_{-1} == 0  =>  hidden projection is exactly zero; skip it.
                r = jax.nn.sigmoid(gi_t[:, :H])
                z = jax.nn.sigmoid(gi_t[:, H:2 * H])
                n = jnp.tanh(gi_t[:, 2 * H:] + r * b_hn)
                h = (1.0 - z) * n
            else:
                gh = jnp.dot(h, w_hh, preferred_element_type=jnp.float32)  # (B, 3H)
                r = jax.nn.sigmoid(gi_t[:, :H] + gh[:, :H])
                z = jax.nn.sigmoid(gi_t[:, H:2 * H] + gh[:, H:2 * H])
                n = jnp.tanh(gi_t[:, 2 * H:] + r * (gh[:, 2 * H:] + b_hn))
                h = (1.0 - z) * n + z * h
            if last:
                out_ref[pl.ds(t * B, B), :] = h
            else:
                # Software pipeline: issue layer l+1's (gate-fused) input
                # projection for step t now, filling MXU bubbles of the
                # latency-bound serial chain of layer l.
                gi_nxt[pl.ds(t * B, B), :] = (
                    jnp.dot(h, w_ih_n, preferred_element_type=jnp.float32) + bi_n)
        hT_ref[pl.ds(l * B, B), :] = h               # final hidden of layer l


# ---------------------------------------------------------------------------
# Parameter preparation (done ONCE outside jit): split gates, transpose,
# concatenate the 3 gates along the output dim, pre-sum r/z biases, stack.
# ---------------------------------------------------------------------------
def prepare_encoder_params(params, hidden_size):
    """params: list of (w_ih (3H,in), w_hh (3H,H), b_ih (3H,), b_hh (3H,))."""
    H = hidden_size
    L = len(params)
    gate = lambda m, i: m[i * H:(i + 1) * H]

    def fuse_t(w):                                   # (3H, in) -> (in, 3H) [r|z|n]
        return jnp.concatenate([gate(w, 0).T, gate(w, 1).T, gate(w, 2).T], axis=1)

    w_ih0 = fuse_t(params[0][0]).astype(jnp.float32)                 # (I, 3H)
    if L > 1:
        w_ih_rest = jnp.stack([fuse_t(p[0]) for p in params[1:]],
                              axis=0).astype(jnp.float32)            # (L-1, H, 3H)
    else:                                                            # dummy, unused
        w_ih_rest = jnp.zeros((1, H, 3 * H), jnp.float32)
    w_hh = jnp.stack([fuse_t(p[1]) for p in params],
                     axis=0).astype(jnp.float32)                     # (L, H, 3H)
    b_i = jnp.stack([
        jnp.concatenate([gate(b_ih, 0) + gate(b_hh, 0),
                         gate(b_ih, 1) + gate(b_hh, 1),
                         gate(b_ih, 2)]).reshape(1, 3 * H)
        for (_, _, b_ih, b_hh) in params], axis=0).astype(jnp.float32)  # (L, 1, 3H)
    b_hn = jnp.stack([gate(b_hh, 2).reshape(1, H)
                      for (_, _, _, b_hh) in params],
                     axis=0).astype(jnp.float32)                     # (L, 1, H)
    return (w_ih0, w_ih_rest, w_hh, b_i, b_hn)


# ---------------------------------------------------------------------------
# Encoder.forward (classification=False)
# ---------------------------------------------------------------------------
def _full_spec(shape):
    n = len(shape)
    return pl.BlockSpec(shape, lambda i, _n=n: (0,) * _n)


def encoder_forward(x, prepped):
    w_ih0, w_ih_rest, w_hh, b_i, b_hn = prepped
    if x.ndim == 2:                                  # module's input.unsqueeze(-1)
        x = x[..., None]
    x = x.astype(jnp.float32)
    T, B, I = x.shape
    L, H = w_hh.shape[0], w_hh.shape[1]
    x2 = x.reshape(T * B, I)                         # seq-major flatten (wrapper-side, free)

    out2, hT2 = pl.pallas_call(
        _encoder_gru_kernel,
        out_shape=(jax.ShapeDtypeStruct((T * B, H), jnp.float32),
                   jax.ShapeDtypeStruct((L * B, H), jnp.float32)),
        grid_spec=pltpu.PrefetchScalarGridSpec(
            num_scalar_prefetch=0,
            grid=(1,),
            in_specs=[_full_spec((T * B, I)),
                      _full_spec((I, 3 * H)),
                      _full_spec(w_ih_rest.shape),
                      _full_spec((L, H, 3 * H)),
                      _full_spec((L, 1, 3 * H)),
                      _full_spec((L, 1, H))],
            out_specs=[_full_spec((T * B, H)),
                       _full_spec((L * B, H))],
            scratch_shapes=[pltpu.VMEM((T * B, 3 * H), jnp.float32),
                            pltpu.VMEM((T * B, 3 * H), jnp.float32)],
        ),
        compiler_params=pltpu.CompilerParams(
            dimension_semantics=("arbitrary",)),
    )(x2, w_ih0, w_ih_rest, w_hh, b_i, b_hn)

    return out2.reshape(T, B, H), hT2.reshape(L, B, H)


# ---------------------------------------------------------------------------
# Deterministic params matching nn.GRU(input_size, hidden_size, num_layers)
# ---------------------------------------------------------------------------
def init_encoder_params(key, input_size, hidden_size, num_layers):
    params = []
    k = 1.0 / float(np.sqrt(hidden_size))
    for layer in range(num_layers):
        in_sz = input_size if layer == 0 else hidden_size
        key, k1, k2, k3, k4 = jax.random.split(key, 5)
        w_ih = jax.random.uniform(k1, (3 * hidden_size, in_sz), jnp.float32, -k, k)
        w_hh = jax.random.uniform(k2, (3 * hidden_size, hidden_size), jnp.float32, -k, k)
        b_ih = jax.random.uniform(k3, (3 * hidden_size,), jnp.float32, -k, k)
        b_hh = jax.random.uniform(k4, (3 * hidden_size,), jnp.float32, -k, k)
        params.append((w_ih, w_hh, b_ih, b_hh))
    return params


# Pure-JAX reference (PyTorch nn.GRU semantics) for correctness checking.
def gru_reference(x, params, hidden_size):
    H = hidden_size
    T, B, _ = x.shape
    hp = jax.lax.Precision.HIGHEST
    layer_in = x
    finals = []
    for (w_ih, w_hh, b_ih, b_hh) in params:
        h = jnp.zeros((B, H), jnp.float32)
        outs = []
        for t in range(T):
            gi = jnp.dot(layer_in[t], w_ih.T, precision=hp) + b_ih
            gh = jnp.dot(h, w_hh.T, precision=hp) + b_hh
            i_r, i_z, i_n = gi[:, :H], gi[:, H:2 * H], gi[:, 2 * H:]
            h_r, h_z, h_n = gh[:, :H], gh[:, H:2 * H], gh[:, 2 * H:]
            r = jax.nn.sigmoid(i_r + h_r)
            z = jax.nn.sigmoid(i_z + h_z)
            n = jnp.tanh(i_n + r * h_n)
            h = (1.0 - z) * n + z * h
            outs.append(h)
        layer_in = jnp.stack(outs, 0)
        finals.append(h)
    return layer_in, jnp.stack(finals, 0)


# TODO(synk): classification=True branch (nn.Embedding lookup feeding the GRU)
# not implemented; only the classification=False forward path is covered.


if __name__ == "__main__":
    # seq_len T=8, batch B=8 (full f32 sublane tile), input_size I=8,
    # hidden_size H=32, num_layers L=2
    T, B, I, H, L = 8, 8, 8, 32, 2

    key = jax.random.PRNGKey(0)
    key, kx, kp = jax.random.split(key, 3)
    x = jax.random.normal(kx, (T, B, I), dtype=jnp.float32)
    params = init_encoder_params(kp, I, H, L)

    prepped = prepare_encoder_params(params, H)          # once, outside jit
    fwd = jax.jit(encoder_forward)

    outputs, hidden_states = fwd(x, prepped)
    jax.block_until_ready((outputs, hidden_states))

    assert outputs.shape == (T, B, H)
    assert hidden_states.shape == (L, B, H)

    ref_out, ref_h = gru_reference(x, params, H)
    np.testing.assert_allclose(np.asarray(outputs), np.asarray(ref_out),
                               atol=2e-2, rtol=2e-2)
    np.testing.assert_allclose(np.asarray(hidden_states), np.asarray(ref_h),
                               atol=2e-2, rtol=2e-2)
    print("KERNEL_OK")
</pallas_src>

<mosaic_0001>
module attributes {stable_mosaic.version = 11 : i64} {
  func.func @_encoder_gru_kernel(%arg0: i32, %arg1: memref<64x8xf32, #tpu.memory_space<vmem>>, %arg2: memref<8x96xf32, #tpu.memory_space<vmem>>, %arg3: memref<1x32x96xf32, #tpu.memory_space<vmem>>, %arg4: memref<2x32x96xf32, #tpu.memory_space<vmem>>, %arg5: memref<2x1x96xf32, #tpu.memory_space<vmem>>, %arg6: memref<2x1x32xf32, #tpu.memory_space<vmem>>, %arg7: memref<64x32xf32, #tpu.memory_space<vmem>>, %arg8: memref<16x32xf32, #tpu.memory_space<vmem>>, %arg9: memref<64x96xf32, #tpu.memory_space<vmem>>, %arg10: memref<64x96xf32, #tpu.memory_space<vmem>>) attributes {dimension_semantics = [#tpu.dimension_semantics<arbitrary>], iteration_bounds = array<i64: 1>, scalar_prefetch = 0 : i64, scratch_operands = 2 : i64, tpu.core_type = #tpu.core_type<tc>, window_params = [{pipeline_mode = #tpu.pipeline_mode<synchronous>, transform_indices = @transform_0, window_bounds = array<i64: 64, 8>}, {pipeline_mode = #tpu.pipeline_mode<synchronous>, transform_indices = @transform_1, window_bounds = array<i64: 8, 96>}, {pipeline_mode = #tpu.pipeline_mode<synchronous>, transform_indices = @transform_2, window_bounds = array<i64: 1, 32, 96>}, {pipeline_mode = #tpu.pipeline_mode<synchronous>, transform_indices = @transform_3, window_bounds = array<i64: 2, 32, 96>}, {pipeline_mode = #tpu.pipeline_mode<synchronous>, transform_indices = @transform_4, window_bounds = array<i64: 2, 1, 96>}, {pipeline_mode = #tpu.pipeline_mode<synchronous>, transform_indices = @transform_5, window_bounds = array<i64: 2, 1, 32>}, {pipeline_mode = #tpu.pipeline_mode<synchronous>, transform_indices = @transform_6, window_bounds = array<i64: 64, 32>}, {pipeline_mode = #tpu.pipeline_mode<synchronous>, transform_indices = @transform_7, window_bounds = array<i64: 16, 32>}]} {
    %c0 = arith.constant 0 : index
    %c0_0 = arith.constant 0 : index
    %0 = vector.load %arg1[%c0, %c0_0] : memref<64x8xf32, #tpu.memory_space<vmem>>, vector<64x8xf32>
    %c0_1 = arith.constant 0 : index
    %c0_2 = arith.constant 0 : index
    %1 = vector.load %arg2[%c0_1, %c0_2] : memref<8x96xf32, #tpu.memory_space<vmem>>, vector<8x96xf32>
    %cst = arith.constant dense<0.000000e+00> : vector<64x96xf32>
    %2 = tpu.matmul %0, %1, %cst {dimension_numbers = #tpu.dot_dimension_numbers<[1], [0], [0], [1], [0, 0, 1, 1], [], []>} : vector<64x8xf32>, vector<8x96xf32>, vector<64x96xf32> -> vector<64x96xf32>
    %c0_3 = arith.constant 0 : index
    %c0_4 = arith.constant 0 : index
    %c0_5 = arith.constant 0 : index
    %3 = vector.load %arg5[%c0_3, %c0_4, %c0_5] : memref<2x1x96xf32, #tpu.memory_space<vmem>>, vector<1x1x96xf32>
    %4 = vector.shape_cast %3 : vector<1x1x96xf32> to vector<1x96xf32>
    %5 = vector.shape_cast %4 : vector<1x96xf32> to vector<1x96xf32>
    %6 = vector.broadcast %5 : vector<1x96xf32> to vector<64x96xf32>
    %7 = arith.addf %2, %6 : vector<64x96xf32>
    %c0_6 = arith.constant 0 : index
    %c0_7 = arith.constant 0 : index
    %8 = vector.load %arg9[%c0_6, %c0_7] : memref<64x96xf32, #tpu.memory_space<vmem>>, vector<64x96xf32>
    tpu.vector_store %arg9[%c0_6, %c0_7], %7 {strides = array<i32>} : memref<64x96xf32, #tpu.memory_space<vmem>>, vector<64x96xf32>,
    %c0_8 = arith.constant 0 : index
    %c0_9 = arith.constant 0 : index
    %c0_10 = arith.constant 0 : index
    %9 = vector.load %arg4[%c0_8, %c0_9, %c0_10] : memref<2x32x96xf32, #tpu.memory_space<vmem>>, vector<1x32x96xf32>
    %10 = vector.shape_cast %9 : vector<1x32x96xf32> to vector<32x96xf32>
    %c0_11 = arith.constant 0 : index
    %c0_12 = arith.constant 0 : index
    %c0_13 = arith.constant 0 : index
    %11 = vector.load %arg6[%c0_11, %c0_12, %c0_13] : memref<2x1x32xf32, #tpu.memory_space<vmem>>, vector<1x1x32xf32>
    %12 = vector.shape_cast %11 : vector<1x1x32xf32> to vector<1x32xf32>
    %13 = vector.shape_cast %12 : vector<1x32xf32> to vector<1x32xf32>
    %14 = vector.broadcast %13 : vector<1x32xf32> to vector<8x32xf32>
    %c0_14 = arith.constant 0 : index
    %c0_15 = arith.constant 0 : index
    %c0_16 = arith.constant 0 : index
    %15 = vector.load %arg3[%c0_14, %c0_15, %c0_16] : memref<1x32x96xf32, #tpu.memory_space<vmem>>, vector<1x32x96xf32>
    %16 = vector.shape_cast %15 : vector<1x32x96xf32> to vector<32x96xf32>
    %c1 = arith.constant 1 : index
    %c0_17 = arith.constant 0 : index
    %c0_18 = arith.constant 0 : index
    %17 = vector.load %arg5[%c1, %c0_17, %c0_18] : memref<2x1x96xf32, #tpu.memory_space<vmem>>, vector<1x1x96xf32>
    %18 = vector.shape_cast %17 : vector<1x1x96xf32> to vector<1x96xf32>
    %19 = vector.shape_cast %18 : vector<1x96xf32> to vector<1x96xf32>
    %20 = vector.broadcast %19 : vector<1x96xf32> to vector<8x96xf32>
    %c0_19 = arith.constant 0 : index
    %c0_20 = arith.constant 0 : index
    %21 = vector.load %arg9[%c0_19, %c0_20] : memref<64x96xf32, #tpu.memory_space<vmem>>, vector<8x96xf32>
    %22 = vector.extract_strided_slice %21 {offsets = [0, 0], sizes = [8, 32], strides = [1, 1]} : vector<8x96xf32> to vector<8x32xf32>
    %23 = arith.negf %22 : vector<8x32xf32>
    %24 = math.exp %23 : vector<8x32xf32>
    %cst_21 = arith.constant 1.000000e+00 : f32
    %25 = vector.broadcast %cst_21 : f32 to vector<8x32xf32>
    %26 = arith.addf %25, %24 : vector<8x32xf32>
    %27 = arith.divf %25, %26 : vector<8x32xf32>
    %28 = vector.extract_strided_slice %21 {offsets = [0, 32], sizes = [8, 32], strides = [1, 1]} : vector<8x96xf32> to vector<8x32xf32>
    %29 = arith.negf %28 : vector<8x32xf32>
    %30 = math.exp %29 : vector<8x32xf32>
    %cst_22 = arith.constant 1.000000e+00 : f32
    %31 = vector.broadcast %cst_22 : f32 to vector<8x32xf32>
    %32 = arith.addf %31, %30 : vector<8x32xf32>
    %33 = arith.divf %31, %32 : vector<8x32xf32>
    %34 = vector.extract_strided_slice %21 {offsets = [0, 64], sizes = [8, 32], strides = [1, 1]} : vector<8x96xf32> to vector<8x32xf32>
    %35 = arith.mulf %27, %14 : vector<8x32xf32>
    %36 = arith.addf %34, %35 : vector<8x32xf32>
    %37 = math.tanh %36 : vector<8x32xf32>
    %cst_23 = arith.constant 1.000000e+00 : f32
    %38 = vector.broadcast %cst_23 : f32 to vector<8x32xf32>
    %39 = arith.subf %38, %33 : vector<8x32xf32>
    %40 = arith.mulf %39, %37 : vector<8x32xf32>
    %cst_24 = arith.constant dense<0.000000e+00> : vector<8x96xf32>
    %41 = tpu.matmul %40, %16, %cst_24 {dimension_numbers = #tpu.dot_dimension_numbers<[1], [0], [0], [1], [0, 0, 1, 1], [], []>} : vector<8x32xf32>, vector<32x96xf32>, vector<8x96xf32> -> vector<8x96xf32>
    %42 = arith.addf %41, %20 : vector<8x96xf32>
    %c0_25 = arith.constant 0 : index
    %c0_26 = arith.constant 0 : index
    %43 = vector.load %arg10[%c0_25, %c0_26] : memref<64x96xf32, #tpu.memory_space<vmem>>, vector<8x96xf32>
    tpu.vector_store %arg10[%c0_25, %c0_26], %42 {strides = array<i32>} : memref<64x96xf32, #tpu.memory_space<vmem>>, vector<8x96xf32>,
    %c8 = arith.constant 8 : index
    %c0_27 = arith.constant 0 : index
    %44 = vector.load %arg9[%c8, %c0_27] : memref<64x96xf32, #tpu.memory_space<vmem>>, vector<8x96xf32>
    %cst_28 = arith.constant dense<0.000000e+00> : vector<8x96xf32>
    %45 = tpu.matmul %40, %10, %cst_28 {dimension_numbers = #tpu.dot_dimension_numbers<[1], [0], [0], [1], [0, 0, 1, 1], [], []>} : vector<8x32xf32>, vector<32x96xf32>, vector<8x96xf32> -> vector<8x96xf32>
    %46 = vector.extract_strided_slice %44 {offsets = [0, 0], sizes = [8, 32], strides = [1, 1]} : vector<8x96xf32> to vector<8x32xf32>
    %47 = vector.extract_strided_slice %45 {offsets = [0, 0], sizes = [8, 32], strides = [1, 1]} : vector<8x96xf32> to vector<8x32xf32>
    %48 = arith.addf %46, %47 : vector<8x32xf32>
    %49 = arith.negf %48 : vector<8x32xf32>
    %50 = math.exp %49 : vector<8x32xf32>
    %cst_29 = arith.constant 1.000000e+00 : f32
    %51 = vector.broadcast %cst_29 : f32 to vector<8x32xf32>
    %52 = arith.addf %51, %50 : vector<8x32xf32>
    %53 = arith.divf %51, %52 : vector<8x32xf32>
    %54 = vector.extract_strided_slice %44 {offsets = [0, 32], sizes = [8, 32], strides = [1, 1]} : vector<8x96xf32> to vector<8x32xf32>
    %55 = vector.extract_strided_slice %45 {offsets = [0, 32], sizes = [8, 32], strides = [1, 1]} : vector<8x96xf32> to vector<8x32xf32>
    %56 = arith.addf %54, %55 : vector<8x32xf32>
    %57 = arith.negf %56 : vector<8x32xf32>
    %58 = math.exp %57 : vector<8x32xf32>
    %cst_30 = arith.constant 1.000000e+00 : f32
    %59 = vector.broadcast %cst_30 : f32 to vector<8x32xf32>
    %60 = arith.addf %59, %58 : vector<8x32xf32>
    %61 = arith.divf %59, %60 : vector<8x32xf32>
    %62 = vector.extract_strided_slice %44 {offsets = [0, 64], sizes = [8, 32], strides = [1, 1]} : vector<8x96xf32> to vector<8x32xf32>
    %63 = vector.extract_strided_slice %45 {offsets = [0, 64], sizes = [8, 32], strides = [1, 1]} : vector<8x96xf32> to vector<8x32xf32>
    %64 = arith.addf %63, %14 : vector<8x32xf32>
    %65 = arith.mulf %53, %64 : vector<8x32xf32>
    %66 = arith.addf %62, %65 : vector<8x32xf32>
    %67 = math.tanh %66 : vector<8x32xf32>
    %cst_31 = arith.constant 1.000000e+00 : f32
    %68 = vector.broadcast %cst_31 : f32 to vector<8x32xf32>
    %69 = arith.subf %68, %61 : vector<8x32xf32>
    %70 = arith.mulf %69, %67 : vector<8x32xf32>
    %71 = arith.mulf %61, %40 : vector<8x32xf32>
    %72 = arith.addf %70, %71 : vector<8x32xf32>
    %cst_32 = arith.constant dense<0.000000e+00> : vector<8x96xf32>
    %73 = tpu.matmul %72, %16, %cst_32 {dimension_numbers = #tpu.dot_dimension_numbers<[1], [0], [0], [1], [0, 0, 1, 1], [], []>} : vector<8x32xf32>, vector<32x96xf32>, vector<8x96xf32> -> vector<8x96xf32>
    %74 = arith.addf %73, %20 : vector<8x96xf32>
    %c8_33 = arith.constant 8 : index
    %c0_34 = arith.constant 0 : index
    %75 = vector.load %arg10[%c8_33, %c0_34] : memref<64x96xf32, #tpu.memory_space<vmem>>, vector<8x96xf32>
    tpu.vector_store %arg10[%c8_33, %c0_34], %74 {strides = array<i32>} : memref<64x96xf32, #tpu.memory_space<vmem>>, vector<8x96xf32>,
    %c16 = arith.constant 16 : index
    %c0_35 = arith.constant 0 : index
    %76 = vector.load %arg9[%c16, %c0_35] : memref<64x96xf32, #tpu.memory_space<vmem>>, vector<8x96xf32>
    %cst_36 = arith.constant dense<0.000000e+00> : vector<8x96xf32>
    %77 = tpu.matmul %72, %10, %cst_36 {dimension_numbers = #tpu.dot_dimension_numbers<[1], [0], [0], [1], [0, 0, 1, 1], [], []>} : vector<8x32xf32>, vector<32x96xf32>, vector<8x96xf32> -> vector<8x96xf32>
    %78 = vector.extract_strided_slice %76 {offsets = [0, 0], sizes = [8, 32], strides = [1, 1]} : vector<8x96xf32> to vector<8x32xf32>
    %79 = vector.extract_strided_slice %77 {offsets = [0, 0], sizes = [8, 32], strides = [1, 1]} : vector<8x96xf32> to vector<8x32xf32>
    %80 = arith.addf %78, %79 : vector<8x32xf32>
    %81 = arith.negf %80 : vector<8x32xf32>
    %82 = math.exp %81 : vector<8x32xf32>
    %cst_37 = arith.constant 1.000000e+00 : f32
    %83 = vector.broadcast %cst_37 : f32 to vector<8x32xf32>
    %84 = arith.addf %83, %82 : vector<8x32xf32>
    %85 = arith.divf %83, %84 : vector<8x32xf32>
    %86 = vector.extract_strided_slice %76 {offsets = [0, 32], sizes = [8, 32], strides = [1, 1]} : vector<8x96xf32> to vector<8x32xf32>
    %87 = vector.extract_strided_slice %77 {offsets = [0, 32], sizes = [8, 32], strides = [1, 1]} : vector<8x96xf32> to vector<8x32xf32>
    %88 = arith.addf %86, %87 : vector<8x32xf32>
    %89 = arith.negf %88 : vector<8x32xf32>
    %90 = math.exp %89 : vector<8x32xf32>
    %cst_38 = arith.constant 1.000000e+00 : f32
    %91 = vector.broadcast %cst_38 : f32 to vector<8x32xf32>
    %92 = arith.addf %91, %90 : vector<8x32xf32>
    %93 = arith.divf %91, %92 : vector<8x32xf32>
    %94 = vector.extract_strided_slice %76 {offsets = [0, 64], sizes = [8, 32], strides = [1, 1]} : vector<8x96xf32> to vector<8x32xf32>
    %95 = vector.extract_strided_slice %77 {offsets = [0, 64], sizes = [8, 32], strides = [1, 1]} : vector<8x96xf32> to vector<8x32xf32>
    %96 = arith.addf %95, %14 : vector<8x32xf32>
    %97 = arith.mulf %85, %96 : vector<8x32xf32>
    %98 = arith.addf %94, %97 : vector<8x32xf32>
    %99 = math.tanh %98 : vector<8x32xf32>
    %cst_39 = arith.constant 1.000000e+00 : f32
    %100 = vector.broadcast %cst_39 : f32 to vector<8x32xf32>
    %101 = arith.subf %100, %93 : vector<8x32xf32>
    %102 = arith.mulf %101, %99 : vector<8x32xf32>
    %103 = arith.mulf %93, %72 : vector<8x32xf32>
    %104 = arith.addf %102, %103 : vector<8x32xf32>
    %cst_40 = arith.constant dense<0.000000e+00> : vector<8x96xf32>
    %105 = tpu.matmul %104, %16, %cst_40 {dimension_numbers = #tpu.dot_dimension_numbers<[1], [0], [0], [1], [0, 0, 1, 1], [], []>} : vector<8x32xf32>, vector<32x96xf32>, vector<8x96xf32> -> vector<8x96xf32>
    %106 = arith.addf %105, %20 : vector<8x96xf32>
    %c16_41 = arith.constant 16 : index
    %c0_42 = arith.constant 0 : index
    %107 = vector.load %arg10[%c16_41, %c0_42] : memref<64x96xf32, #tpu.memory_space<vmem>>, vector<8x96xf32>
    tpu.vector_store %arg10[%c16_41, %c0_42], %106 {strides = array<i32>} : memref<64x96xf32, #tpu.memory_space<vmem>>, vector<8x96xf32>,
    %c24 = arith.constant 24 : index
    %c0_43 = arith.constant 0 : index
    %108 = vector.load %arg9[%c24, %c0_43] : memref<64x96xf32, #tpu.memory_space<vmem>>, vector<8x96xf32>
    %cst_44 = arith.constant dense<0.000000e+00> : vector<8x96xf32>
    %109 = tpu.matmul %104, %10, %cst_44 {dimension_numbers = #tpu.dot_dimension_numbers<[1], [0], [0], [1], [0, 0, 1, 1], [], []>} : vector<8x32xf32>, vector<32x96xf32>, vector<8x96xf32> -> vector<8x96xf32>
    %110 = vector.extract_strided_slice %108 {offsets = [0, 0], sizes = [8, 32], strides = [1, 1]} : vector<8x96xf32> to vector<8x32xf32>
    %111 = vector.extract_strided_slice %109 {offsets = [0, 0], sizes = [8, 32], strides = [1, 1]} : vector<8x96xf32> to vector<8x32xf32>
    %112 = arith.addf %110, %111 : vector<8x32xf32>
    %113 = arith.negf %112 : vector<8x32xf32>
    %114 = math.exp %113 : vector<8x32xf32>
    %cst_45 = arith.constant 1.000000e+00 : f32
    %115 = vector.broadcast %cst_45 : f32 to vector<8x32xf32>
    %116 = arith.addf %115, %114 : vector<8x32xf32>
    %117 = arith.divf %115, %116 : vector<8x32xf32>
    %118 = vector.extract_strided_slice %108 {offsets = [0, 32], sizes = [8, 32], strides = [1, 1]} : vector<8x96xf32> to vector<8x32xf32>
    %119 = vector.extract_strided_slice %109 {offsets = [0, 32], sizes = [8, 32], strides = [1, 1]} : vector<8x96xf32> to vector<8x32xf32>
    %120 = arith.addf %118, %119 : vector<8x32xf32>
    %121 = arith.negf %120 : vector<8x32xf32>
    %122 = math.exp %121 : vector<8x32xf32>
    %cst_46 = arith.constant 1.000000e+00 : f32
    %123 = vector.broadcast %cst_46 : f32 to vector<8x32xf32>
    %124 = arith.addf %123, %122 : vector<8x32xf32>
    %125 = arith.divf %123, %124 : vector<8x32xf32>
    %126 = vector.extract_strided_slice %108 {offsets = [0, 64], sizes = [8, 32], strides = [1, 1]} : vector<8x96xf32> to vector<8x32xf32>
    %127 = vector.extract_strided_slice %109 {offsets = [0, 64], sizes = [8, 32], strides = [1, 1]} : vector<8x96xf32> to vector<8x32xf32>
    %128 = arith.addf %127, %14 : vector<8x32xf32>
    %129 = arith.mulf %117, %128 : vector<8x32xf32>
    %130 = arith.addf %126, %129 : vector<8x32xf32>
    %131 = math.tanh %130 : vector<8x32xf32>
    %cst_47 = arith.constant 1.000000e+00 : f32
    %132 = vector.broadcast %cst_47 : f32 to vector<8x32xf32>
    %133 = arith.subf %132, %125 : vector<8x32xf32>
    %134 = arith.mulf %133, %131 : vector<8x32xf32>
    %135 = arith.mulf %125, %104 : vector<8x32xf32>
    %136 = arith.addf %134, %135 : vector<8x32xf32>
    %cst_48 = arith.constant dense<0.000000e+00> : vector<8x96xf32>
    %137 = tpu.matmul %136, %16, %cst_48 {dimension_numbers = #tpu.dot_dimension_numbers<[1], [0], [0], [1], [0, 0, 1, 1], [], []>} : vector<8x32xf32>, vector<32x96xf32>, vector<8x96xf32> -> vector<8x96xf32>
    %138 = arith.addf %137, %20 : vector<8x96xf32>
    %c24_49 = arith.constant 24 : index
    %c0_50 = arith.constant 0 : index
    %139 = vector.load %arg10[%c24_49, %c0_50] : memref<64x96xf32, #tpu.memory_space<vmem>>, vector<8x96xf32>
    tpu.vector_store %arg10[%c24_49, %c0_50], %138 {strides = array<i32>} : memref<64x96xf32, #tpu.memory_space<vmem>>, vector<8x96xf32>,
    %c32 = arith.constant 32 : index
    %c0_51 = arith.constant 0 : index
    %140 = vector.load %arg9[%c32, %c0_51] : memref<64x96xf32, #tpu.memory_space<vmem>>, vector<8x96xf32>
    %cst_52 = arith.constant dense<0.000000e+00> : vector<8x96xf32>
    %141 = tpu.matmul %136, %10, %cst_52 {dimension_numbers = #tpu.dot_dimension_numbers<[1], [0], [0], [1], [0, 0, 1, 1], [], []>} : vector<8x32xf32>, vector<32x96xf32>, vector<8x96xf32> -> vector<8x96xf32>
    %142 = vector.extract_strided_slice %140 {offsets = [0, 0], sizes = [8, 32], strides = [1, 1]} : vector<8x96xf32> to vector<8x32xf32>
    %143 = vector.extract_strided_slice %141 {offsets = [0, 0], sizes = [8, 32], strides = [1, 1]} : vector<8x96xf32> to vector<8x32xf32>
    %144 = arith.addf %142, %143 : vector<8x32xf32>
    %145 = arith.negf %144 : vector<8x32xf32>
    %146 = math.exp %145 : vector<8x32xf32>
    %cst_53 = arith.constant 1.000000e+00 : f32
    %147 = vector.broadcast %cst_53 : f32 to vector<8x32xf32>
    %148 = arith.addf %147, %146 : vector<8x32xf32>
    %149 = arith.divf %147, %148 : vector<8x32xf32>
    %150 = vector.extract_strided_slice %140 {offsets = [0, 32], sizes = [8, 32], strides = [1, 1]} : vector<8x96xf32> to vector<8x32xf32>
    %151 = vector.extract_strided_slice %141 {offsets = [0, 32], sizes = [8, 32], strides = [1, 1]} : vector<8x96xf32> to vector<8x32xf32>
    %152 = arith.addf %150, %151 : vector<8x32xf32>
    %153 = arith.negf %152 : vector<8x32xf32>
    %154 = math.exp %153 : vector<8x32xf32>
    %cst_54 = arith.constant 1.000000e+00 : f32
    %155 = vector.broadcast %cst_54 : f32 to vector<8x32xf32>
    %156 = arith.addf %155, %154 : vector<8x32xf32>
    %157 = arith.divf %155, %156 : vector<8x32xf32>
    %158 = vector.extract_strided_slice %140 {offsets = [0, 64], sizes = [8, 32], strides = [1, 1]} : vector<8x96xf32> to vector<8x32xf32>
    %159 = vector.extract_strided_slice %141 {offsets = [0, 64], sizes = [8, 32], strides = [1, 1]} : vector<8x96xf32> to vector<8x32xf32>
    %160 = arith.addf %159, %14 : vector<8x32xf32>
    %161 = arith.mulf %149, %160 : vector<8x32xf32>
    %162 = arith.addf %158, %161 : vector<8x32xf32>
    %163 = math.tanh %162 : vector<8x32xf32>
    %cst_55 = arith.constant 1.000000e+00 : f32
    %164 = vector.broadcast %cst_55 : f32 to vector<8x32xf32>
    %165 = arith.subf %164, %157 : vector<8x32xf32>
    %166 = arith.mulf %165, %163 : vector<8x32xf32>
    %167 = arith.mulf %157, %136 : vector<8x32xf32>
    %168 = arith.addf %166, %167 : vector<8x32xf32>
    %cst_56 = arith.constant dense<0.000000e+00> : vector<8x96xf32>
    %169 = tpu.matmul %168, %16, %cst_56 {dimension_numbers = #tpu.dot_dimension_numbers<[1], [0], [0], [1], [0, 0, 1, 1], [], []>} : vector<8x32xf32>, vector<32x96xf32>, vector<8x96xf32> -> vector<8x96xf32>
    %170 = arith.addf %169, %20 : vector<8x96xf32>
    %c32_57 = arith.constant 32 : index
    %c0_58 = arith.constant 0 : index
    %171 = vector.load %arg10[%c32_57, %c0_58] : memref<64x96xf32, #tpu.memory_space<vmem>>, vector<8x96xf32>
    tpu.vector_store %arg10[%c32_57, %c0_58], %170 {strides = array<i32>} : memref<64x96xf32, #tpu.memory_space<vmem>>, vector<8x96xf32>,
    %c40 = arith.constant 40 : index
    %c0_59 = arith.constant 0 : index
    %172 = vector.load %arg9[%c40, %c0_59] : memref<64x96xf32, #tpu.memory_space<vmem>>, vector<8x96xf32>
    %cst_60 = arith.constant dense<0.000000e+00> : vector<8x96xf32>
    %173 = tpu.matmul %168, %10, %cst_60 {dimension_numbers = #tpu.dot_dimension_numbers<[1], [0], [0], [1], [0, 0, 1, 1], [], []>} : vector<8x32xf32>, vector<32x96xf32>, vector<8x96xf32> -> vector<8x96xf32>
    %174 = vector.extract_strided_slice %172 {offsets = [0, 0], sizes = [8, 32], strides = [1, 1]} : vector<8x96xf32> to vector<8x32xf32>
    %175 = vector.extract_strided_slice %173 {offsets = [0, 0], sizes = [8, 32], strides = [1, 1]} : vector<8x96xf32> to vector<8x32xf32>
    %176 = arith.addf %174, %175 : vector<8x32xf32>
    %177 = arith.negf %176 : vector<8x32xf32>
    %178 = math.exp %177 : vector<8x32xf32>
    %cst_61 = arith.constant 1.000000e+00 : f32
    %179 = vector.broadcast %cst_61 : f32 to vector<8x32xf32>
    %180 = arith.addf %179, %178 : vector<8x32xf32>
    %181 = arith.divf %179, %180 : vector<8x32xf32>
    %182 = vector.extract_strided_slice %172 {offsets = [0, 32], sizes = [8, 32], strides = [1, 1]} : vector<8x96xf32> to vector<8x32xf32>
    %183 = vector.extract_strided_slice %173 {offsets = [0, 32], sizes = [8, 32], strides = [1, 1]} : vector<8x96xf32> to vector<8x32xf32>
    %184 = arith.addf %182, %183 : vector<8x32xf32>
    %185 = arith.negf %184 : vector<8x32xf32>
    %186 = math.exp %185 : vector<8x32xf32>
    %cst_62 = arith.constant 1.000000e+00 : f32
    %187 = vector.broadcast %cst_62 : f32 to vector<8x32xf32>
    %188 = arith.addf %187, %186 : vector<8x32xf32>
    %189 = arith.divf %187, %188 : vector<8x32xf32>
    %190 = vector.extract_strided_slice %172 {offsets = [0, 64], sizes = [8, 32], strides = [1, 1]} : vector<8x96xf32> to vector<8x32xf32>
    %191 = vector.extract_strided_slice %173 {offsets = [0, 64], sizes = [8, 32], strides = [1, 1]} : vector<8x96xf32> to vector<8x32xf32>
    %192 = arith.addf %191, %14 : vector<8x32xf32>
    %193 = arith.mulf %181, %192 : vector<8x32xf32>
    %194 = arith.addf %190, %193 : vector<8x32xf32>
    %195 = math.tanh %194 : vector<8x32xf32>
    %cst_63 = arith.constant 1.000000e+00 : f32
    %196 = vector.broadcast %cst_63 : f32 to vector<8x32xf32>
    %197 = arith.subf %196, %189 : vector<8x32xf32>
    %198 = arith.mulf %197, %195 : vector<8x32xf32>
    %199 = arith.mulf %189, %168 : vector<8x32xf32>
    %200 = arith.addf %198, %199 : vector<8x32xf32>
    %cst_64 = arith.constant dense<0.000000e+00> : vector<8x96xf32>
    %201 = tpu.matmul %200, %16, %cst_64 {dimension_numbers = #tpu.dot_dimension_numbers<[1], [0], [0], [1], [0, 0, 1, 1], [], []>} : vector<8x32xf32>, vector<32x96xf32>, vector<8x96xf32> -> vector<8x96xf32>
    %202 = arith.addf %201, %20 : vector<8x96xf32>
    %c40_65 = arith.constant 40 : index
    %c0_66 = arith.constant 0 : index
    %203 = vector.load %arg10[%c40_65, %c0_66] : memref<64x96xf32, #tpu.memory_space<vmem>>, vector<8x96xf32>
    tpu.vector_store %arg10[%c40_65, %c0_66], %202 {strides = array<i32>} : memref<64x96xf32, #tpu.memory_space<vmem>>, vector<8x96xf32>,
    %c48 = arith.constant 48 : index
    %c0_67 = arith.constant 0 : index
    %204 = vector.load %arg9[%c48, %c0_67] : memref<64x96xf32, #tpu.memory_space<vmem>>, vector<8x96xf32>
    %cst_68 = arith.constant dense<0.000000e+00> : vector<8x96xf32>
    %205 = tpu.matmul %200, %10, %cst_68 {dimension_numbers = #tpu.dot_dimension_numbers<[1], [0], [0], [1], [0, 0, 1, 1], [], []>} : vector<8x32xf32>, vector<32x96xf32>, vector<8x96xf32> -> vector<8x96xf32>
    %206 = vector.extract_strided_slice %204 {offsets = [0, 0], sizes = [8, 32], strides = [1, 1]} : vector<8x96xf32> to vector<8x32xf32>
    %207 = vector.extract_strided_slice %205 {offsets = [0, 0], sizes = [8, 32], strides = [1, 1]} : vector<8x96xf32> to vector<8x32xf32>
    %208 = arith.addf %206, %207 : vector<8x32xf32>
    %209 = arith.negf %208 : vector<8x32xf32>
    %210 = math.exp %209 : vector<8x32xf32>
    %cst_69 = arith.constant 1.000000e+00 : f32
    %211 = vector.broadcast %cst_69 : f32 to vector<8x32xf32>
    %212 = arith.addf %211, %210 : vector<8x32xf32>
    %213 = arith.divf %211, %212 : vector<8x32xf32>
    %214 = vector.extract_strided_slice %204 {offsets = [0, 32], sizes = [8, 32], strides = [1, 1]} : vector<8x96xf32> to vector<8x32xf32>
    %215 = vector.extract_strided_slice %205 {offsets = [0, 32], sizes = [8, 32], strides = [1, 1]} : vector<8x96xf32> to vector<8x32xf32>
    %216 = arith.addf %214, %215 : vector<8x32xf32>
    %217 = arith.negf %216 : vector<8x32xf32>
    %218 = math.exp %217 : vector<8x32xf32>
    %cst_70 = arith.constant 1.000000e+00 : f32
    %219 = vector.broadcast %cst_70 : f32 to vector<8x32xf32>
    %220 = arith.addf %219, %218 : vector<8x32xf32>
    %221 = arith.divf %219, %220 : vector<8x32xf32>
    %222 = vector.extract_strided_slice %204 {offsets = [0, 64], sizes = [8, 32], strides = [1, 1]} : vector<8x96xf32> to vector<8x32xf32>
    %223 = vector.extract_strided_slice %205 {offsets = [0, 64], sizes = [8, 32], strides = [1, 1]} : vector<8x96xf32> to vector<8x32xf32>
    %224 = arith.addf %223, %14 : vector<8x32xf32>
    %225 = arith.mulf %213, %224 : vector<8x32xf32>
    %226 = arith.addf %222, %225 : vector<8x32xf32>
    %227 = math.tanh %226 : vector<8x32xf32>
    %cst_71 = arith.constant 1.000000e+00 : f32
    %228 = vector.broadcast %cst_71 : f32 to vector<8x32xf32>
    %229 = arith.subf %228, %221 : vector<8x32xf32>
    %230 = arith.mulf %229, %227 : vector<8x32xf32>
    %231 = arith.mulf %221, %200 : vector<8x32xf32>
    %232 = arith.addf %230, %231 : vector<8x32xf32>
    %cst_72 = arith.constant dense<0.000000e+00> : vector<8x96xf32>
    %233 = tpu.matmul %232, %16, %cst_72 {dimension_numbers = #tpu.dot_dimension_numbers<[1], [0], [0], [1], [0, 0, 1, 1], [], []>} : vector<8x32xf32>, vector<32x96xf32>, vector<8x96xf32> -> vector<8x96xf32>
    %234 = arith.addf %233, %20 : vector<8x96xf32>
    %c48_73 = arith.constant 48 : index
    %c0_74 = arith.constant 0 : index
    %235 = vector.load %arg10[%c48_73, %c0_74] : memref<64x96xf32, #tpu.memory_space<vmem>>, vector<8x96xf32>
    tpu.vector_store %arg10[%c48_73, %c0_74], %234 {strides = array<i32>} : memref<64x96xf32, #tpu.memory_space<vmem>>, vector<8x96xf32>,
    %c56 = arith.constant 56 : index
    %c0_75 = arith.constant 0 : index
    %236 = vector.load %arg9[%c56, %c0_75] : memref<64x96xf32, #tpu.memory_space<vmem>>, vector<8x96xf32>
    %cst_76 = arith.constant dense<0.000000e+00> : vector<8x96xf32>
    %237 = tpu.matmul %232, %10, %cst_76 {dimension_numbers = #tpu.dot_dimension_numbers<[1], [0], [0], [1], [0, 0, 1, 1], [], []>} : vector<8x32xf32>, vector<32x96xf32>, vector<8x96xf32> -> vector<8x96xf32>
    %238 = vector.extract_strided_slice %236 {offsets = [0, 0], sizes = [8, 32], strides = [1, 1]} : vector<8x96xf32> to vector<8x32xf32>
    %239 = vector.extract_strided_slice %237 {offsets = [0, 0], sizes = [8, 32], strides = [1, 1]} : vector<8x96xf32> to vector<8x32xf32>
    %240 = arith.addf %238, %239 : vector<8x32xf32>
    %241 = arith.negf %240 : vector<8x32xf32>
    %242 = math.exp %241 : vector<8x32xf32>
    %cst_77 = arith.constant 1.000000e+00 : f32
    %243 = vector.broadcast %cst_77 : f32 to vector<8x32xf32>
    %244 = arith.addf %243, %242 : vector<8x32xf32>
    %245 = arith.divf %243, %244 : vector<8x32xf32>
    %246 = vector.extract_strided_slice %236 {offsets = [0, 32], sizes = [8, 32], strides = [1, 1]} : vector<8x96xf32> to vector<8x32xf32>
    %247 = vector.extract_strided_slice %237 {offsets = [0, 32], sizes = [8, 32], strides = [1, 1]} : vector<8x96xf32> to vector<8x32xf32>
    %248 = arith.addf %246, %247 : vector<8x32xf32>
    %249 = arith.negf %248 : vector<8x32xf32>
    %250 = math.exp %249 : vector<8x32xf32>
    %cst_78 = arith.constant 1.000000e+00 : f32
    %251 = vector.broadcast %cst_78 : f32 to vector<8x32xf32>
    %252 = arith.addf %251, %250 : vector<8x32xf32>
    %253 = arith.divf %251, %252 : vector<8x32xf32>
    %254 = vector.extract_strided_slice %236 {offsets = [0, 64], sizes = [8, 32], strides = [1, 1]} : vector<8x96xf32> to vector<8x32xf32>
    %255 = vector.extract_strided_slice %237 {offsets = [0, 64], sizes = [8, 32], strides = [1, 1]} : vector<8x96xf32> to vector<8x32xf32>
    %256 = arith.addf %255, %14 : vector<8x32xf32>
    %257 = arith.mulf %245, %256 : vector<8x32xf32>
    %258 = arith.addf %254, %257 : vector<8x32xf32>
    %259 = math.tanh %258 : vector<8x32xf32>
    %cst_79 = arith.constant 1.000000e+00 : f32
    %260 = vector.broadcast %cst_79 : f32 to vector<8x32xf32>
    %261 = arith.subf %260, %253 : vector<8x32xf32>
    %262 = arith.mulf %261, %259 : vector<8x32xf32>
    %263 = arith.mulf %253, %232 : vector<8x32xf32>
    %264 = arith.addf %262, %263 : vector<8x32xf32>
    %cst_80 = arith.constant dense<0.000000e+00> : vector<8x96xf32>
    %265 = tpu.matmul %264, %16, %cst_80 {dimension_numbers = #tpu.dot_dimension_numbers<[1], [0], [0], [1], [0, 0, 1, 1], [], []>} : vector<8x32xf32>, vector<32x96xf32>, vector<8x96xf32> -> vector<8x96xf32>
    %266 = arith.addf %265, %20 : vector<8x96xf32>
    %c56_81 = arith.constant 56 : index
    %c0_82 = arith.constant 0 : index
    %267 = vector.load %arg10[%c56_81, %c0_82] : memref<64x96xf32, #tpu.memory_space<vmem>>, vector<8x96xf32>
    tpu.vector_store %arg10[%c56_81, %c0_82], %266 {strides = array<i32>} : memref<64x96xf32, #tpu.memory_space<vmem>>, vector<8x96xf32>,
    %c0_83 = arith.constant 0 : index
    %c0_84 = arith.constant 0 : index
    %268 = vector.load %arg8[%c0_83, %c0_84] : memref<16x32xf32, #tpu.memory_space<vmem>>, vector<8x32xf32>
    tpu.vector_store %arg8[%c0_83, %c0_84], %264 {strides = array<i32>} : memref<16x32xf32, #tpu.memory_space<vmem>>, vector<8x32xf32>,
    %c1_85 = arith.constant 1 : index
    %c0_86 = arith.constant 0 : index
    %c0_87 = arith.constant 0 : index
    %269 = vector.load %arg4[%c1_85, %c0_86, %c0_87] : memref<2x32x96xf32, #tpu.memory_space<vmem>>, vector<1x32x96xf32>
    %270 = vector.shape_cast %269 : vector<1x32x96xf32> to vector<32x96xf32>
    %c1_88 = arith.constant 1 : index
    %c0_89 = arith.constant 0 : index
    %c0_90 = arith.constant 0 : index
    %271 = vector.load %arg6[%c1_88, %c0_89, %c0_90] : memref<2x1x32xf32, #tpu.memory_space<vmem>>, vector<1x1x32xf32>
    %272 = vector.shape_cast %271 : vector<1x1x32xf32> to vector<1x32xf32>
    %273 = vector.shape_cast %272 : vector<1x32xf32> to vector<1x32xf32>
    %274 = vector.broadcast %273 : vector<1x32xf32> to vector<8x32xf32>
    %c0_91 = arith.constant 0 : index
    %c0_92 = arith.constant 0 : index
    %275 = vector.load %arg10[%c0_91, %c0_92] : memref<64x96xf32, #tpu.memory_space<vmem>>, vector<8x96xf32>
    %276 = vector.extract_strided_slice %275 {offsets = [0, 0], sizes = [8, 32], strides = [1, 1]} : vector<8x96xf32> to vector<8x32xf32>
    %277 = arith.negf %276 : vector<8x32xf32>
    %278 = math.exp %277 : vector<8x32xf32>
    %cst_93 = arith.constant 1.000000e+00 : f32
    %279 = vector.broadcast %cst_93 : f32 to vector<8x32xf32>
    %280 = arith.addf %279, %278 : vector<8x32xf32>
    %281 = arith.divf %279, %280 : vector<8x32xf32>
    %282 = vector.extract_strided_slice %275 {offsets = [0, 32], sizes = [8, 32], strides = [1, 1]} : vector<8x96xf32> to vector<8x32xf32>
    %283 = arith.negf %282 : vector<8x32xf32>
    %284 = math.exp %283 : vector<8x32xf32>
    %cst_94 = arith.constant 1.000000e+00 : f32
    %285 = vector.broadcast %cst_94 : f32 to vector<8x32xf32>
    %286 = arith.addf %285, %284 : vector<8x32xf32>
    %287 = arith.divf %285, %286 : vector<8x32xf32>
    %288 = vector.extract_strided_slice %275 {offsets = [0, 64], sizes = [8, 32], strides = [1, 1]} : vector<8x96xf32> to vector<8x32xf32>
    %289 = arith.mulf %281, %274 : vector<8x32xf32>
    %290 = arith.addf %288, %289 : vector<8x32xf32>
    %291 = math.tanh %290 : vector<8x32xf32>
    %cst_95 = arith.constant 1.000000e+00 : f32
    %292 = vector.broadcast %cst_95 : f32 to vector<8x32xf32>
    %293 = arith.subf %292, %287 : vector<8x32xf32>
    %294 = arith.mulf %293, %291 : vector<8x32xf32>
    %c0_96 = arith.constant 0 : index
    %c0_97 = arith.constant 0 : index
    %295 = vector.load %arg7[%c0_96, %c0_97] : memref<64x32xf32, #tpu.memory_space<vmem>>, vector<8x32xf32>
    tpu.vector_store %arg7[%c0_96, %c0_97], %294 {strides = array<i32>} : memref<64x32xf32, #tpu.memory_space<vmem>>, vector<8x32xf32>,
    %c8_98 = arith.constant 8 : index
    %c0_99 = arith.constant 0 : index
    %296 = vector.load %arg10[%c8_98, %c0_99] : memref<64x96xf32, #tpu.memory_space<vmem>>, vector<8x96xf32>
    %cst_100 = arith.constant dense<0.000000e+00> : vector<8x96xf32>
    %297 = tpu.matmul %294, %270, %cst_100 {dimension_numbers = #tpu.dot_dimension_numbers<[1], [0], [0], [1], [0, 0, 1, 1], [], []>} : vector<8x32xf32>, vector<32x96xf32>, vector<8x96xf32> -> vector<8x96xf32>
    %298 = vector.extract_strided_slice %296 {offsets = [0, 0], sizes = [8, 32], strides = [1, 1]} : vector<8x96xf32> to vector<8x32xf32>
    %299 = vector.extract_strided_slice %297 {offsets = [0, 0], sizes = [8, 32], strides = [1, 1]} : vector<8x96xf32> to vector<8x32xf32>
    %300 = arith.addf %298, %299 : vector<8x32xf32>
    %301 = arith.negf %300 : vector<8x32xf32>
    %302 = math.exp %301 : vector<8x32xf32>
    %cst_101 = arith.constant 1.000000e+00 : f32
    %303 = vector.broadcast %cst_101 : f32 to vector<8x32xf32>
    %304 = arith.addf %303, %302 : vector<8x32xf32>
    %305 = arith.divf %303, %304 : vector<8x32xf32>
    %306 = vector.extract_strided_slice %296 {offsets = [0, 32], sizes = [8, 32], strides = [1, 1]} : vector<8x96xf32> to vector<8x32xf32>
    %307 = vector.extract_strided_slice %297 {offsets = [0, 32], sizes = [8, 32], strides = [1, 1]} : vector<8x96xf32> to vector<8x32xf32>
    %308 = arith.addf %306, %307 : vector<8x32xf32>
    %309 = arith.negf %308 : vector<8x32xf32>
    %310 = math.exp %309 : vector<8x32xf32>
    %cst_102 = arith.constant 1.000000e+00 : f32
    %311 = vector.broadcast %cst_102 : f32 to vector<8x32xf32>
    %312 = arith.addf %311, %310 : vector<8x32xf32>
    %313 = arith.divf %311, %312 : vector<8x32xf32>
    %314 = vector.extract_strided_slice %296 {offsets = [0, 64], sizes = [8, 32], strides = [1, 1]} : vector<8x96xf32> to vector<8x32xf32>
    %315 = vector.extract_strided_slice %297 {offsets = [0, 64], sizes = [8, 32], strides = [1, 1]} : vector<8x96xf32> to vector<8x32xf32>
    %316 = arith.addf %315, %274 : vector<8x32xf32>
    %317 = arith.mulf %305, %316 : vector<8x32xf32>
    %318 = arith.addf %314, %317 : vector<8x32xf32>
    %319 = math.tanh %318 : vector<8x32xf32>
    %cst_103 = arith.constant 1.000000e+00 : f32
    %320 = vector.broadcast %cst_103 : f32 to vector<8x32xf32>
    %321 = arith.subf %320, %313 : vector<8x32xf32>
    %322 = arith.mulf %321, %319 : vector<8x32xf32>
    %323 = arith.mulf %313, %294 : vector<8x32xf32>
    %324 = arith.addf %322, %323 : vector<8x32xf32>
    %c8_104 = arith.constant 8 : index
    %c0_105 = arith.constant 0 : index
    %325 = vector.load %arg7[%c8_104, %c0_105] : memref<64x32xf32, #tpu.memory_space<vmem>>, vector<8x32xf32>
    tpu.vector_store %arg7[%c8_104, %c0_105], %324 {strides = array<i32>} : memref<64x32xf32, #tpu.memory_space<vmem>>, vector<8x32xf32>,
    %c16_106 = arith.constant 16 : index
    %c0_107 = arith.constant 0 : index
    %326 = vector.load %arg10[%c16_106, %c0_107] : memref<64x96xf32, #tpu.memory_space<vmem>>, vector<8x96xf32>
    %cst_108 = arith.constant dense<0.000000e+00> : vector<8x96xf32>
    %327 = tpu.matmul %324, %270, %cst_108 {dimension_numbers = #tpu.dot_dimension_numbers<[1], [0], [0], [1], [0, 0, 1, 1], [], []>} : vector<8x32xf32>, vector<32x96xf32>, vector<8x96xf32> -> vector<8x96xf32>
    %328 = vector.extract_strided_slice %326 {offsets = [0, 0], sizes = [8, 32], strides = [1, 1]} : vector<8x96xf32> to vector<8x32xf32>
    %329 = vector.extract_strided_slice %327 {offsets = [0, 0], sizes = [8, 32], strides = [1, 1]} : vector<8x96xf32> to vector<8x32xf32>
    %330 = arith.addf %328, %329 : vector<8x32xf32>
    %331 = arith.negf %330 : vector<8x32xf32>
    %332 = math.exp %331 : vector<8x32xf32>
    %cst_109 = arith.constant 1.000000e+00 : f32
    %333 = vector.broadcast %cst_109 : f32 to vector<8x32xf32>
    %334 = arith.addf %333, %332 : vector<8x32xf32>
    %335 = arith.divf %333, %334 : vector<8x32xf32>
    %336 = vector.extract_strided_slice %326 {offsets = [0, 32], sizes = [8, 32], strides = [1, 1]} : vector<8x96xf32> to vector<8x32xf32>
    %337 = vector.extract_strided_slice %327 {offsets = [0, 32], sizes = [8, 32], strides = [1, 1]} : vector<8x96xf32> to vector<8x32xf32>
    %338 = arith.addf %336, %337 : vector<8x32xf32>
    %339 = arith.negf %338 : vector<8x32xf32>
    %340 = math.exp %339 : vector<8x32xf32>
    %cst_110 = arith.constant 1.000000e+00 : f32
    %341 = vector.broadcast %cst_110 : f32 to vector<8x32xf32>
    %342 = arith.addf %341, %340 : vector<8x32xf32>
    %343 = arith.divf %341, %342 : vector<8x32xf32>
    %344 = vector.extract_strided_slice %326 {offsets = [0, 64], sizes = [8, 32], strides = [1, 1]} : vector<8x96xf32> to vector<8x32xf32>
    %345 = vector.extract_strided_slice %327 {offsets = [0, 64], sizes = [8, 32], strides = [1, 1]} : vector<8x96xf32> to vector<8x32xf32>
    %346 = arith.addf %345, %274 : vector<8x32xf32>
    %347 = arith.mulf %335, %346 : vector<8x32xf32>
    %348 = arith.addf %344, %347 : vector<8x32xf32>
    %349 = math.tanh %348 : vector<8x32xf32>
    %cst_111 = arith.constant 1.000000e+00 : f32
    %350 = vector.broadcast %cst_111 : f32 to vector<8x32xf32>
    %351 = arith.subf %350, %343 : vector<8x32xf32>
    %352 = arith.mulf %351, %349 : vector<8x32xf32>
    %353 = arith.mulf %343, %324 : vector<8x32xf32>
    %354 = arith.addf %352, %353 : vector<8x32xf32>
    %c16_112 = arith.constant 16 : index
    %c0_113 = arith.constant 0 : index
    %355 = vector.load %arg7[%c16_112, %c0_113] : memref<64x32xf32, #tpu.memory_space<vmem>>, vector<8x32xf32>
    tpu.vector_store %arg7[%c16_112, %c0_113], %354 {strides = array<i32>} : memref<64x32xf32, #tpu.memory_space<vmem>>, vector<8x32xf32>,
    %c24_114 = arith.constant 24 : index
    %c0_115 = arith.constant 0 : index
    %356 = vector.load %arg10[%c24_114, %c0_115] : memref<64x96xf32, #tpu.memory_space<vmem>>, vector<8x96xf32>
    %cst_116 = arith.constant dense<0.000000e+00> : vector<8x96xf32>
    %357 = tpu.matmul %354, %270, %cst_116 {dimension_numbers = #tpu.dot_dimension_numbers<[1], [0], [0], [1], [0, 0, 1, 1], [], []>} : vector<8x32xf32>, vector<32x96xf32>, vector<8x96xf32> -> vector<8x96xf32>
    %358 = vector.extract_strided_slice %356 {offsets = [0, 0], sizes = [8, 32], strides = [1, 1]} : vector<8x96xf32> to vector<8x32xf32>
    %359 = vector.extract_strided_slice %357 {offsets = [0, 0], sizes = [8, 32], strides = [1, 1]} : vector<8x96xf32> to vector<8x32xf32>
    %360 = arith.addf %358, %359 : vector<8x32xf32>
    %361 = arith.negf %360 : vector<8x32xf32>
    %362 = math.exp %361 : vector<8x32xf32>
    %cst_117 = arith.constant 1.000000e+00 : f32
    %363 = vector.broadcast %cst_117 : f32 to vector<8x32xf32>
    %364 = arith.addf %363, %362 : vector<8x32xf32>
    %365 = arith.divf %363, %364 : vector<8x32xf32>
    %366 = vector.extract_strided_slice %356 {offsets = [0, 32], sizes = [8, 32], strides = [1, 1]} : vector<8x96xf32> to vector<8x32xf32>
    %367 = vector.extract_strided_slice %357 {offsets = [0, 32], sizes = [8, 32], strides = [1, 1]} : vector<8x96xf32> to vector<8x32xf32>
    %368 = arith.addf %366, %367 : vector<8x32xf32>
    %369 = arith.negf %368 : vector<8x32xf32>
    %370 = math.exp %369 : vector<8x32xf32>
    %cst_118 = arith.constant 1.000000e+00 : f32
    %371 = vector.broadcast %cst_118 : f32 to vector<8x32xf32>
    %372 = arith.addf %371, %370 : vector<8x32xf32>
    %373 = arith.divf %371, %372 : vector<8x32xf32>
    %374 = vector.extract_strided_slice %356 {offsets = [0, 64], sizes = [8, 32], strides = [1, 1]} : vector<8x96xf32> to vector<8x32xf32>
    %375 = vector.extract_strided_slice %357 {offsets = [0, 64], sizes = [8, 32], strides = [1, 1]} : vector<8x96xf32> to vector<8x32xf32>
    %376 = arith.addf %375, %274 : vector<8x32xf32>
    %377 = arith.mulf %365, %376 : vector<8x32xf32>
    %378 = arith.addf %374, %377 : vector<8x32xf32>
    %379 = math.tanh %378 : vector<8x32xf32>
    %cst_119 = arith.constant 1.000000e+00 : f32
    %380 = vector.broadcast %cst_119 : f32 to vector<8x32xf32>
    %381 = arith.subf %380, %373 : vector<8x32xf32>
    %382 = arith.mulf %381, %379 : vector<8x32xf32>
    %383 = arith.mulf %373, %354 : vector<8x32xf32>
    %384 = arith.addf %382, %383 : vector<8x32xf32>
    %c24_120 = arith.constant 24 : index
    %c0_121 = arith.constant 0 : index
    %385 = vector.load %arg7[%c24_120, %c0_121] : memref<64x32xf32, #tpu.memory_space<vmem>>, vector<8x32xf32>
    tpu.vector_store %arg7[%c24_120, %c0_121], %384 {strides = array<i32>} : memref<64x32xf32, #tpu.memory_space<vmem>>, vector<8x32xf32>,
    %c32_122 = arith.constant 32 : index
    %c0_123 = arith.constant 0 : index
    %386 = vector.load %arg10[%c32_122, %c0_123] : memref<64x96xf32, #tpu.memory_space<vmem>>, vector<8x96xf32>
    %cst_124 = arith.constant dense<0.000000e+00> : vector<8x96xf32>
    %387 = tpu.matmul %384, %270, %cst_124 {dimension_numbers = #tpu.dot_dimension_numbers<[1], [0], [0], [1], [0, 0, 1, 1], [], []>} : vector<8x32xf32>, vector<32x96xf32>, vector<8x96xf32> -> vector<8x96xf32>
    %388 = vector.extract_strided_slice %386 {offsets = [0, 0], sizes = [8, 32], strides = [1, 1]} : vector<8x96xf32> to vector<8x32xf32>
    %389 = vector.extract_strided_slice %387 {offsets = [0, 0], sizes = [8, 32], strides = [1, 1]} : vector<8x96xf32> to vector<8x32xf32>
    %390 = arith.addf %388, %389 : vector<8x32xf32>
    %391 = arith.negf %390 : vector<8x32xf32>
    %392 = math.exp %391 : vector<8x32xf32>
    %cst_125 = arith.constant 1.000000e+00 : f32
    %393 = vector.broadcast %cst_125 : f32 to vector<8x32xf32>
    %394 = arith.addf %393, %392 : vector<8x32xf32>
    %395 = arith.divf %393, %394 : vector<8x32xf32>
    %396 = vector.extract_strided_slice %386 {offsets = [0, 32], sizes = [8, 32], strides = [1, 1]} : vector<8x96xf32> to vector<8x32xf32>
    %397 = vector.extract_strided_slice %387 {offsets = [0, 32], sizes = [8, 32], strides = [1, 1]} : vector<8x96xf32> to vector<8x32xf32>
    %398 = arith.addf %396, %397 : vector<8x32xf32>
    %399 = arith.negf %398 : vector<8x32xf32>
    %400 = math.exp %399 : vector<8x32xf32>
    %cst_126 = arith.constant 1.000000e+00 : f32
    %401 = vector.broadcast %cst_126 : f32 to vector<8x32xf32>
    %402 = arith.addf %401, %400 : vector<8x32xf32>
    %403 = arith.divf %401, %402 : vector<8x32xf32>
    %404 = vector.extract_strided_slice %386 {offsets = [0, 64], sizes = [8, 32], strides = [1, 1]} : vector<8x96xf32> to vector<8x32xf32>
    %405 = vector.extract_strided_slice %387 {offsets = [0, 64], sizes = [8, 32], strides = [1, 1]} : vector<8x96xf32> to vector<8x32xf32>
    %406 = arith.addf %405, %274 : vector<8x32xf32>
    %407 = arith.mulf %395, %406 : vector<8x32xf32>
    %408 = arith.addf %404, %407 : vector<8x32xf32>
    %409 = math.tanh %408 : vector<8x32xf32>
    %cst_127 = arith.constant 1.000000e+00 : f32
    %410 = vector.broadcast %cst_127 : f32 to vector<8x32xf32>
    %411 = arith.subf %410, %403 : vector<8x32xf32>
    %412 = arith.mulf %411, %409 : vector<8x32xf32>
    %413 = arith.mulf %403, %384 : vector<8x32xf32>
    %414 = arith.addf %412, %413 : vector<8x32xf32>
    %c32_128 = arith.constant 32 : index
    %c0_129 = arith.constant 0 : index
    %415 = vector.load %arg7[%c32_128, %c0_129] : memref<64x32xf32, #tpu.memory_space<vmem>>, vector<8x32xf32>
    tpu.vector_store %arg7[%c32_128, %c0_129], %414 {strides = array<i32>} : memref<64x32xf32, #tpu.memory_space<vmem>>, vector<8x32xf32>,
    %c40_130 = arith.constant 40 : index
    %c0_131 = arith.constant 0 : index
    %416 = vector.load %arg10[%c40_130, %c0_131] : memref<64x96xf32, #tpu.memory_space<vmem>>, vector<8x96xf32>
    %cst_132 = arith.constant dense<0.000000e+00> : vector<8x96xf32>
    %417 = tpu.matmul %414, %270, %cst_132 {dimension_numbers = #tpu.dot_dimension_numbers<[1], [0], [0], [1], [0, 0, 1, 1], [], []>} : vector<8x32xf32>, vector<32x96xf32>, vector<8x96xf32> -> vector<8x96xf32>
    %418 = vector.extract_strided_slice %416 {offsets = [0, 0], sizes = [8, 32], strides = [1, 1]} : vector<8x96xf32> to vector<8x32xf32>
    %419 = vector.extract_strided_slice %417 {offsets = [0, 0], sizes = [8, 32], strides = [1, 1]} : vector<8x96xf32> to vector<8x32xf32>
    %420 = arith.addf %418, %419 : vector<8x32xf32>
    %421 = arith.negf %420 : vector<8x32xf32>
    %422 = math.exp %421 : vector<8x32xf32>
    %cst_133 = arith.constant 1.000000e+00 : f32
    %423 = vector.broadcast %cst_133 : f32 to vector<8x32xf32>
    %424 = arith.addf %423, %422 : vector<8x32xf32>
    %425 = arith.divf %423, %424 : vector<8x32xf32>
    %426 = vector.extract_strided_slice %416 {offsets = [0, 32], sizes = [8, 32], strides = [1, 1]} : vector<8x96xf32> to vector<8x32xf32>
    %427 = vector.extract_strided_slice %417 {offsets = [0, 32], sizes = [8, 32], strides = [1, 1]} : vector<8x96xf32> to vector<8x32xf32>
    %428 = arith.addf %426, %427 : vector<8x32xf32>
    %429 = arith.negf %428 : vector<8x32xf32>
    %430 = math.exp %429 : vector<8x32xf32>
    %cst_134 = arith.constant 1.000000e+00 : f32
    %431 = vector.broadcast %cst_134 : f32 to vector<8x32xf32>
    %432 = arith.addf %431, %430 : vector<8x32xf32>
    %433 = arith.divf %431, %432 : vector<8x32xf32>
    %434 = vector.extract_strided_slice %416 {offsets = [0, 64], sizes = [8, 32], strides = [1, 1]} : vector<8x96xf32> to vector<8x32xf32>
    %435 = vector.extract_strided_slice %417 {offsets = [0, 64], sizes = [8, 32], strides = [1, 1]} : vector<8x96xf32> to vector<8x32xf32>
    %436 = arith.addf %435, %274 : vector<8x32xf32>
    %437 = arith.mulf %425, %436 : vector<8x32xf32>
    %438 = arith.addf %434, %437 : vector<8x32xf32>
    %439 = math.tanh %438 : vector<8x32xf32>
    %cst_135 = arith.constant 1.000000e+00 : f32
    %440 = vector.broadcast %cst_135 : f32 to vector<8x32xf32>
    %441 = arith.subf %440, %433 : vector<8x32xf32>
    %442 = arith.mulf %441, %439 : vector<8x32xf32>
    %443 = arith.mulf %433, %414 : vector<8x32xf32>
    %444 = arith.addf %442, %443 : vector<8x32xf32>
    %c40_136 = arith.constant 40 : index
    %c0_137 = arith.constant 0 : index
    %445 = vector.load %arg7[%c40_136, %c0_137] : memref<64x32xf32, #tpu.memory_space<vmem>>, vector<8x32xf32>
    tpu.vector_store %arg7[%c40_136, %c0_137], %444 {strides = array<i32>} : memref<64x32xf32, #tpu.memory_space<vmem>>, vector<8x32xf32>,
    %c48_138 = arith.constant 48 : index
    %c0_139 = arith.constant 0 : index
    %446 = vector.load %arg10[%c48_138, %c0_139] : memref<64x96xf32, #tpu.memory_space<vmem>>, vector<8x96xf32>
    %cst_140 = arith.constant dense<0.000000e+00> : vector<8x96xf32>
    %447 = tpu.matmul %444, %270, %cst_140 {dimension_numbers = #tpu.dot_dimension_numbers<[1], [0], [0], [1], [0, 0, 1, 1], [], []>} : vector<8x32xf32>, vector<32x96xf32>, vector<8x96xf32> -> vector<8x96xf32>
    %448 = vector.extract_strided_slice %446 {offsets = [0, 0], sizes = [8, 32], strides = [1, 1]} : vector<8x96xf32> to vector<8x32xf32>
    %449 = vector.extract_strided_slice %447 {offsets = [0, 0], sizes = [8, 32], strides = [1, 1]} : vector<8x96xf32> to vector<8x32xf32>
    %450 = arith.addf %448, %449 : vector<8x32xf32>
    %451 = arith.negf %450 : vector<8x32xf32>
    %452 = math.exp %451 : vector<8x32xf32>
    %cst_141 = arith.constant 1.000000e+00 : f32
    %453 = vector.broadcast %cst_141 : f32 to vector<8x32xf32>
    %454 = arith.addf %453, %452 : vector<8x32xf32>
    %455 = arith.divf %453, %454 : vector<8x32xf32>
    %456 = vector.extract_strided_slice %446 {offsets = [0, 32], sizes = [8, 32], strides = [1, 1]} : vector<8x96xf32> to vector<8x32xf32>
    %457 = vector.extract_strided_slice %447 {offsets = [0, 32], sizes = [8, 32], strides = [1, 1]} : vector<8x96xf32> to vector<8x32xf32>
    %458 = arith.addf %456, %457 : vector<8x32xf32>
    %459 = arith.negf %458 : vector<8x32xf32>
    %460 = math.exp %459 : vector<8x32xf32>
    %cst_142 = arith.constant 1.000000e+00 : f32
    %461 = vector.broadcast %cst_142 : f32 to vector<8x32xf32>
    %462 = arith.addf %461, %460 : vector<8x32xf32>
    %463 = arith.divf %461, %462 : vector<8x32xf32>
    %464 = vector.extract_strided_slice %446 {offsets = [0, 64], sizes = [8, 32], strides = [1, 1]} : vector<8x96xf32> to vector<8x32xf32>
    %465 = vector.extract_strided_slice %447 {offsets = [0, 64], sizes = [8, 32], strides = [1, 1]} : vector<8x96xf32> to vector<8x32xf32>
    %466 = arith.addf %465, %274 : vector<8x32xf32>
    %467 = arith.mulf %455, %466 : vector<8x32xf32>
    %468 = arith.addf %464, %467 : vector<8x32xf32>
    %469 = math.tanh %468 : vector<8x32xf32>
    %cst_143 = arith.constant 1.000000e+00 : f32
    %470 = vector.broadcast %cst_143 : f32 to vector<8x32xf32>
    %471 = arith.subf %470, %463 : vector<8x32xf32>
    %472 = arith.mulf %471, %469 : vector<8x32xf32>
    %473 = arith.mulf %463, %444 : vector<8x32xf32>
    %474 = arith.addf %472, %473 : vector<8x32xf32>
    %c48_144 = arith.constant 48 : index
    %c0_145 = arith.constant 0 : index
    %475 = vector.load %arg7[%c48_144, %c0_145] : memref<64x32xf32, #tpu.memory_space<vmem>>, vector<8x32xf32>
    tpu.vector_store %arg7[%c48_144, %c0_145], %474 {strides = array<i32>} : memref<64x32xf32, #tpu.memory_space<vmem>>, vector<8x32xf32>,
    %c56_146 = arith.constant 56 : index
    %c0_147 = arith.constant 0 : index
    %476 = vector.load %arg10[%c56_146, %c0_147] : memref<64x96xf32, #tpu.memory_space<vmem>>, vector<8x96xf32>
    %cst_148 = arith.constant dense<0.000000e+00> : vector<8x96xf32>
    %477 = tpu.matmul %474, %270, %cst_148 {dimension_numbers = #tpu.dot_dimension_numbers<[1], [0], [0], [1], [0, 0, 1, 1], [], []>} : vector<8x32xf32>, vector<32x96xf32>, vector<8x96xf32> -> vector<8x96xf32>
    %478 = vector.extract_strided_slice %476 {offsets = [0, 0], sizes = [8, 32], strides = [1, 1]} : vector<8x96xf32> to vector<8x32xf32>
    %479 = vector.extract_strided_slice %477 {offsets = [0, 0], sizes = [8, 32], strides = [1, 1]} : vector<8x96xf32> to vector<8x32xf32>
    %480 = arith.addf %478, %479 : vector<8x32xf32>
    %481 = arith.negf %480 : vector<8x32xf32>
    %482 = math.exp %481 : vector<8x32xf32>
    %cst_149 = arith.constant 1.000000e+00 : f32
    %483 = vector.broadcast %cst_149 : f32 to vector<8x32xf32>
    %484 = arith.addf %483, %482 : vector<8x32xf32>
    %485 = arith.divf %483, %484 : vector<8x32xf32>
    %486 = vector.extract_strided_slice %476 {offsets = [0, 32], sizes = [8, 32], strides = [1, 1]} : vector<8x96xf32> to vector<8x32xf32>
    %487 = vector.extract_strided_slice %477 {offsets = [0, 32], sizes = [8, 32], strides = [1, 1]} : vector<8x96xf32> to vector<8x32xf32>
    %488 = arith.addf %486, %487 : vector<8x32xf32>
    %489 = arith.negf %488 : vector<8x32xf32>
    %490 = math.exp %489 : vector<8x32xf32>
    %cst_150 = arith.constant 1.000000e+00 : f32
    %491 = vector.broadcast %cst_150 : f32 to vector<8x32xf32>
    %492 = arith.addf %491, %490 : vector<8x32xf32>
    %493 = arith.divf %491, %492 : vector<8x32xf32>
    %494 = vector.extract_strided_slice %476 {offsets = [0, 64], sizes = [8, 32], strides = [1, 1]} : vector<8x96xf32> to vector<8x32xf32>
    %495 = vector.extract_strided_slice %477 {offsets = [0, 64], sizes = [8, 32], strides = [1, 1]} : vector<8x96xf32> to vector<8x32xf32>
    %496 = arith.addf %495, %274 : vector<8x32xf32>
    %497 = arith.mulf %485, %496 : vector<8x32xf32>
    %498 = arith.addf %494, %497 : vector<8x32xf32>
    %499 = math.tanh %498 : vector<8x32xf32>
    %cst_151 = arith.constant 1.000000e+00 : f32
    %500 = vector.broadcast %cst_151 : f32 to vector<8x32xf32>
    %501 = arith.subf %500, %493 : vector<8x32xf32>
    %502 = arith.mulf %501, %499 : vector<8x32xf32>
    %503 = arith.mulf %493, %474 : vector<8x32xf32>
    %504 = arith.addf %502, %503 : vector<8x32xf32>
    %c56_152 = arith.constant 56 : index
    %c0_153 = arith.constant 0 : index
    %505 = vector.load %arg7[%c56_152, %c0_153] : memref<64x32xf32, #tpu.memory_space<vmem>>, vector<8x32xf32>
    tpu.vector_store %arg7[%c56_152, %c0_153], %504 {strides = array<i32>} : memref<64x32xf32, #tpu.memory_space<vmem>>, vector<8x32xf32>,
    %c8_154 = arith.constant 8 : index
    %c0_155 = arith.constant 0 : index
    %506 = vector.load %arg8[%c8_154, %c0_155] : memref<16x32xf32, #tpu.memory_space<vmem>>, vector<8x32xf32>
    tpu.vector_store %arg8[%c8_154, %c0_155], %504 {strides = array<i32>} : memref<16x32xf32, #tpu.memory_space<vmem>>, vector<8x32xf32>,
    return
  }
  func.func @transform_0(%arg0: i32) -> (i32, i32) {
    %c0_i32 = arith.constant 0 : i32
    %c0_i32_0 = arith.constant 0 : i32
    %c0_i32_1 = arith.constant 0 : i32
    return %c0_i32, %c0_i32_0 : i32, i32
  }
  func.func @transform_1(%arg0: i32) -> (i32, i32) {
    %c0_i32 = arith.constant 0 : i32
    %c0_i32_0 = arith.constant 0 : i32
    %c0_i32_1 = arith.constant 0 : i32
    return %c0_i32, %c0_i32_0 : i32, i32
  }
  func.func @transform_2(%arg0: i32) -> (i32, i32, i32) {
    %c0_i32 = arith.constant 0 : i32
    %c0_i32_0 = arith.constant 0 : i32
    %c0_i32_1 = arith.constant 0 : i32
    %c0_i32_2 = arith.constant 0 : i32
    return %c0_i32, %c0_i32_0, %c0_i32_1 : i32, i32, i32
  }
  func.func @transform_3(%arg0: i32) -> (i32, i32, i32) {
    %c0_i32 = arith.constant 0 : i32
    %c0_i32_0 = arith.constant 0 : i32
    %c0_i32_1 = arith.constant 0 : i32
    %c0_i32_2 = arith.constant 0 : i32
    return %c0_i32, %c0_i32_0, %c0_i32_1 : i32, i32, i32
  }
  func.func @transform_4(%arg0: i32) -> (i32, i32, i32) {
    %c0_i32 = arith.constant 0 : i32
    %c0_i32_0 = arith.constant 0 : i32
    %c0_i32_1 = arith.constant 0 : i32
    %c0_i32_2 = arith.constant 0 : i32
    return %c0_i32, %c0_i32_0, %c0_i32_1 : i32, i32, i32
  }
  func.func @transform_5(%arg0: i32) -> (i32, i32, i32) {
    %c0_i32 = arith.constant 0 : i32
    %c0_i32_0 = arith.constant 0 : i32
    %c0_i32_1 = arith.constant 0 : i32
    %c0_i32_2 = arith.constant 0 : i32
    return %c0_i32, %c0_i32_0, %c0_i32_1 : i32, i32, i32
  }
  func.func @transform_6(%arg0: i32) -> (i32, i32) {
    %c0_i32 = arith.constant 0 : i32
    %c0_i32_0 = arith.constant 0 : i32
    %c0_i32_1 = arith.constant 0 : i32
    return %c0_i32, %c0_i32_0 : i32, i32
  }
  func.func @transform_7(%arg0: i32) -> (i32, i32) {
    %c0_i32 = arith.constant 0 : i32
    %c0_i32_0 = arith.constant 0 : i32
    %c0_i32_1 = arith.constant 0 : i32
    return %c0_i32, %c0_i32_0 : i32, i32
  }
}

</mosaic_0001>

<llo_original>
// kernel: encoder_forward.1
$region0: #{encoder_forward.1}
  #allocation0 [shape = 'u32[]', space=smem, size = 0x4, offset = 0x4, fixed_abs, tag = 'smem constant byte address 0x4 - core index']
  #allocation1 [shape = 'u32[144,128]{1,0:T(1,128)}', space=vmem, size = 0x12000, scoped, tag = 'internal scratch']
  #allocation2 [shape = 'f32[64,96]{1,0:T(8,128)}', space=vmem, size = 0x8000, scoped, tag = 'scratch operand']
  #allocation3 [shape = 'f32[64,96]{1,0:T(8,128)}', space=vmem, size = 0x8000, scoped, tag = 'scratch operand']
  %s0 = inlined_call_operand.hbm [shape: f32[64,8], index: 0, kind: input, shape index: {}]
  %s1 = inlined_call_operand.hbm [shape: f32[8,96], index: 1, kind: input, shape index: {}]
  %s2 = inlined_call_operand.hbm [shape: f32[1,32,96], index: 2, kind: input, shape index: {}]
  %s3 = inlined_call_operand.hbm [shape: f32[2,32,96], index: 3, kind: input, shape index: {}]
  %s4 = inlined_call_operand.vmem [shape: f32[2,1,96], index: 4, kind: input, shape index: {}]
  %s5 = inlined_call_operand.vmem [shape: f32[2,1,32], index: 5, kind: input, shape index: {}]
  %s6 = inlined_call_operand.hbm [shape: f32[64,32], index: 6, kind: output, shape index: {0}]
  %s7 = inlined_call_operand.hbm [shape: f32[16,32], index: 7, kind: output, shape index: {1}]
  %8 = xla_tuple %s6, %s7
  %s9 = sld [smem:[#allocation0]]
  $region58: #{encoder_forward.1} parent=0
    _
  %s11 = ssub.s32 1, %s9
  %s12 = scalar_select 0, %s11, %s9
  $region1: #{encoder_forward.1} parent=0
    #allocation4 [shape = 'u8[32768]{0}', space=vmem, size = 0x8000, scoped, tag = 'input window, operand 0, single buffered']
    #allocation5 [shape = 's32[1]{0}', space=sflag, size = 0x4, scoped, tag = 'scoped memory for encoder_forward.1']
    #allocation6 [shape = 's32[1]{0}', space=sflag, size = 0x4, scoped, tag = 'scoped memory for encoder_forward.1']
    #allocation7 [shape = 'u8[4096]{0}', space=vmem, size = 0x1000, scoped, tag = 'input window, operand 1, single buffered']
    #allocation8 [shape = 's32[1]{0}', space=sflag, size = 0x4, scoped, tag = 'scoped memory for encoder_forward.1']
    #allocation9 [shape = 'u8[16384]{0}', space=vmem, size = 0x4000, scoped, tag = 'input window, operand 2, single buffered']
    #allocation10 [shape = 'u8[32768]{0}', space=vmem, size = 0x8000, scoped, tag = 'input window, operand 3, single buffered']
    #allocation11 [shape = 's32[1]{0}', space=sflag, size = 0x4, scoped, tag = 'scoped memory for encoder_forward.1']
    #allocation12 [shape = 'u8[32768]{0}', space=vmem, size = 0x8000, scoped, tag = 'output window, operand 0, single buffered']
    #allocation13 [shape = 'u8[8192]{0}', space=vmem, size = 0x2000, scoped, tag = 'output window, operand 1, single buffered']
    #allocation14 [shape = 's32[1]{0}', space=sflag, size = 0x4, scoped, tag = 'scoped memory for encoder_forward.1']
    %13 = vsyncpa [#allocation5], 0
    %14 = vsyncpa [#allocation8], 0
    %15 = vsyncpa [#allocation11], 0
    %16 = vsyncpa [#allocation6], 0
    %17 = vsyncpa [#allocation14], 0
    // Predicated region
    $region2: #{encoder_forward.1} parent=1 // pred_check
      _
    $region3: #{encoder_forward.1} parent=1 // pred_check_branch
      %19 = sbr.rel (0) target = $region5
    $region4: #{encoder_forward.1} parent=1 // pred_region
      %s21 = ssub.s32 1024, 1024
      %22 = vsyncadd [#allocation5], %s21
      %s23 = sshll.u32 [#allocation4], 4
      %s24 = int_to_ptr.vmem [resolvable:$true] %s23
      %29 = dma.hbm_to_vmem [thread:$0]  %s0, 1024, %s24, [#allocation5], 128, 128, 8
    $region5: #{encoder_forward.1} parent=1 // pred_fallthru
      _
    // Predicated region
    $region6: #{encoder_forward.1} parent=1 // pred_check
      _
    $region7: #{encoder_forward.1} parent=1 // pred_check_branch
      %31 = sbr.rel (0) target = $region9
    $region8: #{encoder_forward.1} parent=1 // pred_region
      %s33 = ssub.s32 128, 128
      %34 = vsyncadd [#allocation8], %s33
      %s36 = sshll.u32 [#allocation7], 4
      %s37 = int_to_ptr.vmem [resolvable:$true] %s36
      %39 = dma.hbm_to_vmem [thread:$0]  %s1, 128, %s37, [#allocation8]
    $region9: #{encoder_forward.1} parent=1 // pred_fallthru
      _
    // Predicated region
    $region10: #{encoder_forward.1} parent=1 // pred_check
      _
    $region11: #{encoder_forward.1} parent=1 // pred_check_branch
      %41 = sbr.rel (0) target = $region13
    $region12: #{encoder_forward.1} parent=1 // pred_region
      %s43 = ssub.s32 512, 512
      %44 = vsyncadd [#allocation8], %s43
      %s45 = sshll.u32 [#allocation9], 4
      %s46 = int_to_ptr.vmem [resolvable:$true] %s45
      %51 = dma.hbm_to_vmem [thread:$0]  %s2, 512, %s46, [#allocation8], 128, 128, 8
    $region13: #{encoder_forward.1} parent=1 // pred_fallthru
      _
    // Predicated region
    $region14: #{encoder_forward.1} parent=1 // pred_check
      _
    $region15: #{encoder_forward.1} parent=1 // pred_check_branch
      %53 = sbr.rel (0) target = $region17
    $region16: #{encoder_forward.1} parent=1 // pred_region
      %s55 = ssub.s32 1024, 1024
      %56 = vsyncadd [#allocation11], %s55
      %s57 = sshll.u32 [#allocation10], 4
      %s58 = int_to_ptr.vmem [resolvable:$true] %s57
      %63 = dma.hbm_to_vmem [thread:$0]  %s3, 1024, %s58, [#allocation11], 128, 128, 8
    $region17: #{encoder_forward.1} parent=1 // pred_fallthru
      _
    // Predicated region
    $region18: #{encoder_forward.1} parent=1 // pred_check
      _
    $region19: #{encoder_forward.1} parent=1 // pred_check_branch
      %65 = sbr.rel (0) target = $region21
    $region20: #{encoder_forward.1} parent=1 // pred_region
      _
    $region21: #{encoder_forward.1} parent=1 // pred_fallthru
      _
    // Predicated region
    $region22: #{encoder_forward.1} parent=1 // pred_check
      _
    $region23: #{encoder_forward.1} parent=1 // pred_check_branch
      %67 = sbr.rel (0) target = $region25
    $region24: #{encoder_forward.1} parent=1 // pred_region
      _
    $region25: #{encoder_forward.1} parent=1 // pred_fallthru
      _
    // Predicated region
    $region26: #{encoder_forward.1} parent=1 // pred_check
      _
    $region27: #{encoder_forward.1} parent=1 // pred_check_branch
      %69 = sbr.rel (0) target = $region29
    $region28: #{encoder_forward.1} parent=1 // pred_region
      %70 = dma.done [#allocation5], 1024
    $region29: #{encoder_forward.1} parent=1 // pred_fallthru
      _
    // Predicated region
    $region30: #{encoder_forward.1} parent=1 // pred_check
      _
    $region31: #{encoder_forward.1} parent=1 // pred_check_branch
      %72 = sbr.rel (0) target = $region33
    $region32: #{encoder_forward.1} parent=1 // pred_region
      %73 = dma.done [#allocation8], 128
    $region33: #{encoder_forward.1} parent=1 // pred_fallthru
      _
    // Predicated region
    $region34: #{encoder_forward.1} parent=1 // pred_check
      _
    $region35: #{encoder_forward.1} parent=1 // pred_check_branch
      %75 = sbr.rel (0) target = $region37
    $region36: #{encoder_forward.1} parent=1 // pred_region
      %76 = dma.done [#allocation8], 512
    $region37: #{encoder_forward.1} parent=1 // pred_fallthru
      _
    // Predicated region
    $region38: #{encoder_forward.1} parent=1 // pred_check
      _
    $region39: #{encoder_forward.1} parent=1 // pred_check_branch
      %78 = sbr.rel (0) target = $region41
    $region40: #{encoder_forward.1} parent=1 // pred_region
      %79 = dma.done [#allocation11], 1024
    $region41: #{encoder_forward.1} parent=1 // pred_fallthru
      _
    %v80 = vld [vmem:[#allocation4] sm:$0xff]
    %v81 = vld [vmem:[#allocation4 + $0x8] sm:$0xff]
    %v82 = vld [vmem:[#allocation4 + $0x10] sm:$0xff]
    %v83 = vld [vmem:[#allocation4 + $0x18] sm:$0xff]
    %v84 = vld [vmem:[#allocation4 + $0x20] sm:$0xff]
    %v85 = vld [vmem:[#allocation4 + $0x28] sm:$0xff]
    %v86 = vld [vmem:[#allocation4 + $0x30] sm:$0xff]
    %v87 = vld [vmem:[#allocation4 + $0x38] sm:$0xff]
    %v88 = vld [vmem:[#allocation7] sm:$0xff]
    %v89 = vld [vmem:[%s4] sm:$0x1]
    %v91 = vlaneseq
    %v92 = vshrl.u32 %v91, 7
    %v93 = vsub.s32 0, %v92
    %v94 = vrot.slane %v89, %v93
    %vm96 = vcmask 64512
    %v98 = vsel %vm96, %v80, 0
    %v101 = vsel %vm96, %v81, 0
    %v104 = vsel %vm96, %v82, 0
    %v107 = vsel %vm96, %v83, 0
    %v110 = vsel %vm96, %v84, 0
    %v113 = vsel %vm96, %v85, 0
    %v116 = vsel %vm96, %v86, 0
    %v119 = vsel %vm96, %v87, 0
    %121 = vmatprep.subr.mxu0 0.0
    %122 = vmatpush1.msra.mxu0 0.0
    %123 = vmatprep.subr.mxu0 0.0
    %124 = vmatpush1.msra.mxu0 0.0
    %125 = vmatprep.subr.mxu0 0.0
    %126 = vmatpush1.msra.mxu0 0.0
    %127 = vmatprep.subr.mxu0 0.0
    %128 = vmatpush1.msra.mxu0 0.0
    %129 = vmatprep.subr.mxu0 0.0
    %130 = vmatpush1.msra.mxu0 0.0
    %131 = vmatprep.subr.mxu0 0.0
    %132 = vmatpush1.msra.mxu0 0.0
    %133 = vmatprep.subr.mxu0 0.0
    %134 = vmatpush1.msra.mxu0 0.0
    %135 = vmatprep.subr.mxu0 0.0
    %136 = vmatpush1.msra.mxu0 0.0
    %137 = vmatprep.subr.mxu0 0.0
    %138 = vmatpush1.msra.mxu0 0.0
    %139 = vmatprep.subr.mxu0 0.0
    %140 = vmatpush1.msra.mxu0 0.0
    %141 = vmatprep.subr.mxu0 0.0
    %142 = vmatpush1.msra.mxu0 0.0
    %143 = vmatprep.subr.mxu0 0.0
    %144 = vmatpush1.msra.mxu0 0.0
    %145 = vmatprep.subr.mxu0 0.0
    %146 = vmatpush1.msra.mxu0 0.0
    %147 = vmatprep.subr.mxu0 0.0
    %148 = vmatpush1.msra.mxu0 0.0
    %149 = vmatprep.subr.mxu0 0.0
    %150 = vmatpush1.msra.mxu0 0.0
    %151 = vmatprep.subr.mxu0 0.0
    %152 = vmatpush1.msra.mxu0 %v88
    %153 = vmatprep.subr.mxu0 0.0
    %154 = vmatpush2.msra.mxu0 0.0
    %155 = vmatprep.subr.mxu0 0.0
    %156 = vmatpush2.msra.mxu0 0.0
    %157 = vmatprep.subr.mxu0 0.0
    %158 = vmatpush2.msra.mxu0 0.0
    %159 = vmatprep.subr.mxu0 0.0
    %160 = vmatpush2.msra.mxu0 0.0
    %161 = vmatprep.subr.mxu0 0.0
    %162 = vmatpush2.msra.mxu0 0.0
    %163 = vmatprep.subr.mxu0 0.0
    %164 = vmatpush2.msra.mxu0 0.0
    %165 = vmatprep.subr.mxu0 0.0
    %166 = vmatpush2.msra.mxu0 0.0
    %167 = vmatprep.subr.mxu0 0.0
    %168 = vmatpush2.msra.mxu0 0.0
    %169 = vmatprep.subr.mxu0 0.0
    %170 = vmatpush2.msra.mxu0 0.0
    %171 = vmatprep.subr.mxu0 0.0
    %172 = vmatpush2.msra.mxu0 0.0
    %173 = vmatprep.subr.mxu0 0.0
    %174 = vmatpush2.msra.mxu0 0.0
    %175 = vmatprep.subr.mxu0 0.0
    %176 = vmatpush2.msra.mxu0 0.0
    %177 = vmatprep.subr.mxu0 0.0
    %178 = vmatpush2.msra.mxu0 0.0
    %179 = vmatprep.subr.mxu0 0.0
    %180 = vmatpush2.msra.mxu0 0.0
    %181 = vmatprep.subr.mxu0 0.0
    %182 = vmatpush2.msra.mxu0 0.0
    %183 = vmatprep.subr.mxu0 0.0
    %184 = vmatpush2.msra.mxu0 0.0
    %185 = vmatprep.mubr.f32.mxu0 0.0
    %186 = vmatmul.mubr.f32.gmra.mxu0 %v98
    %v187 = vpop.f32.mrf.mxu0
    %v188 = vadd.f32 %v94, %v187
    %v189 = vpop.f32.mrf.mxu0
    %190 = vmatprep.mubr.f32.mxu0 0.0
    %191 = vmatmul.mubr.f32.gmra.mxu0 %v101
    %v192 = vpop.f32.mrf.mxu0
    %v193 = vadd.f32 %v94, %v192
    %v194 = vpop.f32.mrf.mxu0
    %195 = vmatprep.mubr.f32.mxu0 0.0
    %196 = vmatmul.mubr.f32.gmra.mxu0 %v104
    %v197 = vpop.f32.mrf.mxu0
    %v198 = vadd.f32 %v94, %v197
    %v199 = vpop.f32.mrf.mxu0
    %200 = vmatprep.mubr.f32.mxu0 0.0
    %201 = vmatmul.mubr.f32.gmra.mxu0 %v107
    %v202 = vpop.f32.mrf.mxu0
    %v203 = vadd.f32 %v94, %v202
    %v204 = vpop.f32.mrf.mxu0
    %205 = vmatprep.mubr.f32.mxu0 0.0
    %206 = vmatmul.mubr.f32.gmra.mxu0 %v110
    %v207 = vpop.f32.mrf.mxu0
    %v208 = vadd.f32 %v94, %v207
    %v209 = vpop.f32.mrf.mxu0
    %210 = vmatprep.mubr.f32.mxu0 0.0
    %211 = vmatmul.mubr.f32.gmra.mxu0 %v113
    %v212 = vpop.f32.mrf.mxu0
    %v213 = vadd.f32 %v94, %v212
    %v214 = vpop.f32.mrf.mxu0
    %215 = vmatprep.mubr.f32.mxu0 0.0
    %216 = vmatmul.mubr.f32.gmra.mxu0 %v116
    %v217 = vpop.f32.mrf.mxu0
    %v218 = vadd.f32 %v94, %v217
    %v219 = vpop.f32.mrf.mxu0
    %220 = vmatprep.mubr.f32.mxu0 0.0
    %221 = vmatmul.mubr.f32.gmra.mxu0 %v119
    %v222 = vpop.f32.mrf.mxu0
    %v223 = vadd.f32 %v94, %v222
    %v224 = vpop.f32.mrf.mxu0
    %225 = vdwg.mxu0
    %vm226 = vcmask 785408
    %227 = vst.msk [vmem:[#allocation2] sm:$0xff] %vm226, %v188
    %228 = vst.msk [vmem:[#allocation2 + $0x8] sm:$0xff] %vm226, %v193
    %229 = vst.msk [vmem:[#allocation2 + $0x10] sm:$0xff] %vm226, %v198
    %230 = vst.msk [vmem:[#allocation2 + $0x18] sm:$0xff] %vm226, %v203
    %231 = vst.msk [vmem:[#allocation2 + $0x20] sm:$0xff] %vm226, %v208
    %232 = vst.msk [vmem:[#allocation2 + $0x28] sm:$0xff] %vm226, %v213
    %233 = vst.msk [vmem:[#allocation2 + $0x30] sm:$0xff] %vm226, %v218
    %234 = vst.msk [vmem:[#allocation2 + $0x38] sm:$0xff] %vm226, %v223
    %v235 = vld [vmem:[#allocation10] sm:$0xff]
    %v236 = vld [vmem:[#allocation10 + $0x8] sm:$0xff]
    %v237 = vld [vmem:[#allocation10 + $0x10] sm:$0xff]
    %v238 = vld [vmem:[#allocation10 + $0x18] sm:$0xff]
    %v239 = vld [vmem:[%s5] sm:$0x1]
    %v241 = vlaneseq
    %v242 = vshrl.u32 %v241, 7
    %v243 = vsub.s32 0, %v242
    %v244 = vrot.slane %v239, %v243
    %v246 = vld [vmem:[#allocation9] sm:$0xff]
    %v247 = vld [vmem:[#allocation9 + $0x8] sm:$0xff]
    %v248 = vld [vmem:[#allocation9 + $0x10] sm:$0xff]
    %v249 = vld [vmem:[#allocation9 + $0x18] sm:$0xff]
    %s250 = scalar_lea.vmem %s4, 1
    %v251 = vld [vmem:[%s250] sm:$0x1]
    %v253 = vlaneseq
    %v254 = vshrl.u32 %v253, 7
    %v255 = vsub.s32 0, %v254
    %v256 = vrot.slane %v251, %v255
    %v258 = vld [vmem:[#allocation2] sm:$0xff]
    %v259 = vxor.u32 %v258, 2147483648
    %v260 = vmul.f32 %v259, 1.442695
    %v261 = vpow.pop %v260
    %v262 = vadd.f32 %v261, 1.0
    %v263 = vrcp.pop %v262
    %v264 = vmul.f32 1.0, %v263
    %v265 = vmul.f32 %v264, %v244
    %267 = vrot.lane.b32.xlu0 %v265, 64
    %v268 = vpop.permute.xlu0 %267
    %v270 = vadd.f32 %v258, %v268
    %v271 = vtanh.pop %v270
    %v272 = vsub.f32 1.0, %v264
    %274 = vrot.lane.b32.xlu0 %v271, 96
    %v275 = vpop.permute.xlu0 %274
    %v277 = vmul.f32 %v272, %v275
    %279 = vrot.lane.b32.xlu0 %v277, 96
    %v280 = vpop.permute.xlu0 %279
    %vm281 = vcmask 261120
    %v282 = vsel %vm281, %v280, 0
    %284 = vmatprep.subr.mxu0 0.0
    %285 = vmatpush1.msra.mxu0 0.0
    %286 = vmatprep.subr.mxu0 0.0
    %287 = vmatpush1.msra.mxu0 0.0
    %288 = vmatprep.subr.mxu0 0.0
    %289 = vmatpush1.msra.mxu0 0.0
    %290 = vmatprep.subr.mxu0 0.0
    %291 = vmatpush1.msra.mxu0 0.0
    %292 = vmatprep.subr.mxu0 0.0
    %293 = vmatpush1.msra.mxu0 0.0
    %294 = vmatprep.subr.mxu0 0.0
    %295 = vmatpush1.msra.mxu0 0.0
    %296 = vmatprep.subr.mxu0 0.0
    %297 = vmatpush1.msra.mxu0 0.0
    %298 = vmatprep.subr.mxu0 0.0
    %299 = vmatpush1.msra.mxu0 0.0
    %300 = vmatprep.subr.mxu0 0.0
    %301 = vmatpush1.msra.mxu0 0.0
    %302 = vmatprep.subr.mxu0 0.0
    %303 = vmatpush1.msra.mxu0 0.0
    %304 = vmatprep.subr.mxu0 0.0
    %305 = vmatpush1.msra.mxu0 0.0
    %306 = vmatprep.subr.mxu0 0.0
    %307 = vmatpush1.msra.mxu0 0.0
    %308 = vmatprep.subr.mxu0 0.0
    %309 = vmatpush1.msra.mxu0 %v249
    %310 = vmatprep.subr.mxu0 0.0
    %311 = vmatpush1.msra.mxu0 %v248
    %312 = vmatprep.subr.mxu0 0.0
    %313 = vmatpush1.msra.mxu0 %v247
    %314 = vmatprep.subr.mxu0 0.0
    %315 = vmatpush1.msra.mxu0 %v246
    %316 = vmatprep.subr.mxu0 0.0
    %317 = vmatpush2.msra.mxu0 0.0
    %318 = vmatprep.subr.mxu0 0.0
    %319 = vmatpush2.msra.mxu0 0.0
    %320 = vmatprep.subr.mxu0 0.0
    %321 = vmatpush2.msra.mxu0 0.0
    %322 = vmatprep.subr.mxu0 0.0
    %323 = vmatpush2.msra.mxu0 0.0
    %324 = vmatprep.subr.mxu0 0.0
    %325 = vmatpush2.msra.mxu0 0.0
    %326 = vmatprep.subr.mxu0 0.0
    %327 = vmatpush2.msra.mxu0 0.0
    %328 = vmatprep.subr.mxu0 0.0
    %329 = vmatpush2.msra.mxu0 0.0
    %330 = vmatprep.subr.mxu0 0.0
    %331 = vmatpush2.msra.mxu0 0.0
    %332 = vmatprep.subr.mxu0 0.0
    %333 = vmatpush2.msra.mxu0 0.0
    %334 = vmatprep.subr.mxu0 0.0
    %335 = vmatpush2.msra.mxu0 0.0
    %336 = vmatprep.subr.mxu0 0.0
    %337 = vmatpush2.msra.mxu0 0.0
    %338 = vmatprep.subr.mxu0 0.0
    %339 = vmatpush2.msra.mxu0 0.0
    %340 = vmatprep.subr.mxu0 0.0
    %341 = vmatpush2.msra.mxu0 0.0
    %342 = vmatprep.subr.mxu0 0.0
    %343 = vmatpush2.msra.mxu0 0.0
    %344 = vmatprep.subr.mxu0 0.0
    %345 = vmatpush2.msra.mxu0 0.0
    %346 = vmatprep.subr.mxu0 0.0
    %347 = vmatpush2.msra.mxu0 0.0
    %348 = vmatprep.mubr.f32.mxu0 0.0
    %349 = vmatmul.mubr.f32.gmra.mxu0 %v282
    %v350 = vpop.f32.mrf.mxu0
    %v351 = vadd.f32 %v256, %v350
    %v352 = vpop.f32.mrf.mxu0
    %353 = vdwg.mxu0
    %354 = vst.msk [vmem:[#allocation3] sm:$0xff] %vm226, %v351
    %v355 = vld [vmem:[#allocation2 + $0x8] sm:$0xff]
    %356 = vmatprep.subr.mxu0 0.0
    %357 = vmatpush1.msra.mxu0 0.0
    %358 = vmatprep.subr.mxu0 0.0
    %359 = vmatpush1.msra.mxu0 0.0
    %360 = vmatprep.subr.mxu0 0.0
    %361 = vmatpush1.msra.mxu0 0.0
    %362 = vmatprep.subr.mxu0 0.0
    %363 = vmatpush1.msra.mxu0 0.0
    %364 = vmatprep.subr.mxu0 0.0
    %365 = vmatpush1.msra.mxu0 0.0
    %366 = vmatprep.subr.mxu0 0.0
    %367 = vmatpush1.msra.mxu0 0.0
    %368 = vmatprep.subr.mxu0 0.0
    %369 = vmatpush1.msra.mxu0 0.0
    %370 = vmatprep.subr.mxu0 0.0
    %371 = vmatpush1.msra.mxu0 0.0
    %372 = vmatprep.subr.mxu0 0.0
    %373 = vmatpush1.msra.mxu0 0.0
    %374 = vmatprep.subr.mxu0 0.0
    %375 = vmatpush1.msra.mxu0 0.0
    %376 = vmatprep.subr.mxu0 0.0
    %377 = vmatpush1.msra.mxu0 0.0
    %378 = vmatprep.subr.mxu0 0.0
    %379 = vmatpush1.msra.mxu0 0.0
    %380 = vmatprep.subr.mxu0 0.0
    %381 = vmatpush1.msra.mxu0 %v238
    %382 = vmatprep.subr.mxu0 0.0
    %383 = vmatpush1.msra.mxu0 %v237
    %384 = vmatprep.subr.mxu0 0.0
    %385 = vmatpush1.msra.mxu0 %v236
    %386 = vmatprep.subr.mxu0 0.0
    %387 = vmatpush1.msra.mxu0 %v235
    %388 = vmatprep.subr.mxu0 0.0
    %389 = vmatpush2.msra.mxu0 0.0
    %390 = vmatprep.subr.mxu0 0.0
    %391 = vmatpush2.msra.mxu0 0.0
    %392 = vmatprep.subr.mxu0 0.0
    %393 = vmatpush2.msra.mxu0 0.0
    %394 = vmatprep.subr.mxu0 0.0
    %395 = vmatpush2.msra.mxu0 0.0
    %396 = vmatprep.subr.mxu0 0.0
    %397 = vmatpush2.msra.mxu0 0.0
    %398 = vmatprep.subr.mxu0 0.0
    %399 = vmatpush2.msra.mxu0 0.0
    %400 = vmatprep.subr.mxu0 0.0
    %401 = vmatpush2.msra.mxu0 0.0
    %402 = vmatprep.subr.mxu0 0.0
    %403 = vmatpush2.msra.mxu0 0.0
    %404 = vmatprep.subr.mxu0 0.0
    %405 = vmatpush2.msra.mxu0 0.0
    %406 = vmatprep.subr.mxu0 0.0
    %407 = vmatpush2.msra.mxu0 0.0
    %408 = vmatprep.subr.mxu0 0.0
    %409 = vmatpush2.msra.mxu0 0.0
    %410 = vmatprep.subr.mxu0 0.0
    %411 = vmatpush2.msra.mxu0 0.0
    %412 = vmatprep.subr.mxu0 0.0
    %413 = vmatpush2.msra.mxu0 0.0
    %414 = vmatprep.subr.mxu0 0.0
    %415 = vmatpush2.msra.mxu0 0.0
    %416 = vmatprep.subr.mxu0 0.0
    %417 = vmatpush2.msra.mxu0 0.0
    %418 = vmatprep.subr.mxu0 0.0
    %419 = vmatpush2.msra.mxu0 0.0
    %420 = vmatprep.mubr.f32.mxu0 0.0
    %421 = vmatmul.mubr.f32.gmra.mxu0 %v282
    %v422 = vpop.f32.mrf.mxu0
    %v423 = vadd.f32 0.0, %v422
    %v424 = vpop.f32.mrf.mxu0
    %425 = vdwg.mxu0
    %v426 = vadd.f32 %v355, %v423
    %v427 = vxor.u32 %v426, 2147483648
    %v428 = vmul.f32 %v427, 1.442695
    %v429 = vpow.pop %v428
    %v430 = vadd.f32 %v429, 1.0
    %v431 = vrcp.pop %v430
    %v432 = vmul.f32 1.0, %v431
    %433 = vrot.lane.b32.xlu0 %v244, 64
    %v434 = vpop.permute.xlu0 %433
    %v436 = vadd.f32 %v423, %v434
    %438 = vrot.lane.b32.xlu0 %v436, 64
    %v439 = vpop.permute.xlu0 %438
    %v441 = vmul.f32 %v432, %v439
    %443 = vrot.lane.b32.xlu0 %v441, 64
    %v444 = vpop.permute.xlu0 %443
    %v446 = vadd.f32 %v355, %v444
    %v447 = vtanh.pop %v446
    %v448 = vsub.f32 1.0, %v432
    %450 = vrot.lane.b32.xlu0 %v447, 96
    %v451 = vpop.permute.xlu0 %450
    %v453 = vmul.f32 %v448, %v451
    %v454 = vmul.f32 %v432, %v277
    %v455 = vadd.f32 %v453, %v454
    %457 = vrot.lane.b32.xlu0 %v455, 96
    %v458 = vpop.permute.xlu0 %457
    %v459 = vsel %vm281, %v458, 0
    %461 = vmatprep.subr.mxu0 0.0
    %462 = vmatpush1.msra.mxu0 0.0
    %463 = vmatprep.subr.mxu0 0.0
    %464 = vmatpush1.msra.mxu0 0.0
    %465 = vmatprep.subr.mxu0 0.0
    %466 = vmatpush1.msra.mxu0 0.0
    %467 = vmatprep.subr.mxu0 0.0
    %468 = vmatpush1.msra.mxu0 0.0
    %469 = vmatprep.subr.mxu0 0.0
    %470 = vmatpush1.msra.mxu0 0.0
    %471 = vmatprep.subr.mxu0 0.0
    %472 = vmatpush1.msra.mxu0 0.0
    %473 = vmatprep.subr.mxu0 0.0
    %474 = vmatpush1.msra.mxu0 0.0
    %475 = vmatprep.subr.mxu0 0.0
    %476 = vmatpush1.msra.mxu0 0.0
    %477 = vmatprep.subr.mxu0 0.0
    %478 = vmatpush1.msra.mxu0 0.0
    %479 = vmatprep.subr.mxu0 0.0
    %480 = vmatpush1.msra.mxu0 0.0
    %481 = vmatprep.subr.mxu0 0.0
    %482 = vmatpush1.msra.mxu0 0.0
    %483 = vmatprep.subr.mxu0 0.0
    %484 = vmatpush1.msra.mxu0 0.0
    %485 = vmatprep.subr.mxu0 0.0
    %486 = vmatpush1.msra.mxu0 %v249
    %487 = vmatprep.subr.mxu0 0.0
    %488 = vmatpush1.msra.mxu0 %v248
    %489 = vmatprep.subr.mxu0 0.0
    %490 = vmatpush1.msra.mxu0 %v247
    %491 = vmatprep.subr.mxu0 0.0
    %492 = vmatpush1.msra.mxu0 %v246
    %493 = vmatprep.subr.mxu0 0.0
    %494 = vmatpush2.msra.mxu0 0.0
    %495 = vmatprep.subr.mxu0 0.0
    %496 = vmatpush2.msra.mxu0 0.0
    %497 = vmatprep.subr.mxu0 0.0
    %498 = vmatpush2.msra.mxu0 0.0
    %499 = vmatprep.subr.mxu0 0.0
    %500 = vmatpush2.msra.mxu0 0.0
    %501 = vmatprep.subr.mxu0 0.0
    %502 = vmatpush2.msra.mxu0 0.0
    %503 = vmatprep.subr.mxu0 0.0
    %504 = vmatpush2.msra.mxu0 0.0
    %505 = vmatprep.subr.mxu0 0.0
    %506 = vmatpush2.msra.mxu0 0.0
    %507 = vmatprep.subr.mxu0 0.0
    %508 = vmatpush2.msra.mxu0 0.0
    %509 = vmatprep.subr.mxu0 0.0
    %510 = vmatpush2.msra.mxu0 0.0
    %511 = vmatprep.subr.mxu0 0.0
    %512 = vmatpush2.msra.mxu0 0.0
    %513 = vmatprep.subr.mxu0 0.0
    %514 = vmatpush2.msra.mxu0 0.0
    %515 = vmatprep.subr.mxu0 0.0
    %516 = vmatpush2.msra.mxu0 0.0
    %517 = vmatprep.subr.mxu0 0.0
    %518 = vmatpush2.msra.mxu0 0.0
    %519 = vmatprep.subr.mxu0 0.0
    %520 = vmatpush2.msra.mxu0 0.0
    %521 = vmatprep.subr.mxu0 0.0
    %522 = vmatpush2.msra.mxu0 0.0
    %523 = vmatprep.subr.mxu0 0.0
    %524 = vmatpush2.msra.mxu0 0.0
    %525 = vmatprep.mubr.f32.mxu0 0.0
    %526 = vmatmul.mubr.f32.gmra.mxu0 %v459
    %v527 = vpop.f32.mrf.mxu0
    %v528 = vadd.f32 %v256, %v527
    %v529 = vpop.f32.mrf.mxu0
    %530 = vdwg.mxu0
    %531 = vst.msk [vmem:[#allocation3 + $0x8] sm:$0xff] %vm226, %v528
    %v532 = vld [vmem:[#allocation2 + $0x10] sm:$0xff]
    %533 = vmatprep.subr.mxu0 0.0
    %534 = vmatpush1.msra.mxu0 0.0
    %535 = vmatprep.subr.mxu0 0.0
    %536 = vmatpush1.msra.mxu0 0.0
    %537 = vmatprep.subr.mxu0 0.0
    %538 = vmatpush1.msra.mxu0 0.0
    %539 = vmatprep.subr.mxu0 0.0
    %540 = vmatpush1.msra.mxu0 0.0
    %541 = vmatprep.subr.mxu0 0.0
    %542 = vmatpush1.msra.mxu0 0.0
    %543 = vmatprep.subr.mxu0 0.0
    %544 = vmatpush1.msra.mxu0 0.0
    %545 = vmatprep.subr.mxu0 0.0
    %546 = vmatpush1.msra.mxu0 0.0
    %547 = vmatprep.subr.mxu0 0.0
    %548 = vmatpush1.msra.mxu0 0.0
    %549 = vmatprep.subr.mxu0 0.0
    %550 = vmatpush1.msra.mxu0 0.0
    %551 = vmatprep.subr.mxu0 0.0
    %552 = vmatpush1.msra.mxu0 0.0
    %553 = vmatprep.subr.mxu0 0.0
    %554 = vmatpush1.msra.mxu0 0.0
    %555 = vmatprep.subr.mxu0 0.0
    %556 = vmatpush1.msra.mxu0 0.0
    %557 = vmatprep.subr.mxu0 0.0
    %558 = vmatpush1.msra.mxu0 %v238
    %559 = vmatprep.subr.mxu0 0.0
    %560 = vmatpush1.msra.mxu0 %v237
    %561 = vmatprep.subr.mxu0 0.0
    %562 = vmatpush1.msra.mxu0 %v236
    %563 = vmatprep.subr.mxu0 0.0
    %564 = vmatpush1.msra.mxu0 %v235
    %565 = vmatprep.subr.mxu0 0.0
    %566 = vmatpush2.msra.mxu0 0.0
    %567 = vmatprep.subr.mxu0 0.0
    %568 = vmatpush2.msra.mxu0 0.0
    %569 = vmatprep.subr.mxu0 0.0
    %570 = vmatpush2.msra.mxu0 0.0
    %571 = vmatprep.subr.mxu0 0.0
    %572 = vmatpush2.msra.mxu0 0.0
    %573 = vmatprep.subr.mxu0 0.0
    %574 = vmatpush2.msra.mxu0 0.0
    %575 = vmatprep.subr.mxu0 0.0
    %576 = vmatpush2.msra.mxu0 0.0
    %577 = vmatprep.subr.mxu0 0.0
    %578 = vmatpush2.msra.mxu0 0.0
    %579 = vmatprep.subr.mxu0 0.0
    %580 = vmatpush2.msra.mxu0 0.0
    %581 = vmatprep.subr.mxu0 0.0
    %582 = vmatpush2.msra.mxu0 0.0
    %583 = vmatprep.subr.mxu0 0.0
    %584 = vmatpush2.msra.mxu0 0.0
    %585 = vmatprep.subr.mxu0 0.0
    %586 = vmatpush2.msra.mxu0 0.0
    %587 = vmatprep.subr.mxu0 0.0
    %588 = vmatpush2.msra.mxu0 0.0
    %589 = vmatprep.subr.mxu0 0.0
    %590 = vmatpush2.msra.mxu0 0.0
    %591 = vmatprep.subr.mxu0 0.0
    %592 = vmatpush2.msra.mxu0 0.0
    %593 = vmatprep.subr.mxu0 0.0
    %594 = vmatpush2.msra.mxu0 0.0
    %595 = vmatprep.subr.mxu0 0.0
    %596 = vmatpush2.msra.mxu0 0.0
    %597 = vmatprep.mubr.f32.mxu0 0.0
    %598 = vmatmul.mubr.f32.gmra.mxu0 %v459
    %v599 = vpop.f32.mrf.mxu0
    %v600 = vadd.f32 0.0, %v599
    %v601 = vpop.f32.mrf.mxu0
    %602 = vdwg.mxu0
    %v603 = vadd.f32 %v532, %v600
    %v604 = vxor.u32 %v603, 2147483648
    %v605 = vmul.f32 %v604, 1.442695
    %v606 = vpow.pop %v605
    %v607 = vadd.f32 %v606, 1.0
    %v608 = vrcp.pop %v607
    %v609 = vmul.f32 1.0, %v608
    %v610 = vadd.f32 %v600, %v434
    %612 = vrot.lane.b32.xlu0 %v610, 64
    %v613 = vpop.permute.xlu0 %612
    %v615 = vmul.f32 %v609, %v613
    %617 = vrot.lane.b32.xlu0 %v615, 64
    %v618 = vpop.permute.xlu0 %617
    %v620 = vadd.f32 %v532, %v618
    %v621 = vtanh.pop %v620
    %v622 = vsub.f32 1.0, %v609
    %624 = vrot.lane.b32.xlu0 %v621, 96
    %v625 = vpop.permute.xlu0 %624
    %v627 = vmul.f32 %v622, %v625
    %v628 = vmul.f32 %v609, %v455
    %v629 = vadd.f32 %v627, %v628
    %631 = vrot.lane.b32.xlu0 %v629, 96
    %v632 = vpop.permute.xlu0 %631
    %v633 = vsel %vm281, %v632, 0
    %635 = vmatprep.subr.mxu0 0.0
    %636 = vmatpush1.msra.mxu0 0.0
    %637 = vmatprep.subr.mxu0 0.0
    %638 = vmatpush1.msra.mxu0 0.0
    %639 = vmatprep.subr.mxu0 0.0
    %640 = vmatpush1.msra.mxu0 0.0
    %641 = vmatprep.subr.mxu0 0.0
    %642 = vmatpush1.msra.mxu0 0.0
    %643 = vmatprep.subr.mxu0 0.0
    %644 = vmatpush1.msra.mxu0 0.0
    %645 = vmatprep.subr.mxu0 0.0
    %646 = vmatpush1.msra.mxu0 0.0
    %647 = vmatprep.subr.mxu0 0.0
    %648 = vmatpush1.msra.mxu0 0.0
    %649 = vmatprep.subr.mxu0 0.0
    %650 = vmatpush1.msra.mxu0 0.0
    %651 = vmatprep.subr.mxu0 0.0
    %652 = vmatpush1.msra.mxu0 0.0
    %653 = vmatprep.subr.mxu0 0.0
    %654 = vmatpush1.msra.mxu0 0.0
    %655 = vmatprep.subr.mxu0 0.0
    %656 = vmatpush1.msra.mxu0 0.0
    %657 = vmatprep.subr.mxu0 0.0
    %658 = vmatpush1.msra.mxu0 0.0
    %659 = vmatprep.subr.mxu0 0.0
    %660 = vmatpush1.msra.mxu0 %v249
    %661 = vmatprep.subr.mxu0 0.0
    %662 = vmatpush1.msra.mxu0 %v248
    %663 = vmatprep.subr.mxu0 0.0
    %664 = vmatpush1.msra.mxu0 %v247
    %665 = vmatprep.subr.mxu0 0.0
    %666 = vmatpush1.msra.mxu0 %v246
    %667 = vmatprep.subr.mxu0 0.0
    %668 = vmatpush2.msra.mxu0 0.0
    %669 = vmatprep.subr.mxu0 0.0
    %670 = vmatpush2.msra.mxu0 0.0
    %671 = vmatprep.subr.mxu0 0.0
    %672 = vmatpush2.msra.mxu0 0.0
    %673 = vmatprep.subr.mxu0 0.0
    %674 = vmatpush2.msra.mxu0 0.0
    %675 = vmatprep.subr.mxu0 0.0
    %676 = vmatpush2.msra.mxu0 0.0
    %677 = vmatprep.subr.mxu0 0.0
    %678 = vmatpush2.msra.mxu0 0.0
    %679 = vmatprep.subr.mxu0 0.0
    %680 = vmatpush2.msra.mxu0 0.0
    %681 = vmatprep.subr.mxu0 0.0
    %682 = vmatpush2.msra.mxu0 0.0
    %683 = vmatprep.subr.mxu0 0.0
    %684 = vmatpush2.msra.mxu0 0.0
    %685 = vmatprep.subr.mxu0 0.0
    %686 = vmatpush2.msra.mxu0 0.0
    %687 = vmatprep.subr.mxu0 0.0
    %688 = vmatpush2.msra.mxu0 0.0
    %689 = vmatprep.subr.mxu0 0.0
    %690 = vmatpush2.msra.mxu0 0.0
    %691 = vmatprep.subr.mxu0 0.0
    %692 = vmatpush2.msra.mxu0 0.0
    %693 = vmatprep.subr.mxu0 0.0
    %694 = vmatpush2.msra.mxu0 0.0
    %695 = vmatprep.subr.mxu0 0.0
    %696 = vmatpush2.msra.mxu0 0.0
    %697 = vmatprep.subr.mxu0 0.0
    %698 = vmatpush2.msra.mxu0 0.0
    %699 = vmatprep.mubr.f32.mxu0 0.0
    %700 = vmatmul.mubr.f32.gmra.mxu0 %v633
    %v701 = vpop.f32.mrf.mxu0
    %v702 = vadd.f32 %v256, %v701
    %v703 = vpop.f32.mrf.mxu0
    %704 = vdwg.mxu0
    %705 = vst.msk [vmem:[#allocation3 + $0x10] sm:$0xff] %vm226, %v702
    %v706 = vld [vmem:[#allocation2 + $0x18] sm:$0xff]
    %707 = vmatprep.subr.mxu0 0.0
    %708 = vmatpush1.msra.mxu0 0.0
    %709 = vmatprep.subr.mxu0 0.0
    %710 = vmatpush1.msra.mxu0 0.0
    %711 = vmatprep.subr.mxu0 0.0
    %712 = vmatpush1.msra.mxu0 0.0
    %713 = vmatprep.subr.mxu0 0.0
    %714 = vmatpush1.msra.mxu0 0.0
    %715 = vmatprep.subr.mxu0 0.0
    %716 = vmatpush1.msra.mxu0 0.0
    %717 = vmatprep.subr.mxu0 0.0
    %718 = vmatpush1.msra.mxu0 0.0
    %719 = vmatprep.subr.mxu0 0.0
    %720 = vmatpush1.msra.mxu0 0.0
    %721 = vmatprep.subr.mxu0 0.0
    %722 = vmatpush1.msra.mxu0 0.0
    %723 = vmatprep.subr.mxu0 0.0
    %724 = vmatpush1.msra.mxu0 0.0
    %725 = vmatprep.subr.mxu0 0.0
    %726 = vmatpush1.msra.mxu0 0.0
    %727 = vmatprep.subr.mxu0 0.0
    %728 = vmatpush1.msra.mxu0 0.0
    %729 = vmatprep.subr.mxu0 0.0
    %730 = vmatpush1.msra.mxu0 0.0
    %731 = vmatprep.subr.mxu0 0.0
    %732 = vmatpush1.msra.mxu0 %v238
    %733 = vmatprep.subr.mxu0 0.0
    %734 = vmatpush1.msra.mxu0 %v237
    %735 = vmatprep.subr.mxu0 0.0
    %736 = vmatpush1.msra.mxu0 %v236
    %737 = vmatprep.subr.mxu0 0.0
    %738 = vmatpush1.msra.mxu0 %v235
    %739 = vmatprep.subr.mxu0 0.0
    %740 = vmatpush2.msra.mxu0 0.0
    %741 = vmatprep.subr.mxu0 0.0
    %742 = vmatpush2.msra.mxu0 0.0
    %743 = vmatprep.subr.mxu0 0.0
    %744 = vmatpush2.msra.mxu0 0.0
    %745 = vmatprep.subr.mxu0 0.0
    %746 = vmatpush2.msra.mxu0 0.0
    %747 = vmatprep.subr.mxu0 0.0
    %748 = vmatpush2.msra.mxu0 0.0
    %749 = vmatprep.subr.mxu0 0.0
    %750 = vmatpush2.msra.mxu0 0.0
    %751 = vmatprep.subr.mxu0 0.0
    %752 = vmatpush2.msra.mxu0 0.0
    %753 = vmatprep.subr.mxu0 0.0
    %754 = vmatpush2.msra.mxu0 0.0
    %755 = vmatprep.subr.mxu0 0.0
    %756 = vmatpush2.msra.mxu0 0.0
    %757 = vmatprep.subr.mxu0 0.0
    %758 = vmatpush2.msra.mxu0 0.0
    %759 = vmatprep.subr.mxu0 0.0
    %760 = vmatpush2.msra.mxu0 0.0
    %761 = vmatprep.subr.mxu0 0.0
    %762 = vmatpush2.msra.mxu0 0.0
    %763 = vmatprep.subr.mxu0 0.0
    %764 = vmatpush2.msra.mxu0 0.0
    %765 = vmatprep.subr.mxu0 0.0
    %766 = vmatpush2.msra.mxu0 0.0
    %767 = vmatprep.subr.mxu0 0.0
    %768 = vmatpush2.msra.mxu0 0.0
    %769 = vmatprep.subr.mxu0 0.0
    %770 = vmatpush2.msra.mxu0 0.0
    %771 = vmatprep.mubr.f32.mxu0 0.0
    %772 = vmatmul.mubr.f32.gmra.mxu0 %v633
    %v773 = vpop.f32.mrf.mxu0
    %v774 = vadd.f32 0.0, %v773
    %v775 = vpop.f32.mrf.mxu0
    %776 = vdwg.mxu0
    %v777 = vadd.f32 %v706, %v774
    %v778 = vxor.u32 %v777, 2147483648
    %v779 = vmul.f32 %v778, 1.442695
    %v780 = vpow.pop %v779
    %v781 = vadd.f32 %v780, 1.0
    %v782 = vrcp.pop %v781
    %v783 = vmul.f32 1.0, %v782
    %v784 = vadd.f32 %v774, %v434
    %786 = vrot.lane.b32.xlu0 %v784, 64
    %v787 = vpop.permute.xlu0 %786
    %v789 = vmul.f32 %v783, %v787
    %791 = vrot.lane.b32.xlu0 %v789, 64
    %v792 = vpop.permute.xlu0 %791
    %v794 = vadd.f32 %v706, %v792
    %v795 = vtanh.pop %v794
    %v796 = vsub.f32 1.0, %v783
    %798 = vrot.lane.b32.xlu0 %v795, 96
    %v799 = vpop.permute.xlu0 %798
    %v801 = vmul.f32 %v796, %v799
    %v802 = vmul.f32 %v783, %v629
    %v803 = vadd.f32 %v801, %v802
    %805 = vrot.lane.b32.xlu0 %v803, 96
    %v806 = vpop.permute.xlu0 %805
    %v807 = vsel %vm281, %v806, 0
    %809 = vmatprep.subr.mxu0 0.0
    %810 = vmatpush1.msra.mxu0 0.0
    %811 = vmatprep.subr.mxu0 0.0
    %812 = vmatpush1.msra.mxu0 0.0
    %813 = vmatprep.subr.mxu0 0.0
    %814 = vmatpush1.msra.mxu0 0.0
    %815 = vmatprep.subr.mxu0 0.0
    %816 = vmatpush1.msra.mxu0 0.0
    %817 = vmatprep.subr.mxu0 0.0
    %818 = vmatpush1.msra.mxu0 0.0
    %819 = vmatprep.subr.mxu0 0.0
    %820 = vmatpush1.msra.mxu0 0.0
    %821 = vmatprep.subr.mxu0 0.0
    %822 = vmatpush1.msra.mxu0 0.0
    %823 = vmatprep.subr.mxu0 0.0
    %824 = vmatpush1.msra.mxu0 0.0
    %825 = vmatprep.subr.mxu0 0.0
    %826 = vmatpush1.msra.mxu0 0.0
    %827 = vmatprep.subr.mxu0 0.0
    %828 = vmatpush1.msra.mxu0 0.0
    %829 = vmatprep.subr.mxu0 0.0
    %830 = vmatpush1.msra.mxu0 0.0
    %831 = vmatprep.subr.mxu0 0.0
    %832 = vmatpush1.msra.mxu0 0.0
    %833 = vmatprep.subr.mxu0 0.0
    %834 = vmatpush1.msra.mxu0 %v249
    %835 = vmatprep.subr.mxu0 0.0
    %836 = vmatpush1.msra.mxu0 %v248
    %837 = vmatprep.subr.mxu0 0.0
    %838 = vmatpush1.msra.mxu0 %v247
    %839 = vmatprep.subr.mxu0 0.0
    %840 = vmatpush1.msra.mxu0 %v246
    %841 = vmatprep.subr.mxu0 0.0
    %842 = vmatpush2.msra.mxu0 0.0
    %843 = vmatprep.subr.mxu0 0.0
    %844 = vmatpush2.msra.mxu0 0.0
    %845 = vmatprep.subr.mxu0 0.0
    %846 = vmatpush2.msra.mxu0 0.0
    %847 = vmatprep.subr.mxu0 0.0
    %848 = vmatpush2.msra.mxu0 0.0
    %849 = vmatprep.subr.mxu0 0.0
    %850 = vmatpush2.msra.mxu0 0.0
    %851 = vmatprep.subr.mxu0 0.0
    %852 = vmatpush2.msra.mxu0 0.0
    %853 = vmatprep.subr.mxu0 0.0
    %854 = vmatpush2.msra.mxu0 0.0
    %855 = vmatprep.subr.mxu0 0.0
    %856 = vmatpush2.msra.mxu0 0.0
    %857 = vmatprep.subr.mxu0 0.0
    %858 = vmatpush2.msra.mxu0 0.0
    %859 = vmatprep.subr.mxu0 0.0
    %860 = vmatpush2.msra.mxu0 0.0
    %861 = vmatprep.subr.mxu0 0.0
    %862 = vmatpush2.msra.mxu0 0.0
    %863 = vmatprep.subr.mxu0 0.0
    %864 = vmatpush2.msra.mxu0 0.0
    %865 = vmatprep.subr.mxu0 0.0
    %866 = vmatpush2.msra.mxu0 0.0
    %867 = vmatprep.subr.mxu0 0.0
    %868 = vmatpush2.msra.mxu0 0.0
    %869 = vmatprep.subr.mxu0 0.0
    %870 = vmatpush2.msra.mxu0 0.0
    %871 = vmatprep.subr.mxu0 0.0
    %872 = vmatpush2.msra.mxu0 0.0
    %873 = vmatprep.mubr.f32.mxu0 0.0
    %874 = vmatmul.mubr.f32.gmra.mxu0 %v807
    %v875 = vpop.f32.mrf.mxu0
    %v876 = vadd.f32 %v256, %v875
    %v877 = vpop.f32.mrf.mxu0
    %878 = vdwg.mxu0
    %879 = vst.msk [vmem:[#allocation3 + $0x18] sm:$0xff] %vm226, %v876
    %v880 = vld [vmem:[#allocation2 + $0x20] sm:$0xff]
    %881 = vmatprep.subr.mxu0 0.0
    %882 = vmatpush1.msra.mxu0 0.0
    %883 = vmatprep.subr.mxu0 0.0
    %884 = vmatpush1.msra.mxu0 0.0
    %885 = vmatprep.subr.mxu0 0.0
    %886 = vmatpush1.msra.mxu0 0.0
    %887 = vmatprep.subr.mxu0 0.0
    %888 = vmatpush1.msra.mxu0 0.0
    %889 = vmatprep.subr.mxu0 0.0
    %890 = vmatpush1.msra.mxu0 0.0
    %891 = vmatprep.subr.mxu0 0.0
    %892 = vmatpush1.msra.mxu0 0.0
    %893 = vmatprep.subr.mxu0 0.0
    %894 = vmatpush1.msra.mxu0 0.0
    %895 = vmatprep.subr.mxu0 0.0
    %896 = vmatpush1.msra.mxu0 0.0
    %897 = vmatprep.subr.mxu0 0.0
    %898 = vmatpush1.msra.mxu0 0.0
    %899 = vmatprep.subr.mxu0 0.0
    %900 = vmatpush1.msra.mxu0 0.0
    %901 = vmatprep.subr.mxu0 0.0
    %902 = vmatpush1.msra.mxu0 0.0
    %903 = vmatprep.subr.mxu0 0.0
    %904 = vmatpush1.msra.mxu0 0.0
    %905 = vmatprep.subr.mxu0 0.0
    %906 = vmatpush1.msra.mxu0 %v238
    %907 = vmatprep.subr.mxu0 0.0
    %908 = vmatpush1.msra.mxu0 %v237
    %909 = vmatprep.subr.mxu0 0.0
    %910 = vmatpush1.msra.mxu0 %v236
    %911 = vmatprep.subr.mxu0 0.0
    %912 = vmatpush1.msra.mxu0 %v235
    %913 = vmatprep.subr.mxu0 0.0
    %914 = vmatpush2.msra.mxu0 0.0
    %915 = vmatprep.subr.mxu0 0.0
    %916 = vmatpush2.msra.mxu0 0.0
    %917 = vmatprep.subr.mxu0 0.0
    %918 = vmatpush2.msra.mxu0 0.0
    %919 = vmatprep.subr.mxu0 0.0
    %920 = vmatpush2.msra.mxu0 0.0
    %921 = vmatprep.subr.mxu0 0.0
    %922 = vmatpush2.msra.mxu0 0.0
    %923 = vmatprep.subr.mxu0 0.0
    %924 = vmatpush2.msra.mxu0 0.0
    %925 = vmatprep.subr.mxu0 0.0
    %926 = vmatpush2.msra.mxu0 0.0
    %927 = vmatprep.subr.mxu0 0.0
    %928 = vmatpush2.msra.mxu0 0.0
    %929 = vmatprep.subr.mxu0 0.0
    %930 = vmatpush2.msra.mxu0 0.0
    %931 = vmatprep.subr.mxu0 0.0
    %932 = vmatpush2.msra.mxu0 0.0
    %933 = vmatprep.subr.mxu0 0.0
    %934 = vmatpush2.msra.mxu0 0.0
    %935 = vmatprep.subr.mxu0 0.0
    %936 = vmatpush2.msra.mxu0 0.0
    %937 = vmatprep.subr.mxu0 0.0
    %938 = vmatpush2.msra.mxu0 0.0
    %939 = vmatprep.subr.mxu0 0.0
    %940 = vmatpush2.msra.mxu0 0.0
    %941 = vmatprep.subr.mxu0 0.0
    %942 = vmatpush2.msra.mxu0 0.0
    %943 = vmatprep.subr.mxu0 0.0
    %944 = vmatpush2.msra.mxu0 0.0
    %945 = vmatprep.mubr.f32.mxu0 0.0
    %946 = vmatmul.mubr.f32.gmra.mxu0 %v807
    %v947 = vpop.f32.mrf.mxu0
    %v948 = vadd.f32 0.0, %v947
    %v949 = vpop.f32.mrf.mxu0
    %950 = vdwg.mxu0
    %v951 = vadd.f32 %v880, %v948
    %v952 = vxor.u32 %v951, 2147483648
    %v953 = vmul.f32 %v952, 1.442695
    %v954 = vpow.pop %v953
    %v955 = vadd.f32 %v954, 1.0
    %v956 = vrcp.pop %v955
    %v957 = vmul.f32 1.0, %v956
    %v958 = vadd.f32 %v948, %v434
    %960 = vrot.lane.b32.xlu0 %v958, 64
    %v961 = vpop.permute.xlu0 %960
    %v963 = vmul.f32 %v957, %v961
    %965 = vrot.lane.b32.xlu0 %v963, 64
    %v966 = vpop.permute.xlu0 %965
    %v968 = vadd.f32 %v880, %v966
    %v969 = vtanh.pop %v968
    %v970 = vsub.f32 1.0, %v957
    %972 = vrot.lane.b32.xlu0 %v969, 96
    %v973 = vpop.permute.xlu0 %972
    %v975 = vmul.f32 %v970, %v973
    %v976 = vmul.f32 %v957, %v803
    %v977 = vadd.f32 %v975, %v976
    %979 = vrot.lane.b32.xlu0 %v977, 96
    %v980 = vpop.permute.xlu0 %979
    %v981 = vsel %vm281, %v980, 0
    %983 = vmatprep.subr.mxu0 0.0
    %984 = vmatpush1.msra.mxu0 0.0
    %985 = vmatprep.subr.mxu0 0.0
    %986 = vmatpush1.msra.mxu0 0.0
    %987 = vmatprep.subr.mxu0 0.0
    %988 = vmatpush1.msra.mxu0 0.0
    %989 = vmatprep.subr.mxu0 0.0
    %990 = vmatpush1.msra.mxu0 0.0
    %991 = vmatprep.subr.mxu0 0.0
    %992 = vmatpush1.msra.mxu0 0.0
    %993 = vmatprep.subr.mxu0 0.0
    %994 = vmatpush1.msra.mxu0 0.0
    %995 = vmatprep.subr.mxu0 0.0
    %996 = vmatpush1.msra.mxu0 0.0
    %997 = vmatprep.subr.mxu0 0.0
    %998 = vmatpush1.msra.mxu0 0.0
    %999 = vmatprep.subr.mxu0 0.0
    %1000 = vmatpush1.msra.mxu0 0.0
    %1001 = vmatprep.subr.mxu0 0.0
    %1002 = vmatpush1.msra.mxu0 0.0
    %1003 = vmatprep.subr.mxu0 0.0
    %1004 = vmatpush1.msra.mxu0 0.0
    %1005 = vmatprep.subr.mxu0 0.0
    %1006 = vmatpush1.msra.mxu0 0.0
    %1007 = vmatprep.subr.mxu0 0.0
    %1008 = vmatpush1.msra.mxu0 %v249
    %1009 = vmatprep.subr.mxu0 0.0
    %1010 = vmatpush1.msra.mxu0 %v248
    %1011 = vmatprep.subr.mxu0 0.0
    %1012 = vmatpush1.msra.mxu0 %v247
    %1013 = vmatprep.subr.mxu0 0.0
    %1014 = vmatpush1.msra.mxu0 %v246
    %1015 = vmatprep.subr.mxu0 0.0
    %1016 = vmatpush2.msra.mxu0 0.0
    %1017 = vmatprep.subr.mxu0 0.0
    %1018 = vmatpush2.msra.mxu0 0.0
    %1019 = vmatprep.subr.mxu0 0.0
    %1020 = vmatpush2.msra.mxu0 0.0
    %1021 = vmatprep.subr.mxu0 0.0
    %1022 = vmatpush2.msra.mxu0 0.0
    %1023 = vmatprep.subr.mxu0 0.0
    %1024 = vmatpush2.msra.mxu0 0.0
    %1025 = vmatprep.subr.mxu0 0.0
    %1026 = vmatpush2.msra.mxu0 0.0
    %1027 = vmatprep.subr.mxu0 0.0
    %1028 = vmatpush2.msra.mxu0 0.0
    %1029 = vmatprep.subr.mxu0 0.0
    %1030 = vmatpush2.msra.mxu0 0.0
    %1031 = vmatprep.subr.mxu0 0.0
    %1032 = vmatpush2.msra.mxu0 0.0
    %1033 = vmatprep.subr.mxu0 0.0
    %1034 = vmatpush2.msra.mxu0 0.0
    %1035 = vmatprep.subr.mxu0 0.0
    %1036 = vmatpush2.msra.mxu0 0.0
    %1037 = vmatprep.subr.mxu0 0.0
    %1038 = vmatpush2.msra.mxu0 0.0
    %1039 = vmatprep.subr.mxu0 0.0
    %1040 = vmatpush2.msra.mxu0 0.0
    %1041 = vmatprep.subr.mxu0 0.0
    %1042 = vmatpush2.msra.mxu0 0.0
    %1043 = vmatprep.subr.mxu0 0.0
    %1044 = vmatpush2.msra.mxu0 0.0
    %1045 = vmatprep.subr.mxu0 0.0
    %1046 = vmatpush2.msra.mxu0 0.0
    %1047 = vmatprep.mubr.f32.mxu0 0.0
    %1048 = vmatmul.mubr.f32.gmra.mxu0 %v981
    %v1049 = vpop.f32.mrf.mxu0
    %v1050 = vadd.f32 %v256, %v1049
    %v1051 = vpop.f32.mrf.mxu0
    %1052 = vdwg.mxu0
    %1053 = vst.msk [vmem:[#allocation3 + $0x20] sm:$0xff] %vm226, %v1050
    %v1054 = vld [vmem:[#allocation2 + $0x28] sm:$0xff]
    %1055 = vmatprep.subr.mxu0 0.0
    %1056 = vmatpush1.msra.mxu0 0.0
    %1057 = vmatprep.subr.mxu0 0.0
    %1058 = vmatpush1.msra.mxu0 0.0
    %1059 = vmatprep.subr.mxu0 0.0
    %1060 = vmatpush1.msra.mxu0 0.0
    %1061 = vmatprep.subr.mxu0 0.0
    %1062 = vmatpush1.msra.mxu0 0.0
    %1063 = vmatprep.subr.mxu0 0.0
    %1064 = vmatpush1.msra.mxu0 0.0
    %1065 = vmatprep.subr.mxu0 0.0
    %1066 = vmatpush1.msra.mxu0 0.0
    %1067 = vmatprep.subr.mxu0 0.0
    %1068 = vmatpush1.msra.mxu0 0.0
    %1069 = vmatprep.subr.mxu0 0.0
    %1070 = vmatpush1.msra.mxu0 0.0
    %1071 = vmatprep.subr.mxu0 0.0
    %1072 = vmatpush1.msra.mxu0 0.0
    %1073 = vmatprep.subr.mxu0 0.0
    %1074 = vmatpush1.msra.mxu0 0.0
    %1075 = vmatprep.subr.mxu0 0.0
    %1076 = vmatpush1.msra.mxu0 0.0
    %1077 = vmatprep.subr.mxu0 0.0
    %1078 = vmatpush1.msra.mxu0 0.0
    %1079 = vmatprep.subr.mxu0 0.0
    %1080 = vmatpush1.msra.mxu0 %v238
    %1081 = vmatprep.subr.mxu0 0.0
    %1082 = vmatpush1.msra.mxu0 %v237
    %1083 = vmatprep.subr.mxu0 0.0
    %1084 = vmatpush1.msra.mxu0 %v236
    %1085 = vmatprep.subr.mxu0 0.0
    %1086 = vmatpush1.msra.mxu0 %v235
    %1087 = vmatprep.subr.mxu0 0.0
    %1088 = vmatpush2.msra.mxu0 0.0
    %1089 = vmatprep.subr.mxu0 0.0
    %1090 = vmatpush2.msra.mxu0 0.0
    %1091 = vmatprep.subr.mxu0 0.0
    %1092 = vmatpush2.msra.mxu0 0.0
    %1093 = vmatprep.subr.mxu0 0.0
    %1094 = vmatpush2.msra.mxu0 0.0
    %1095 = vmatprep.subr.mxu0 0.0
    %1096 = vmatpush2.msra.mxu0 0.0
    %1097 = vmatprep.subr.mxu0 0.0
    %1098 = vmatpush2.msra.mxu0 0.0
    %1099 = vmatprep.subr.mxu0 0.0
    %1100 = vmatpush2.msra.mxu0 0.0
    %1101 = vmatprep.subr.mxu0 0.0
    %1102 = vmatpush2.msra.mxu0 0.0
    %1103 = vmatprep.subr.mxu0 0.0
    %1104 = vmatpush2.msra.mxu0 0.0
    %1105 = vmatprep.subr.mxu0 0.0
    %1106 = vmatpush2.msra.mxu0 0.0
    %1107 = vmatprep.subr.mxu0 0.0
    %1108 = vmatpush2.msra.mxu0 0.0
    %1109 = vmatprep.subr.mxu0 0.0
    %1110 = vmatpush2.msra.mxu0 0.0
    %1111 = vmatprep.subr.mxu0 0.0
    %1112 = vmatpush2.msra.mxu0 0.0
    %1113 = vmatprep.subr.mxu0 0.0
    %1114 = vmatpush2.msra.mxu0 0.0
    %1115 = vmatprep.subr.mxu0 0.0
    %1116 = vmatpush2.msra.mxu0 0.0
    %1117 = vmatprep.subr.mxu0 0.0
    %1118 = vmatpush2.msra.mxu0 0.0
    %1119 = vmatprep.mubr.f32.mxu0 0.0
    %1120 = vmatmul.mubr.f32.gmra.mxu0 %v981
    %v1121 = vpop.f32.mrf.mxu0
    %v1122 = vadd.f32 0.0, %v1121
    %v1123 = vpop.f32.mrf.mxu0
    %1124 = vdwg.mxu0
    %v1125 = vadd.f32 %v1054, %v1122
    %v1126 = vxor.u32 %v1125, 2147483648
    %v1127 = vmul.f32 %v1126, 1.442695
    %v1128 = vpow.pop %v1127
    %v1129 = vadd.f32 %v1128, 1.0
    %v1130 = vrcp.pop %v1129
    %v1131 = vmul.f32 1.0, %v1130
    %v1132 = vadd.f32 %v1122, %v434
    %1134 = vrot.lane.b32.xlu0 %v1132, 64
    %v1135 = vpop.permute.xlu0 %1134
    %v1137 = vmul.f32 %v1131, %v1135
    %1139 = vrot.lane.b32.xlu0 %v1137, 64
    %v1140 = vpop.permute.xlu0 %1139
    %v1142 = vadd.f32 %v1054, %v1140
    %v1143 = vtanh.pop %v1142
    %v1144 = vsub.f32 1.0, %v1131
    %1146 = vrot.lane.b32.xlu0 %v1143, 96
    %v1147 = vpop.permute.xlu0 %1146
    %v1149 = vmul.f32 %v1144, %v1147
    %v1150 = vmul.f32 %v1131, %v977
    %v1151 = vadd.f32 %v1149, %v1150
    %1153 = vrot.lane.b32.xlu0 %v1151, 96
    %v1154 = vpop.permute.xlu0 %1153
    %v1155 = vsel %vm281, %v1154, 0
    %1157 = vmatprep.subr.mxu0 0.0
    %1158 = vmatpush1.msra.mxu0 0.0
    %1159 = vmatprep.subr.mxu0 0.0
    %1160 = vmatpush1.msra.mxu0 0.0
    %1161 = vmatprep.subr.mxu0 0.0
    %1162 = vmatpush1.msra.mxu0 0.0
    %1163 = vmatprep.subr.mxu0 0.0
    %1164 = vmatpush1.msra.mxu0 0.0
    %1165 = vmatprep.subr.mxu0 0.0
    %1166 = vmatpush1.msra.mxu0 0.0
    %1167 = vmatprep.subr.mxu0 0.0
    %1168 = vmatpush1.msra.mxu0 0.0
    %1169 = vmatprep.subr.mxu0 0.0
    %1170 = vmatpush1.msra.mxu0 0.0
    %1171 = vmatprep.subr.mxu0 0.0
    %1172 = vmatpush1.msra.mxu0 0.0
    %1173 = vmatprep.subr.mxu0 0.0
    %1174 = vmatpush1.msra.mxu0 0.0
    %1175 = vmatprep.subr.mxu0 0.0
    %1176 = vmatpush1.msra.mxu0 0.0
    %1177 = vmatprep.subr.mxu0 0.0
    %1178 = vmatpush1.msra.mxu0 0.0
    %1179 = vmatprep.subr.mxu0 0.0
    %1180 = vmatpush1.msra.mxu0 0.0
    %1181 = vmatprep.subr.mxu0 0.0
    %1182 = vmatpush1.msra.mxu0 %v249
    %1183 = vmatprep.subr.mxu0 0.0
    %1184 = vmatpush1.msra.mxu0 %v248
    %1185 = vmatprep.subr.mxu0 0.0
    %1186 = vmatpush1.msra.mxu0 %v247
    %1187 = vmatprep.subr.mxu0 0.0
    %1188 = vmatpush1.msra.mxu0 %v246
    %1189 = vmatprep.subr.mxu0 0.0
    %1190 = vmatpush2.msra.mxu0 0.0
    %1191 = vmatprep.subr.mxu0 0.0
    %1192 = vmatpush2.msra.mxu0 0.0
    %1193 = vmatprep.subr.mxu0 0.0
    %1194 = vmatpush2.msra.mxu0 0.0
    %1195 = vmatprep.subr.mxu0 0.0
    %1196 = vmatpush2.msra.mxu0 0.0
    %1197 = vmatprep.subr.mxu0 0.0
    %1198 = vmatpush2.msra.mxu0 0.0
    %1199 = vmatprep.subr.mxu0 0.0
    %1200 = vmatpush2.msra.mxu0 0.0
    %1201 = vmatprep.subr.mxu0 0.0
    %1202 = vmatpush2.msra.mxu0 0.0
    %1203 = vmatprep.subr.mxu0 0.0
    %1204 = vmatpush2.msra.mxu0 0.0
    %1205 = vmatprep.subr.mxu0 0.0
    %1206 = vmatpush2.msra.mxu0 0.0
    %1207 = vmatprep.subr.mxu0 0.0
    %1208 = vmatpush2.msra.mxu0 0.0
    %1209 = vmatprep.subr.mxu0 0.0
    %1210 = vmatpush2.msra.mxu0 0.0
    %1211 = vmatprep.subr.mxu0 0.0
    %1212 = vmatpush2.msra.mxu0 0.0
    %1213 = vmatprep.subr.mxu0 0.0
    %1214 = vmatpush2.msra.mxu0 0.0
    %1215 = vmatprep.subr.mxu0 0.0
    %1216 = vmatpush2.msra.mxu0 0.0
    %1217 = vmatprep.subr.mxu0 0.0
    %1218 = vmatpush2.msra.mxu0 0.0
    %1219 = vmatprep.subr.mxu0 0.0
    %1220 = vmatpush2.msra.mxu0 0.0
    %1221 = vmatprep.mubr.f32.mxu0 0.0
    %1222 = vmatmul.mubr.f32.gmra.mxu0 %v1155
    %v1223 = vpop.f32.mrf.mxu0
    %v1224 = vadd.f32 %v256, %v1223
    %v1225 = vpop.f32.mrf.mxu0
    %1226 = vdwg.mxu0
    %1227 = vst.msk [vmem:[#allocation3 + $0x28] sm:$0xff] %vm226, %v1224
    %v1228 = vld [vmem:[#allocation2 + $0x30] sm:$0xff]
    %1229 = vmatprep.subr.mxu0 0.0
    %1230 = vmatpush1.msra.mxu0 0.0
    %1231 = vmatprep.subr.mxu0 0.0
    %1232 = vmatpush1.msra.mxu0 0.0
    %1233 = vmatprep.subr.mxu0 0.0
    %1234 = vmatpush1.msra.mxu0 0.0
    %1235 = vmatprep.subr.mxu0 0.0
    %1236 = vmatpush1.msra.mxu0 0.0
    %1237 = vmatprep.subr.mxu0 0.0
    %1238 = vmatpush1.msra.mxu0 0.0
    %1239 = vmatprep.subr.mxu0 0.0
    %1240 = vmatpush1.msra.mxu0 0.0
    %1241 = vmatprep.subr.mxu0 0.0
    %1242 = vmatpush1.msra.mxu0 0.0
    %1243 = vmatprep.subr.mxu0 0.0
    %1244 = vmatpush1.msra.mxu0 0.0
    %1245 = vmatprep.subr.mxu0 0.0
    %1246 = vmatpush1.msra.mxu0 0.0
    %1247 = vmatprep.subr.mxu0 0.0
    %1248 = vmatpush1.msra.mxu0 0.0
    %1249 = vmatprep.subr.mxu0 0.0
    %1250 = vmatpush1.msra.mxu0 0.0
    %1251 = vmatprep.subr.mxu0 0.0
    %1252 = vmatpush1.msra.mxu0 0.0
    %1253 = vmatprep.subr.mxu0 0.0
    %1254 = vmatpush1.msra.mxu0 %v238
    %1255 = vmatprep.subr.mxu0 0.0
    %1256 = vmatpush1.msra.mxu0 %v237
    %1257 = vmatprep.subr.mxu0 0.0
    %1258 = vmatpush1.msra.mxu0 %v236
    %1259 = vmatprep.subr.mxu0 0.0
    %1260 = vmatpush1.msra.mxu0 %v235
    %1261 = vmatprep.subr.mxu0 0.0
    %1262 = vmatpush2.msra.mxu0 0.0
    %1263 = vmatprep.subr.mxu0 0.0
    %1264 = vmatpush2.msra.mxu0 0.0
    %1265 = vmatprep.subr.mxu0 0.0
    %1266 = vmatpush2.msra.mxu0 0.0
    %1267 = vmatprep.subr.mxu0 0.0
    %1268 = vmatpush2.msra.mxu0 0.0
    %1269 = vmatprep.subr.mxu0 0.0
    %1270 = vmatpush2.msra.mxu0 0.0
    %1271 = vmatprep.subr.mxu0 0.0
    %1272 = vmatpush2.msra.mxu0 0.0
    %1273 = vmatprep.subr.mxu0 0.0
    %1274 = vmatpush2.msra.mxu0 0.0
    %1275 = vmatprep.subr.mxu0 0.0
    %1276 = vmatpush2.msra.mxu0 0.0
    %1277 = vmatprep.subr.mxu0 0.0
    %1278 = vmatpush2.msra.mxu0 0.0
    %1279 = vmatprep.subr.mxu0 0.0
    %1280 = vmatpush2.msra.mxu0 0.0
    %1281 = vmatprep.subr.mxu0 0.0
    %1282 = vmatpush2.msra.mxu0 0.0
    %1283 = vmatprep.subr.mxu0 0.0
    %1284 = vmatpush2.msra.mxu0 0.0
    %1285 = vmatprep.subr.mxu0 0.0
    %1286 = vmatpush2.msra.mxu0 0.0
    %1287 = vmatprep.subr.mxu0 0.0
    %1288 = vmatpush2.msra.mxu0 0.0
    %1289 = vmatprep.subr.mxu0 0.0
    %1290 = vmatpush2.msra.mxu0 0.0
    %1291 = vmatprep.subr.mxu0 0.0
    %1292 = vmatpush2.msra.mxu0 0.0
    %1293 = vmatprep.mubr.f32.mxu0 0.0
    %1294 = vmatmul.mubr.f32.gmra.mxu0 %v1155
    %v1295 = vpop.f32.mrf.mxu0
    %v1296 = vadd.f32 0.0, %v1295
    %v1297 = vpop.f32.mrf.mxu0
    %1298 = vdwg.mxu0
    %v1299 = vadd.f32 %v1228, %v1296
    %v1300 = vxor.u32 %v1299, 2147483648
    %v1301 = vmul.f32 %v1300, 1.442695
    %v1302 = vpow.pop %v1301
    %v1303 = vadd.f32 %v1302, 1.0
    %v1304 = vrcp.pop %v1303
    %v1305 = vmul.f32 1.0, %v1304
    %v1306 = vadd.f32 %v1296, %v434
    %1308 = vrot.lane.b32.xlu0 %v1306, 64
    %v1309 = vpop.permute.xlu0 %1308
    %v1311 = vmul.f32 %v1305, %v1309
    %1313 = vrot.lane.b32.xlu0 %v1311, 64
    %v1314 = vpop.permute.xlu0 %1313
    %v1316 = vadd.f32 %v1228, %v1314
    %v1317 = vtanh.pop %v1316
    %v1318 = vsub.f32 1.0, %v1305
    %1320 = vrot.lane.b32.xlu0 %v1317, 96
    %v1321 = vpop.permute.xlu0 %1320
    %v1323 = vmul.f32 %v1318, %v1321
    %v1324 = vmul.f32 %v1305, %v1151
    %v1325 = vadd.f32 %v1323, %v1324
    %1327 = vrot.lane.b32.xlu0 %v1325, 96
    %v1328 = vpop.permute.xlu0 %1327
    %v1329 = vsel %vm281, %v1328, 0
    %1331 = vmatprep.subr.mxu0 0.0
    %1332 = vmatpush1.msra.mxu0 0.0
    %1333 = vmatprep.subr.mxu0 0.0
    %1334 = vmatpush1.msra.mxu0 0.0
    %1335 = vmatprep.subr.mxu0 0.0
    %1336 = vmatpush1.msra.mxu0 0.0
    %1337 = vmatprep.subr.mxu0 0.0
    %1338 = vmatpush1.msra.mxu0 0.0
    %1339 = vmatprep.subr.mxu0 0.0
    %1340 = vmatpush1.msra.mxu0 0.0
    %1341 = vmatprep.subr.mxu0 0.0
    %1342 = vmatpush1.msra.mxu0 0.0
    %1343 = vmatprep.subr.mxu0 0.0
    %1344 = vmatpush1.msra.mxu0 0.0
    %1345 = vmatprep.subr.mxu0 0.0
    %1346 = vmatpush1.msra.mxu0 0.0
    %1347 = vmatprep.subr.mxu0 0.0
    %1348 = vmatpush1.msra.mxu0 0.0
    %1349 = vmatprep.subr.mxu0 0.0
    %1350 = vmatpush1.msra.mxu0 0.0
    %1351 = vmatprep.subr.mxu0 0.0
    %1352 = vmatpush1.msra.mxu0 0.0
    %1353 = vmatprep.subr.mxu0 0.0
    %1354 = vmatpush1.msra.mxu0 0.0
    %1355 = vmatprep.subr.mxu0 0.0
    %1356 = vmatpush1.msra.mxu0 %v249
    %1357 = vmatprep.subr.mxu0 0.0
    %1358 = vmatpush1.msra.mxu0 %v248
    %1359 = vmatprep.subr.mxu0 0.0
    %1360 = vmatpush1.msra.mxu0 %v247
    %1361 = vmatprep.subr.mxu0 0.0
    %1362 = vmatpush1.msra.mxu0 %v246
    %1363 = vmatprep.subr.mxu0 0.0
    %1364 = vmatpush2.msra.mxu0 0.0
    %1365 = vmatprep.subr.mxu0 0.0
    %1366 = vmatpush2.msra.mxu0 0.0
    %1367 = vmatprep.subr.mxu0 0.0
    %1368 = vmatpush2.msra.mxu0 0.0
    %1369 = vmatprep.subr.mxu0 0.0
    %1370 = vmatpush2.msra.mxu0 0.0
    %1371 = vmatprep.subr.mxu0 0.0
    %1372 = vmatpush2.msra.mxu0 0.0
    %1373 = vmatprep.subr.mxu0 0.0
    %1374 = vmatpush2.msra.mxu0 0.0
    %1375 = vmatprep.subr.mxu0 0.0
    %1376 = vmatpush2.msra.mxu0 0.0
    %1377 = vmatprep.subr.mxu0 0.0
    %1378 = vmatpush2.msra.mxu0 0.0
    %1379 = vmatprep.subr.mxu0 0.0
    %1380 = vmatpush2.msra.mxu0 0.0
    %1381 = vmatprep.subr.mxu0 0.0
    %1382 = vmatpush2.msra.mxu0 0.0
    %1383 = vmatprep.subr.mxu0 0.0
    %1384 = vmatpush2.msra.mxu0 0.0
    %1385 = vmatprep.subr.mxu0 0.0
    %1386 = vmatpush2.msra.mxu0 0.0
    %1387 = vmatprep.subr.mxu0 0.0
    %1388 = vmatpush2.msra.mxu0 0.0
    %1389 = vmatprep.subr.mxu0 0.0
    %1390 = vmatpush2.msra.mxu0 0.0
    %1391 = vmatprep.subr.mxu0 0.0
    %1392 = vmatpush2.msra.mxu0 0.0
    %1393 = vmatprep.subr.mxu0 0.0
    %1394 = vmatpush2.msra.mxu0 0.0
    %1395 = vmatprep.mubr.f32.mxu0 0.0
    %1396 = vmatmul.mubr.f32.gmra.mxu0 %v1329
    %v1397 = vpop.f32.mrf.mxu0
    %v1398 = vadd.f32 %v256, %v1397
    %v1399 = vpop.f32.mrf.mxu0
    %1400 = vdwg.mxu0
    %1401 = vst.msk [vmem:[#allocation3 + $0x30] sm:$0xff] %vm226, %v1398
    %v1402 = vld [vmem:[#allocation2 + $0x38] sm:$0xff]
    %1403 = vmatprep.subr.mxu0 0.0
    %1404 = vmatpush1.msra.mxu0 0.0
    %1405 = vmatprep.subr.mxu0 0.0
    %1406 = vmatpush1.msra.mxu0 0.0
    %1407 = vmatprep.subr.mxu0 0.0
    %1408 = vmatpush1.msra.mxu0 0.0
    %1409 = vmatprep.subr.mxu0 0.0
    %1410 = vmatpush1.msra.mxu0 0.0
    %1411 = vmatprep.subr.mxu0 0.0
    %1412 = vmatpush1.msra.mxu0 0.0
    %1413 = vmatprep.subr.mxu0 0.0
    %1414 = vmatpush1.msra.mxu0 0.0
    %1415 = vmatprep.subr.mxu0 0.0
    %1416 = vmatpush1.msra.mxu0 0.0
    %1417 = vmatprep.subr.mxu0 0.0
    %1418 = vmatpush1.msra.mxu0 0.0
    %1419 = vmatprep.subr.mxu0 0.0
    %1420 = vmatpush1.msra.mxu0 0.0
    %1421 = vmatprep.subr.mxu0 0.0
    %1422 = vmatpush1.msra.mxu0 0.0
    %1423 = vmatprep.subr.mxu0 0.0
    %1424 = vmatpush1.msra.mxu0 0.0
    %1425 = vmatprep.subr.mxu0 0.0
    %1426 = vmatpush1.msra.mxu0 0.0
    %1427 = vmatprep.subr.mxu0 0.0
    %1428 = vmatpush1.msra.mxu0 %v238
    %1429 = vmatprep.subr.mxu0 0.0
    %1430 = vmatpush1.msra.mxu0 %v237
    %1431 = vmatprep.subr.mxu0 0.0
    %1432 = vmatpush1.msra.mxu0 %v236
    %1433 = vmatprep.subr.mxu0 0.0
    %1434 = vmatpush1.msra.mxu0 %v235
    %1435 = vmatprep.subr.mxu0 0.0
    %1436 = vmatpush2.msra.mxu0 0.0
    %1437 = vmatprep.subr.mxu0 0.0
    %1438 = vmatpush2.msra.mxu0 0.0
    %1439 = vmatprep.subr.mxu0 0.0
    %1440 = vmatpush2.msra.mxu0 0.0
    %1441 = vmatprep.subr.mxu0 0.0
    %1442 = vmatpush2.msra.mxu0 0.0
    %1443 = vmatprep.subr.mxu0 0.0
    %1444 = vmatpush2.msra.mxu0 0.0
    %1445 = vmatprep.subr.mxu0 0.0
    %1446 = vmatpush2.msra.mxu0 0.0
    %1447 = vmatprep.subr.mxu0 0.0
    %1448 = vmatpush2.msra.mxu0 0.0
    %1449 = vmatprep.subr.mxu0 0.0
    %1450 = vmatpush2.msra.mxu0 0.0
    %1451 = vmatprep.subr.mxu0 0.0
    %1452 = vmatpush2.msra.mxu0 0.0
    %1453 = vmatprep.subr.mxu0 0.0
    %1454 = vmatpush2.msra.mxu0 0.0
    %1455 = vmatprep.subr.mxu0 0.0
    %1456 = vmatpush2.msra.mxu0 0.0
    %1457 = vmatprep.subr.mxu0 0.0
    %1458 = vmatpush2.msra.mxu0 0.0
    %1459 = vmatprep.subr.mxu0 0.0
    %1460 = vmatpush2.msra.mxu0 0.0
    %1461 = vmatprep.subr.mxu0 0.0
    %1462 = vmatpush2.msra.mxu0 0.0
    %1463 = vmatprep.subr.mxu0 0.0
    %1464 = vmatpush2.msra.mxu0 0.0
    %1465 = vmatprep.subr.mxu0 0.0
    %1466 = vmatpush2.msra.mxu0 0.0
    %1467 = vmatprep.mubr.f32.mxu0 0.0
    %1468 = vmatmul.mubr.f32.gmra.mxu0 %v1329
    %v1469 = vpop.f32.mrf.mxu0
    %v1470 = vadd.f32 0.0, %v1469
    %v1471 = vpop.f32.mrf.mxu0
    %1472 = vdwg.mxu0
    %v1473 = vadd.f32 %v1402, %v1470
    %v1474 = vxor.u32 %v1473, 2147483648
    %v1475 = vmul.f32 %v1474, 1.442695
    %v1476 = vpow.pop %v1475
    %v1477 = vadd.f32 %v1476, 1.0
    %v1478 = vrcp.pop %v1477
    %v1479 = vmul.f32 1.0, %v1478
    %v1480 = vadd.f32 %v1470, %v434
    %1482 = vrot.lane.b32.xlu0 %v1480, 64
    %v1483 = vpop.permute.xlu0 %1482
    %v1485 = vmul.f32 %v1479, %v1483
    %1487 = vrot.lane.b32.xlu0 %v1485, 64
    %v1488 = vpop.permute.xlu0 %1487
    %v1490 = vadd.f32 %v1402, %v1488
    %v1491 = vtanh.pop %v1490
    %v1492 = vsub.f32 1.0, %v1479
    %1494 = vrot.lane.b32.xlu0 %v1491, 96
    %v1495 = vpop.permute.xlu0 %1494
    %v1497 = vmul.f32 %v1492, %v1495
    %v1498 = vmul.f32 %v1479, %v1325
    %v1499 = vadd.f32 %v1497, %v1498
    %1501 = vrot.lane.b32.xlu0 %v1499, 96
    %v1502 = vpop.permute.xlu0 %1501
    %v1503 = vsel %vm281, %v1502, 0
    %1505 = vmatprep.subr.mxu0 0.0
    %1506 = vmatpush1.msra.mxu0 0.0
    %1507 = vmatprep.subr.mxu0 0.0
    %1508 = vmatpush1.msra.mxu0 0.0
    %1509 = vmatprep.subr.mxu0 0.0
    %1510 = vmatpush1.msra.mxu0 0.0
    %1511 = vmatprep.subr.mxu0 0.0
    %1512 = vmatpush1.msra.mxu0 0.0
    %1513 = vmatprep.subr.mxu0 0.0
    %1514 = vmatpush1.msra.mxu0 0.0
    %1515 = vmatprep.subr.mxu0 0.0
    %1516 = vmatpush1.msra.mxu0 0.0
    %1517 = vmatprep.subr.mxu0 0.0
    %1518 = vmatpush1.msra.mxu0 0.0
    %1519 = vmatprep.subr.mxu0 0.0
    %1520 = vmatpush1.msra.mxu0 0.0
    %1521 = vmatprep.subr.mxu0 0.0
    %1522 = vmatpush1.msra.mxu0 0.0
    %1523 = vmatprep.subr.mxu0 0.0
    %1524 = vmatpush1.msra.mxu0 0.0
    %1525 = vmatprep.subr.mxu0 0.0
    %1526 = vmatpush1.msra.mxu0 0.0
    %1527 = vmatprep.subr.mxu0 0.0
    %1528 = vmatpush1.msra.mxu0 0.0
    %1529 = vmatprep.subr.mxu0 0.0
    %1530 = vmatpush1.msra.mxu0 %v249
    %1531 = vmatprep.subr.mxu0 0.0
    %1532 = vmatpush1.msra.mxu0 %v248
    %1533 = vmatprep.subr.mxu0 0.0
    %1534 = vmatpush1.msra.mxu0 %v247
    %1535 = vmatprep.subr.mxu0 0.0
    %1536 = vmatpush1.msra.mxu0 %v246
    %1537 = vmatprep.subr.mxu0 0.0
    %1538 = vmatpush2.msra.mxu0 0.0
    %1539 = vmatprep.subr.mxu0 0.0
    %1540 = vmatpush2.msra.mxu0 0.0
    %1541 = vmatprep.subr.mxu0 0.0
    %1542 = vmatpush2.msra.mxu0 0.0
    %1543 = vmatprep.subr.mxu0 0.0
    %1544 = vmatpush2.msra.mxu0 0.0
    %1545 = vmatprep.subr.mxu0 0.0
    %1546 = vmatpush2.msra.mxu0 0.0
    %1547 = vmatprep.subr.mxu0 0.0
    %1548 = vmatpush2.msra.mxu0 0.0
    %1549 = vmatprep.subr.mxu0 0.0
    %1550 = vmatpush2.msra.mxu0 0.0
    %1551 = vmatprep.subr.mxu0 0.0
    %1552 = vmatpush2.msra.mxu0 0.0
    %1553 = vmatprep.subr.mxu0 0.0
    %1554 = vmatpush2.msra.mxu0 0.0
    %1555 = vmatprep.subr.mxu0 0.0
    %1556 = vmatpush2.msra.mxu0 0.0
    %1557 = vmatprep.subr.mxu0 0.0
    %1558 = vmatpush2.msra.mxu0 0.0
    %1559 = vmatprep.subr.mxu0 0.0
    %1560 = vmatpush2.msra.mxu0 0.0
    %1561 = vmatprep.subr.mxu0 0.0
    %1562 = vmatpush2.msra.mxu0 0.0
    %1563 = vmatprep.subr.mxu0 0.0
    %1564 = vmatpush2.msra.mxu0 0.0
    %1565 = vmatprep.subr.mxu0 0.0
    %1566 = vmatpush2.msra.mxu0 0.0
    %1567 = vmatprep.subr.mxu0 0.0
    %1568 = vmatpush2.msra.mxu0 0.0
    %1569 = vmatprep.mubr.f32.mxu0 0.0
    %1570 = vmatmul.mubr.f32.gmra.mxu0 %v1503
    %v1571 = vpop.f32.mrf.mxu0
    %v1572 = vadd.f32 %v256, %v1571
    %v1573 = vpop.f32.mrf.mxu0
    %1574 = vdwg.mxu0
    %1575 = vst.msk [vmem:[#allocation3 + $0x38] sm:$0xff] %vm226, %v1572
    %1577 = vst.msk [vmem:[#allocation13] sm:$0xff] %vm281, %v1502
    %s1578 = scalar_lea.vmem [#allocation10], 32
    %v1579 = vld [vmem:[%s1578] sm:$0xff]
    %v1580 = vld [vmem:[%s1578 + $0x8] sm:$0xff]
    %v1581 = vld [vmem:[%s1578 + $0x10] sm:$0xff]
    %v1582 = vld [vmem:[%s1578 + $0x18] sm:$0xff]
    %s1583 = scalar_lea.vmem %s5, 1
    %v1584 = vld [vmem:[%s1583] sm:$0x1]
    %v1586 = vlaneseq
    %v1587 = vshrl.u32 %v1586, 7
    %v1588 = vsub.s32 0, %v1587
    %v1589 = vrot.slane %v1584, %v1588
    %v1591 = vld [vmem:[#allocation3] sm:$0xff]
    %v1592 = vxor.u32 %v1591, 2147483648
    %v1593 = vmul.f32 %v1592, 1.442695
    %v1594 = vpow.pop %v1593
    %v1595 = vadd.f32 %v1594, 1.0
    %v1596 = vrcp.pop %v1595
    %v1597 = vmul.f32 1.0, %v1596
    %v1598 = vmul.f32 %v1597, %v1589
    %1600 = vrot.lane.b32.xlu0 %v1598, 64
    %v1601 = vpop.permute.xlu0 %1600
    %v1603 = vadd.f32 %v1591, %v1601
    %v1604 = vtanh.pop %v1603
    %v1605 = vsub.f32 1.0, %v1597
    %1607 = vrot.lane.b32.xlu0 %v1604, 96
    %v1608 = vpop.permute.xlu0 %1607
    %v1610 = vmul.f32 %v1605, %v1608
    %1612 = vrot.lane.b32.xlu0 %v1610, 96
    %v1613 = vpop.permute.xlu0 %1612
    %1615 = vst.msk [vmem:[#allocation12] sm:$0xff] %vm281, %v1613
    %v1616 = vld [vmem:[#allocation3 + $0x8] sm:$0xff]
    %v1617 = vsel %vm281, %v1613, 0
    %1619 = vmatprep.subr.mxu0 0.0
    %1620 = vmatpush1.msra.mxu0 0.0
    %1621 = vmatprep.subr.mxu0 0.0
    %1622 = vmatpush1.msra.mxu0 0.0
    %1623 = vmatprep.subr.mxu0 0.0
    %1624 = vmatpush1.msra.mxu0 0.0
    %1625 = vmatprep.subr.mxu0 0.0
    %1626 = vmatpush1.msra.mxu0 0.0
    %1627 = vmatprep.subr.mxu0 0.0
    %1628 = vmatpush1.msra.mxu0 0.0
    %1629 = vmatprep.subr.mxu0 0.0
    %1630 = vmatpush1.msra.mxu0 0.0
    %1631 = vmatprep.subr.mxu0 0.0
    %1632 = vmatpush1.msra.mxu0 0.0
    %1633 = vmatprep.subr.mxu0 0.0
    %1634 = vmatpush1.msra.mxu0 0.0
    %1635 = vmatprep.subr.mxu0 0.0
    %1636 = vmatpush1.msra.mxu0 0.0
    %1637 = vmatprep.subr.mxu0 0.0
    %1638 = vmatpush1.msra.mxu0 0.0
    %1639 = vmatprep.subr.mxu0 0.0
    %1640 = vmatpush1.msra.mxu0 0.0
    %1641 = vmatprep.subr.mxu0 0.0
    %1642 = vmatpush1.msra.mxu0 0.0
    %1643 = vmatprep.subr.mxu0 0.0
    %1644 = vmatpush1.msra.mxu0 %v1582
    %1645 = vmatprep.subr.mxu0 0.0
    %1646 = vmatpush1.msra.mxu0 %v1581
    %1647 = vmatprep.subr.mxu0 0.0
    %1648 = vmatpush1.msra.mxu0 %v1580
    %1649 = vmatprep.subr.mxu0 0.0
    %1650 = vmatpush1.msra.mxu0 %v1579
    %1651 = vmatprep.subr.mxu0 0.0
    %1652 = vmatpush2.msra.mxu0 0.0
    %1653 = vmatprep.subr.mxu0 0.0
    %1654 = vmatpush2.msra.mxu0 0.0
    %1655 = vmatprep.subr.mxu0 0.0
    %1656 = vmatpush2.msra.mxu0 0.0
    %1657 = vmatprep.subr.mxu0 0.0
    %1658 = vmatpush2.msra.mxu0 0.0
    %1659 = vmatprep.subr.mxu0 0.0
    %1660 = vmatpush2.msra.mxu0 0.0
    %1661 = vmatprep.subr.mxu0 0.0
    %1662 = vmatpush2.msra.mxu0 0.0
    %1663 = vmatprep.subr.mxu0 0.0
    %1664 = vmatpush2.msra.mxu0 0.0
    %1665 = vmatprep.subr.mxu0 0.0
    %1666 = vmatpush2.msra.mxu0 0.0
    %1667 = vmatprep.subr.mxu0 0.0
    %1668 = vmatpush2.msra.mxu0 0.0
    %1669 = vmatprep.subr.mxu0 0.0
    %1670 = vmatpush2.msra.mxu0 0.0
    %1671 = vmatprep.subr.mxu0 0.0
    %1672 = vmatpush2.msra.mxu0 0.0
    %1673 = vmatprep.subr.mxu0 0.0
    %1674 = vmatpush2.msra.mxu0 0.0
    %1675 = vmatprep.subr.mxu0 0.0
    %1676 = vmatpush2.msra.mxu0 0.0
    %1677 = vmatprep.subr.mxu0 0.0
    %1678 = vmatpush2.msra.mxu0 0.0
    %1679 = vmatprep.subr.mxu0 0.0
    %1680 = vmatpush2.msra.mxu0 0.0
    %1681 = vmatprep.subr.mxu0 0.0
    %1682 = vmatpush2.msra.mxu0 0.0
    %1683 = vmatprep.mubr.f32.mxu0 0.0
    %1684 = vmatmul.mubr.f32.gmra.mxu0 %v1617
    %v1685 = vpop.f32.mrf.mxu0
    %v1686 = vadd.f32 0.0, %v1685
    %v1687 = vpop.f32.mrf.mxu0
    %1688 = vdwg.mxu0
    %v1689 = vadd.f32 %v1616, %v1686
    %v1690 = vxor.u32 %v1689, 2147483648
    %v1691 = vmul.f32 %v1690, 1.442695
    %v1692 = vpow.pop %v1691
    %v1693 = vadd.f32 %v1692, 1.0
    %v1694 = vrcp.pop %v1693
    %v1695 = vmul.f32 1.0, %v1694
    %1696 = vrot.lane.b32.xlu0 %v1589, 64
    %v1697 = vpop.permute.xlu0 %1696
    %v1699 = vadd.f32 %v1686, %v1697
    %1701 = vrot.lane.b32.xlu0 %v1699, 64
    %v1702 = vpop.permute.xlu0 %1701
    %v1704 = vmul.f32 %v1695, %v1702
    %1706 = vrot.lane.b32.xlu0 %v1704, 64
    %v1707 = vpop.permute.xlu0 %1706
    %v1709 = vadd.f32 %v1616, %v1707
    %v1710 = vtanh.pop %v1709
    %v1711 = vsub.f32 1.0, %v1695
    %1713 = vrot.lane.b32.xlu0 %v1710, 96
    %v1714 = vpop.permute.xlu0 %1713
    %v1716 = vmul.f32 %v1711, %v1714
    %v1717 = vmul.f32 %v1695, %v1610
    %v1718 = vadd.f32 %v1716, %v1717
    %1720 = vrot.lane.b32.xlu0 %v1718, 96
    %v1721 = vpop.permute.xlu0 %1720
    %1723 = vst.msk [vmem:[#allocation12 + $0x8] sm:$0xff] %vm281, %v1721
    %v1724 = vld [vmem:[#allocation3 + $0x10] sm:$0xff]
    %v1725 = vsel %vm281, %v1721, 0
    %1727 = vmatprep.subr.mxu0 0.0
    %1728 = vmatpush1.msra.mxu0 0.0
    %1729 = vmatprep.subr.mxu0 0.0
    %1730 = vmatpush1.msra.mxu0 0.0
    %1731 = vmatprep.subr.mxu0 0.0
    %1732 = vmatpush1.msra.mxu0 0.0
    %1733 = vmatprep.subr.mxu0 0.0
    %1734 = vmatpush1.msra.mxu0 0.0
    %1735 = vmatprep.subr.mxu0 0.0
    %1736 = vmatpush1.msra.mxu0 0.0
    %1737 = vmatprep.subr.mxu0 0.0
    %1738 = vmatpush1.msra.mxu0 0.0
    %1739 = vmatprep.subr.mxu0 0.0
    %1740 = vmatpush1.msra.mxu0 0.0
    %1741 = vmatprep.subr.mxu0 0.0
    %1742 = vmatpush1.msra.mxu0 0.0
    %1743 = vmatprep.subr.mxu0 0.0
    %1744 = vmatpush1.msra.mxu0 0.0
    %1745 = vmatprep.subr.mxu0 0.0
    %1746 = vmatpush1.msra.mxu0 0.0
    %1747 = vmatprep.subr.mxu0 0.0
    %1748 = vmatpush1.msra.mxu0 0.0
    %1749 = vmatprep.subr.mxu0 0.0
    %1750 = vmatpush1.msra.mxu0 0.0
    %1751 = vmatprep.subr.mxu0 0.0
    %1752 = vmatpush1.msra.mxu0 %v1582
    %1753 = vmatprep.subr.mxu0 0.0
    %1754 = vmatpush1.msra.mxu0 %v1581
    %1755 = vmatprep.subr.mxu0 0.0
    %1756 = vmatpush1.msra.mxu0 %v1580
    %1757 = vmatprep.subr.mxu0 0.0
    %1758 = vmatpush1.msra.mxu0 %v1579
    %1759 = vmatprep.subr.mxu0 0.0
    %1760 = vmatpush2.msra.mxu0 0.0
    %1761 = vmatprep.subr.mxu0 0.0
    %1762 = vmatpush2.msra.mxu0 0.0
    %1763 = vmatprep.subr.mxu0 0.0
    %1764 = vmatpush2.msra.mxu0 0.0
    %1765 = vmatprep.subr.mxu0 0.0
    %1766 = vmatpush2.msra.mxu0 0.0
    %1767 = vmatprep.subr.mxu0 0.0
    %1768 = vmatpush2.msra.mxu0 0.0
    %1769 = vmatprep.subr.mxu0 0.0
    %1770 = vmatpush2.msra.mxu0 0.0
    %1771 = vmatprep.subr.mxu0 0.0
    %1772 = vmatpush2.msra.mxu0 0.0
    %1773 = vmatprep.subr.mxu0 0.0
    %1774 = vmatpush2.msra.mxu0 0.0
    %1775 = vmatprep.subr.mxu0 0.0
    %1776 = vmatpush2.msra.mxu0 0.0
    %1777 = vmatprep.subr.mxu0 0.0
    %1778 = vmatpush2.msra.mxu0 0.0
    %1779 = vmatprep.subr.mxu0 0.0
    %1780 = vmatpush2.msra.mxu0 0.0
    %1781 = vmatprep.subr.mxu0 0.0
    %1782 = vmatpush2.msra.mxu0 0.0
    %1783 = vmatprep.subr.mxu0 0.0
    %1784 = vmatpush2.msra.mxu0 0.0
    %1785 = vmatprep.subr.mxu0 0.0
    %1786 = vmatpush2.msra.mxu0 0.0
    %1787 = vmatprep.subr.mxu0 0.0
    %1788 = vmatpush2.msra.mxu0 0.0
    %1789 = vmatprep.subr.mxu0 0.0
    %1790 = vmatpush2.msra.mxu0 0.0
    %1791 = vmatprep.mubr.f32.mxu0 0.0
    %1792 = vmatmul.mubr.f32.gmra.mxu0 %v1725
    %v1793 = vpop.f32.mrf.mxu0
    %v1794 = vadd.f32 0.0, %v1793
    %v1795 = vpop.f32.mrf.mxu0
    %1796 = vdwg.mxu0
    %v1797 = vadd.f32 %v1724, %v1794
    %v1798 = vxor.u32 %v1797, 2147483648
    %v1799 = vmul.f32 %v1798, 1.442695
    %v1800 = vpow.pop %v1799
    %v1801 = vadd.f32 %v1800, 1.0
    %v1802 = vrcp.pop %v1801
    %v1803 = vmul.f32 1.0, %v1802
    %v1804 = vadd.f32 %v1794, %v1697
    %1806 = vrot.lane.b32.xlu0 %v1804, 64
    %v1807 = vpop.permute.xlu0 %1806
    %v1809 = vmul.f32 %v1803, %v1807
    %1811 = vrot.lane.b32.xlu0 %v1809, 64
    %v1812 = vpop.permute.xlu0 %1811
    %v1814 = vadd.f32 %v1724, %v1812
    %v1815 = vtanh.pop %v1814
    %v1816 = vsub.f32 1.0, %v1803
    %1818 = vrot.lane.b32.xlu0 %v1815, 96
    %v1819 = vpop.permute.xlu0 %1818
    %v1821 = vmul.f32 %v1816, %v1819
    %v1822 = vmul.f32 %v1803, %v1718
    %v1823 = vadd.f32 %v1821, %v1822
    %1825 = vrot.lane.b32.xlu0 %v1823, 96
    %v1826 = vpop.permute.xlu0 %1825
    %1828 = vst.msk [vmem:[#allocation12 + $0x10] sm:$0xff] %vm281, %v1826
    %v1829 = vld [vmem:[#allocation3 + $0x18] sm:$0xff]
    %v1830 = vsel %vm281, %v1826, 0
    %1832 = vmatprep.subr.mxu0 0.0
    %1833 = vmatpush1.msra.mxu0 0.0
    %1834 = vmatprep.subr.mxu0 0.0
    %1835 = vmatpush1.msra.mxu0 0.0
    %1836 = vmatprep.subr.mxu0 0.0
    %1837 = vmatpush1.msra.mxu0 0.0
    %1838 = vmatprep.subr.mxu0 0.0
    %1839 = vmatpush1.msra.mxu0 0.0
    %1840 = vmatprep.subr.mxu0 0.0
    %1841 = vmatpush1.msra.mxu0 0.0
    %1842 = vmatprep.subr.mxu0 0.0
    %1843 = vmatpush1.msra.mxu0 0.0
    %1844 = vmatprep.subr.mxu0 0.0
    %1845 = vmatpush1.msra.mxu0 0.0
    %1846 = vmatprep.subr.mxu0 0.0
    %1847 = vmatpush1.msra.mxu0 0.0
    %1848 = vmatprep.subr.mxu0 0.0
    %1849 = vmatpush1.msra.mxu0 0.0
    %1850 = vmatprep.subr.mxu0 0.0
    %1851 = vmatpush1.msra.mxu0 0.0
    %1852 = vmatprep.subr.mxu0 0.0
    %1853 = vmatpush1.msra.mxu0 0.0
    %1854 = vmatprep.subr.mxu0 0.0
    %1855 = vmatpush1.msra.mxu0 0.0
    %1856 = vmatprep.subr.mxu0 0.0
    %1857 = vmatpush1.msra.mxu0 %v1582
    %1858 = vmatprep.subr.mxu0 0.0
    %1859 = vmatpush1.msra.mxu0 %v1581
    %1860 = vmatprep.subr.mxu0 0.0
    %1861 = vmatpush1.msra.mxu0 %v1580
    %1862 = vmatprep.subr.mxu0 0.0
    %1863 = vmatpush1.msra.mxu0 %v1579
    %1864 = vmatprep.subr.mxu0 0.0
    %1865 = vmatpush2.msra.mxu0 0.0
    %1866 = vmatprep.subr.mxu0 0.0
    %1867 = vmatpush2.msra.mxu0 0.0
    %1868 = vmatprep.subr.mxu0 0.0
    %1869 = vmatpush2.msra.mxu0 0.0
    %1870 = vmatprep.subr.mxu0 0.0
    %1871 = vmatpush2.msra.mxu0 0.0
    %1872 = vmatprep.subr.mxu0 0.0
    %1873 = vmatpush2.msra.mxu0 0.0
    %1874 = vmatprep.subr.mxu0 0.0
    %1875 = vmatpush2.msra.mxu0 0.0
    %1876 = vmatprep.subr.mxu0 0.0
    %1877 = vmatpush2.msra.mxu0 0.0
    %1878 = vmatprep.subr.mxu0 0.0
    %1879 = vmatpush2.msra.mxu0 0.0
    %1880 = vmatprep.subr.mxu0 0.0
    %1881 = vmatpush2.msra.mxu0 0.0
    %1882 = vmatprep.subr.mxu0 0.0
    %1883 = vmatpush2.msra.mxu0 0.0
    %1884 = vmatprep.subr.mxu0 0.0
    %1885 = vmatpush2.msra.mxu0 0.0
    %1886 = vmatprep.subr.mxu0 0.0
    %1887 = vmatpush2.msra.mxu0 0.0
    %1888 = vmatprep.subr.mxu0 0.0
    %1889 = vmatpush2.msra.mxu0 0.0
    %1890 = vmatprep.subr.mxu0 0.0
    %1891 = vmatpush2.msra.mxu0 0.0
    %1892 = vmatprep.subr.mxu0 0.0
    %1893 = vmatpush2.msra.mxu0 0.0
    %1894 = vmatprep.subr.mxu0 0.0
    %1895 = vmatpush2.msra.mxu0 0.0
    %1896 = vmatprep.mubr.f32.mxu0 0.0
    %1897 = vmatmul.mubr.f32.gmra.mxu0 %v1830
    %v1898 = vpop.f32.mrf.mxu0
    %v1899 = vadd.f32 0.0, %v1898
    %v1900 = vpop.f32.mrf.mxu0
    %1901 = vdwg.mxu0
    %v1902 = vadd.f32 %v1829, %v1899
    %v1903 = vxor.u32 %v1902, 2147483648
    %v1904 = vmul.f32 %v1903, 1.442695
    %v1905 = vpow.pop %v1904
    %v1906 = vadd.f32 %v1905, 1.0
    %v1907 = vrcp.pop %v1906
    %v1908 = vmul.f32 1.0, %v1907
    %v1909 = vadd.f32 %v1899, %v1697
    %1911 = vrot.lane.b32.xlu0 %v1909, 64
    %v1912 = vpop.permute.xlu0 %1911
    %v1914 = vmul.f32 %v1908, %v1912
    %1916 = vrot.lane.b32.xlu0 %v1914, 64
    %v1917 = vpop.permute.xlu0 %1916
    %v1919 = vadd.f32 %v1829, %v1917
    %v1920 = vtanh.pop %v1919
    %v1921 = vsub.f32 1.0, %v1908
    %1923 = vrot.lane.b32.xlu0 %v1920, 96
    %v1924 = vpop.permute.xlu0 %1923
    %v1926 = vmul.f32 %v1921, %v1924
    %v1927 = vmul.f32 %v1908, %v1823
    %v1928 = vadd.f32 %v1926, %v1927
    %1930 = vrot.lane.b32.xlu0 %v1928, 96
    %v1931 = vpop.permute.xlu0 %1930
    %1933 = vst.msk [vmem:[#allocation12 + $0x18] sm:$0xff] %vm281, %v1931
    %v1934 = vld [vmem:[#allocation3 + $0x20] sm:$0xff]
    %v1935 = vsel %vm281, %v1931, 0
    %1937 = vmatprep.subr.mxu0 0.0
    %1938 = vmatpush1.msra.mxu0 0.0
    %1939 = vmatprep.subr.mxu0 0.0
    %1940 = vmatpush1.msra.mxu0 0.0
    %1941 = vmatprep.subr.mxu0 0.0
    %1942 = vmatpush1.msra.mxu0 0.0
    %1943 = vmatprep.subr.mxu0 0.0
    %1944 = vmatpush1.msra.mxu0 0.0
    %1945 = vmatprep.subr.mxu0 0.0
    %1946 = vmatpush1.msra.mxu0 0.0
    %1947 = vmatprep.subr.mxu0 0.0
    %1948 = vmatpush1.msra.mxu0 0.0
    %1949 = vmatprep.subr.mxu0 0.0
    %1950 = vmatpush1.msra.mxu0 0.0
    %1951 = vmatprep.subr.mxu0 0.0
    %1952 = vmatpush1.msra.mxu0 0.0
    %1953 = vmatprep.subr.mxu0 0.0
    %1954 = vmatpush1.msra.mxu0 0.0
    %1955 = vmatprep.subr.mxu0 0.0
    %1956 = vmatpush1.msra.mxu0 0.0
    %1957 = vmatprep.subr.mxu0 0.0
    %1958 = vmatpush1.msra.mxu0 0.0
    %1959 = vmatprep.subr.mxu0 0.0
    %1960 = vmatpush1.msra.mxu0 0.0
    %1961 = vmatprep.subr.mxu0 0.0
    %1962 = vmatpush1.msra.mxu0 %v1582
    %1963 = vmatprep.subr.mxu0 0.0
    %1964 = vmatpush1.msra.mxu0 %v1581
    %1965 = vmatprep.subr.mxu0 0.0
    %1966 = vmatpush1.msra.mxu0 %v1580
    %1967 = vmatprep.subr.mxu0 0.0
    %1968 = vmatpush1.msra.mxu0 %v1579
    %1969 = vmatprep.subr.mxu0 0.0
    %1970 = vmatpush2.msra.mxu0 0.0
    %1971 = vmatprep.subr.mxu0 0.0
    %1972 = vmatpush2.msra.mxu0 0.0
    %1973 = vmatprep.subr.mxu0 0.0
    %1974 = vmatpush2.msra.mxu0 0.0
    %1975 = vmatprep.subr.mxu0 0.0
    %1976 = vmatpush2.msra.mxu0 0.0
    %1977 = vmatprep.subr.mxu0 0.0
    %1978 = vmatpush2.msra.mxu0 0.0
    %1979 = vmatprep.subr.mxu0 0.0
    %1980 = vmatpush2.msra.mxu0 0.0
    %1981 = vmatprep.subr.mxu0 0.0
    %1982 = vmatpush2.msra.mxu0 0.0
    %1983 = vmatprep.subr.mxu0 0.0
    %1984 = vmatpush2.msra.mxu0 0.0
    %1985 = vmatprep.subr.mxu0 0.0
    %1986 = vmatpush2.msra.mxu0 0.0
    %1987 = vmatprep.subr.mxu0 0.0
    %1988 = vmatpush2.msra.mxu0 0.0
    %1989 = vmatprep.subr.mxu0 0.0
    %1990 = vmatpush2.msra.mxu0 0.0
    %1991 = vmatprep.subr.mxu0 0.0
    %1992 = vmatpush2.msra.mxu0 0.0
    %1993 = vmatprep.subr.mxu0 0.0
    %1994 = vmatpush2.msra.mxu0 0.0
    %1995 = vmatprep.subr.mxu0 0.0
    %1996 = vmatpush2.msra.mxu0 0.0
    %1997 = vmatprep.subr.mxu0 0.0
    %1998 = vmatpush2.msra.mxu0 0.0
    %1999 = vmatprep.subr.mxu0 0.0
    %2000 = vmatpush2.msra.mxu0 0.0
    %2001 = vmatprep.mubr.f32.mxu0 0.0
    %2002 = vmatmul.mubr.f32.gmra.mxu0 %v1935
    %v2003 = vpop.f32.mrf.mxu0
    %v2004 = vadd.f32 0.0, %v2003
    %v2005 = vpop.f32.mrf.mxu0
    %2006 = vdwg.mxu0
    %v2007 = vadd.f32 %v1934, %v2004
    %v2008 = vxor.u32 %v2007, 2147483648
    %v2009 = vmul.f32 %v2008, 1.442695
    %v2010 = vpow.pop %v2009
    %v2011 = vadd.f32 %v2010, 1.0
    %v2012 = vrcp.pop %v2011
    %v2013 = vmul.f32 1.0, %v2012
    %v2014 = vadd.f32 %v2004, %v1697
    %2016 = vrot.lane.b32.xlu0 %v2014, 64
    %v2017 = vpop.permute.xlu0 %2016
    %v2019 = vmul.f32 %v2013, %v2017
    %2021 = vrot.lane.b32.xlu0 %v2019, 64
    %v2022 = vpop.permute.xlu0 %2021
    %v2024 = vadd.f32 %v1934, %v2022
    %v2025 = vtanh.pop %v2024
    %v2026 = vsub.f32 1.0, %v2013
    %2028 = vrot.lane.b32.xlu0 %v2025, 96
    %v2029 = vpop.permute.xlu0 %2028
    %v2031 = vmul.f32 %v2026, %v2029
    %v2032 = vmul.f32 %v2013, %v1928
    %v2033 = vadd.f32 %v2031, %v2032
    %2035 = vrot.lane.b32.xlu0 %v2033, 96
    %v2036 = vpop.permute.xlu0 %2035
    %2038 = vst.msk [vmem:[#allocation12 + $0x20] sm:$0xff] %vm281, %v2036
    %v2039 = vld [vmem:[#allocation3 + $0x28] sm:$0xff]
    %v2040 = vsel %vm281, %v2036, 0
    %2042 = vmatprep.subr.mxu0 0.0
    %2043 = vmatpush1.msra.mxu0 0.0
    %2044 = vmatprep.subr.mxu0 0.0
    %2045 = vmatpush1.msra.mxu0 0.0
    %2046 = vmatprep.subr.mxu0 0.0
    %2047 = vmatpush1.msra.mxu0 0.0
    %2048 = vmatprep.subr.mxu0 0.0
    %2049 = vmatpush1.msra.mxu0 0.0
    %2050 = vmatprep.subr.mxu0 0.0
    %2051 = vmatpush1.msra.mxu0 0.0
    %2052 = vmatprep.subr.mxu0 0.0
    %2053 = vmatpush1.msra.mxu0 0.0
    %2054 = vmatprep.subr.mxu0 0.0
    %2055 = vmatpush1.msra.mxu0 0.0
    %2056 = vmatprep.subr.mxu0 0.0
    %2057 = vmatpush1.msra.mxu0 0.0
    %2058 = vmatprep.subr.mxu0 0.0
    %2059 = vmatpush1.msra.mxu0 0.0
    %2060 = vmatprep.subr.mxu0 0.0
    %2061 = vmatpush1.msra.mxu0 0.0
    %2062 = vmatprep.subr.mxu0 0.0
    %2063 = vmatpush1.msra.mxu0 0.0
    %2064 = vmatprep.subr.mxu0 0.0
    %2065 = vmatpush1.msra.mxu0 0.0
    %2066 = vmatprep.subr.mxu0 0.0
    %2067 = vmatpush1.msra.mxu0 %v1582
    %2068 = vmatprep.subr.mxu0 0.0
    %2069 = vmatpush1.msra.mxu0 %v1581
    %2070 = vmatprep.subr.mxu0 0.0
    %2071 = vmatpush1.msra.mxu0 %v1580
    %2072 = vmatprep.subr.mxu0 0.0
    %2073 = vmatpush1.msra.mxu0 %v1579
    %2074 = vmatprep.subr.mxu0 0.0
    %2075 = vmatpush2.msra.mxu0 0.0
    %2076 = vmatprep.subr.mxu0 0.0
    %2077 = vmatpush2.msra.mxu0 0.0
    %2078 = vmatprep.subr.mxu0 0.0
    %2079 = vmatpush2.msra.mxu0 0.0
    %2080 = vmatprep.subr.mxu0 0.0
    %2081 = vmatpush2.msra.mxu0 0.0
    %2082 = vmatprep.subr.mxu0 0.0
    %2083 = vmatpush2.msra.mxu0 0.0
    %2084 = vmatprep.subr.mxu0 0.0
    %2085 = vmatpush2.msra.mxu0 0.0
    %2086 = vmatprep.subr.mxu0 0.0
    %2087 = vmatpush2.msra.mxu0 0.0
    %2088 = vmatprep.subr.mxu0 0.0
    %2089 = vmatpush2.msra.mxu0 0.0
    %2090 = vmatprep.subr.mxu0 0.0
    %2091 = vmatpush2.msra.mxu0 0.0
    %2092 = vmatprep.subr.mxu0 0.0
    %2093 = vmatpush2.msra.mxu0 0.0
    %2094 = vmatprep.subr.mxu0 0.0
    %2095 = vmatpush2.msra.mxu0 0.0
    %2096 = vmatprep.subr.mxu0 0.0
    %2097 = vmatpush2.msra.mxu0 0.0
    %2098 = vmatprep.subr.mxu0 0.0
    %2099 = vmatpush2.msra.mxu0 0.0
    %2100 = vmatprep.subr.mxu0 0.0
    %2101 = vmatpush2.msra.mxu0 0.0
    %2102 = vmatprep.subr.mxu0 0.0
    %2103 = vmatpush2.msra.mxu0 0.0
    %2104 = vmatprep.subr.mxu0 0.0
    %2105 = vmatpush2.msra.mxu0 0.0
    %2106 = vmatprep.mubr.f32.mxu0 0.0
    %2107 = vmatmul.mubr.f32.gmra.mxu0 %v2040
    %v2108 = vpop.f32.mrf.mxu0
    %v2109 = vadd.f32 0.0, %v2108
    %v2110 = vpop.f32.mrf.mxu0
    %2111 = vdwg.mxu0
    %v2112 = vadd.f32 %v2039, %v2109
    %v2113 = vxor.u32 %v2112, 2147483648
    %v2114 = vmul.f32 %v2113, 1.442695
    %v2115 = vpow.pop %v2114
    %v2116 = vadd.f32 %v2115, 1.0
    %v2117 = vrcp.pop %v2116
    %v2118 = vmul.f32 1.0, %v2117
    %v2119 = vadd.f32 %v2109, %v1697
    %2121 = vrot.lane.b32.xlu0 %v2119, 64
    %v2122 = vpop.permute.xlu0 %2121
    %v2124 = vmul.f32 %v2118, %v2122
    %2126 = vrot.lane.b32.xlu0 %v2124, 64
    %v2127 = vpop.permute.xlu0 %2126
    %v2129 = vadd.f32 %v2039, %v2127
    %v2130 = vtanh.pop %v2129
    %v2131 = vsub.f32 1.0, %v2118
    %2133 = vrot.lane.b32.xlu0 %v2130, 96
    %v2134 = vpop.permute.xlu0 %2133
    %v2136 = vmul.f32 %v2131, %v2134
    %v2137 = vmul.f32 %v2118, %v2033
    %v2138 = vadd.f32 %v2136, %v2137
    %2140 = vrot.lane.b32.xlu0 %v2138, 96
    %v2141 = vpop.permute.xlu0 %2140
    %2143 = vst.msk [vmem:[#allocation12 + $0x28] sm:$0xff] %vm281, %v2141
    %v2144 = vld [vmem:[#allocation3 + $0x30] sm:$0xff]
    %v2145 = vsel %vm281, %v2141, 0
    %2147 = vmatprep.subr.mxu0 0.0
    %2148 = vmatpush1.msra.mxu0 0.0
    %2149 = vmatprep.subr.mxu0 0.0
    %2150 = vmatpush1.msra.mxu0 0.0
    %2151 = vmatprep.subr.mxu0 0.0
    %2152 = vmatpush1.msra.mxu0 0.0
    %2153 = vmatprep.subr.mxu0 0.0
    %2154 = vmatpush1.msra.mxu0 0.0
    %2155 = vmatprep.subr.mxu0 0.0
    %2156 = vmatpush1.msra.mxu0 0.0
    %2157 = vmatprep.subr.mxu0 0.0
    %2158 = vmatpush1.msra.mxu0 0.0
    %2159 = vmatprep.subr.mxu0 0.0
    %2160 = vmatpush1.msra.mxu0 0.0
    %2161 = vmatprep.subr.mxu0 0.0
    %2162 = vmatpush1.msra.mxu0 0.0
    %2163 = vmatprep.subr.mxu0 0.0
    %2164 = vmatpush1.msra.mxu0 0.0
    %2165 = vmatprep.subr.mxu0 0.0
    %2166 = vmatpush1.msra.mxu0 0.0
    %2167 = vmatprep.subr.mxu0 0.0
    %2168 = vmatpush1.msra.mxu0 0.0
    %2169 = vmatprep.subr.mxu0 0.0
    %2170 = vmatpush1.msra.mxu0 0.0
    %2171 = vmatprep.subr.mxu0 0.0
    %2172 = vmatpush1.msra.mxu0 %v1582
    %2173 = vmatprep.subr.mxu0 0.0
    %2174 = vmatpush1.msra.mxu0 %v1581
    %2175 = vmatprep.subr.mxu0 0.0
    %2176 = vmatpush1.msra.mxu0 %v1580
    %2177 = vmatprep.subr.mxu0 0.0
    %2178 = vmatpush1.msra.mxu0 %v1579
    %2179 = vmatprep.subr.mxu0 0.0
    %2180 = vmatpush2.msra.mxu0 0.0
    %2181 = vmatprep.subr.mxu0 0.0
    %2182 = vmatpush2.msra.mxu0 0.0
    %2183 = vmatprep.subr.mxu0 0.0
    %2184 = vmatpush2.msra.mxu0 0.0
    %2185 = vmatprep.subr.mxu0 0.0
    %2186 = vmatpush2.msra.mxu0 0.0
    %2187 = vmatprep.subr.mxu0 0.0
    %2188 = vmatpush2.msra.mxu0 0.0
    %2189 = vmatprep.subr.mxu0 0.0
    %2190 = vmatpush2.msra.mxu0 0.0
    %2191 = vmatprep.subr.mxu0 0.0
    %2192 = vmatpush2.msra.mxu0 0.0
    %2193 = vmatprep.subr.mxu0 0.0
    %2194 = vmatpush2.msra.mxu0 0.0
    %2195 = vmatprep.subr.mxu0 0.0
    %2196 = vmatpush2.msra.mxu0 0.0
    %2197 = vmatprep.subr.mxu0 0.0
    %2198 = vmatpush2.msra.mxu0 0.0
    %2199 = vmatprep.subr.mxu0 0.0
    %2200 = vmatpush2.msra.mxu0 0.0
    %2201 = vmatprep.subr.mxu0 0.0
    %2202 = vmatpush2.msra.mxu0 0.0
    %2203 = vmatprep.subr.mxu0 0.0
    %2204 = vmatpush2.msra.mxu0 0.0
    %2205 = vmatprep.subr.mxu0 0.0
    %2206 = vmatpush2.msra.mxu0 0.0
    %2207 = vmatprep.subr.mxu0 0.0
    %2208 = vmatpush2.msra.mxu0 0.0
    %2209 = vmatprep.subr.mxu0 0.0
    %2210 = vmatpush2.msra.mxu0 0.0
    %2211 = vmatprep.mubr.f32.mxu0 0.0
    %2212 = vmatmul.mubr.f32.gmra.mxu0 %v2145
    %v2213 = vpop.f32.mrf.mxu0
    %v2214 = vadd.f32 0.0, %v2213
    %v2215 = vpop.f32.mrf.mxu0
    %2216 = vdwg.mxu0
    %v2217 = vadd.f32 %v2144, %v2214
    %v2218 = vxor.u32 %v2217, 2147483648
    %v2219 = vmul.f32 %v2218, 1.442695
    %v2220 = vpow.pop %v2219
    %v2221 = vadd.f32 %v2220, 1.0
    %v2222 = vrcp.pop %v2221
    %v2223 = vmul.f32 1.0, %v2222
    %v2224 = vadd.f32 %v2214, %v1697
    %2226 = vrot.lane.b32.xlu0 %v2224, 64
    %v2227 = vpop.permute.xlu0 %2226
    %v2229 = vmul.f32 %v2223, %v2227
    %2231 = vrot.lane.b32.xlu0 %v2229, 64
    %v2232 = vpop.permute.xlu0 %2231
    %v2234 = vadd.f32 %v2144, %v2232
    %v2235 = vtanh.pop %v2234
    %v2236 = vsub.f32 1.0, %v2223
    %2238 = vrot.lane.b32.xlu0 %v2235, 96
    %v2239 = vpop.permute.xlu0 %2238
    %v2241 = vmul.f32 %v2236, %v2239
    %v2242 = vmul.f32 %v2223, %v2138
    %v2243 = vadd.f32 %v2241, %v2242
    %2245 = vrot.lane.b32.xlu0 %v2243, 96
    %v2246 = vpop.permute.xlu0 %2245
    %2248 = vst.msk [vmem:[#allocation12 + $0x30] sm:$0xff] %vm281, %v2246
    %v2249 = vld [vmem:[#allocation3 + $0x38] sm:$0xff]
    %v2250 = vsel %vm281, %v2246, 0
    %2252 = vmatprep.subr.mxu0 0.0
    %2253 = vmatpush1.msra.mxu0 0.0
    %2254 = vmatprep.subr.mxu0 0.0
    %2255 = vmatpush1.msra.mxu0 0.0
    %2256 = vmatprep.subr.mxu0 0.0
    %2257 = vmatpush1.msra.mxu0 0.0
    %2258 = vmatprep.subr.mxu0 0.0
    %2259 = vmatpush1.msra.mxu0 0.0
    %2260 = vmatprep.subr.mxu0 0.0
    %2261 = vmatpush1.msra.mxu0 0.0
    %2262 = vmatprep.subr.mxu0 0.0
    %2263 = vmatpush1.msra.mxu0 0.0
    %2264 = vmatprep.subr.mxu0 0.0
    %2265 = vmatpush1.msra.mxu0 0.0
    %2266 = vmatprep.subr.mxu0 0.0
    %2267 = vmatpush1.msra.mxu0 0.0
    %2268 = vmatprep.subr.mxu0 0.0
    %2269 = vmatpush1.msra.mxu0 0.0
    %2270 = vmatprep.subr.mxu0 0.0
    %2271 = vmatpush1.msra.mxu0 0.0
    %2272 = vmatprep.subr.mxu0 0.0
    %2273 = vmatpush1.msra.mxu0 0.0
    %2274 = vmatprep.subr.mxu0 0.0
    %2275 = vmatpush1.msra.mxu0 0.0
    %2276 = vmatprep.subr.mxu0 0.0
    %2277 = vmatpush1.msra.mxu0 %v1582
    %2278 = vmatprep.subr.mxu0 0.0
    %2279 = vmatpush1.msra.mxu0 %v1581
    %2280 = vmatprep.subr.mxu0 0.0
    %2281 = vmatpush1.msra.mxu0 %v1580
    %2282 = vmatprep.subr.mxu0 0.0
    %2283 = vmatpush1.msra.mxu0 %v1579
    %2284 = vmatprep.subr.mxu0 0.0
    %2285 = vmatpush2.msra.mxu0 0.0
    %2286 = vmatprep.subr.mxu0 0.0
    %2287 = vmatpush2.msra.mxu0 0.0
    %2288 = vmatprep.subr.mxu0 0.0
    %2289 = vmatpush2.msra.mxu0 0.0
    %2290 = vmatprep.subr.mxu0 0.0
    %2291 = vmatpush2.msra.mxu0 0.0
    %2292 = vmatprep.subr.mxu0 0.0
    %2293 = vmatpush2.msra.mxu0 0.0
    %2294 = vmatprep.subr.mxu0 0.0
    %2295 = vmatpush2.msra.mxu0 0.0
    %2296 = vmatprep.subr.mxu0 0.0
    %2297 = vmatpush2.msra.mxu0 0.0
    %2298 = vmatprep.subr.mxu0 0.0
    %2299 = vmatpush2.msra.mxu0 0.0
    %2300 = vmatprep.subr.mxu0 0.0
    %2301 = vmatpush2.msra.mxu0 0.0
    %2302 = vmatprep.subr.mxu0 0.0
    %2303 = vmatpush2.msra.mxu0 0.0
    %2304 = vmatprep.subr.mxu0 0.0
    %2305 = vmatpush2.msra.mxu0 0.0
    %2306 = vmatprep.subr.mxu0 0.0
    %2307 = vmatpush2.msra.mxu0 0.0
    %2308 = vmatprep.subr.mxu0 0.0
    %2309 = vmatpush2.msra.mxu0 0.0
    %2310 = vmatprep.subr.mxu0 0.0
    %2311 = vmatpush2.msra.mxu0 0.0
    %2312 = vmatprep.subr.mxu0 0.0
    %2313 = vmatpush2.msra.mxu0 0.0
    %2314 = vmatprep.subr.mxu0 0.0
    %2315 = vmatpush2.msra.mxu0 0.0
    %2316 = vmatprep.mubr.f32.mxu0 0.0
    %2317 = vmatmul.mubr.f32.gmra.mxu0 %v2250
    %v2318 = vpop.f32.mrf.mxu0
    %v2319 = vadd.f32 0.0, %v2318
    %v2320 = vpop.f32.mrf.mxu0
    %2321 = vdwg.mxu0
    %v2322 = vadd.f32 %v2249, %v2319
    %v2323 = vxor.u32 %v2322, 2147483648
    %v2324 = vmul.f32 %v2323, 1.442695
    %v2325 = vpow.pop %v2324
    %v2326 = vadd.f32 %v2325, 1.0
    %v2327 = vrcp.pop %v2326
    %v2328 = vmul.f32 1.0, %v2327
    %v2329 = vadd.f32 %v2319, %v1697
    %2331 = vrot.lane.b32.xlu0 %v2329, 64
    %v2332 = vpop.permute.xlu0 %2331
    %v2334 = vmul.f32 %v2328, %v2332
    %2336 = vrot.lane.b32.xlu0 %v2334, 64
    %v2337 = vpop.permute.xlu0 %2336
    %v2339 = vadd.f32 %v2249, %v2337
    %v2340 = vtanh.pop %v2339
    %v2341 = vsub.f32 1.0, %v2328
    %2343 = vrot.lane.b32.xlu0 %v2340, 96
    %v2344 = vpop.permute.xlu0 %2343
    %v2346 = vmul.f32 %v2341, %v2344
    %v2347 = vmul.f32 %v2328, %v2243
    %v2348 = vadd.f32 %v2346, %v2347
    %2350 = vrot.lane.b32.xlu0 %v2348, 96
    %v2351 = vpop.permute.xlu0 %2350
    %2353 = vst.msk [vmem:[#allocation12 + $0x38] sm:$0xff] %vm281, %v2351
    %2354 = vst.msk [vmem:[#allocation13 + $0x8] sm:$0xff] %vm281, %v2351
    // Predicated region
    $region42: #{encoder_forward.1} parent=1 // pred_check
      _
    $region43: #{encoder_forward.1} parent=1 // pred_check_branch
      %2356 = sbr.rel (0) target = $region45
    $region44: #{encoder_forward.1} parent=1 // pred_region
      %s2358 = ssub.s32 1024, 1024
      %2359 = vsyncadd [#allocation6], %s2358
      %s2360 = sshll.u32 [#allocation12], 4
      %s2361 = int_to_ptr.vmem [resolvable:$true] %s2360
      %2366 = dma.vmem_to_hbm [thread:$0]  %s2361, 1024, %s6, [#allocation6], 128, 128, 8
    $region45: #{encoder_forward.1} parent=1 // pred_fallthru
      _
    // Predicated region
    $region46: #{encoder_forward.1} parent=1 // pred_check
      _
    $region47: #{encoder_forward.1} parent=1 // pred_check_branch
      %2368 = sbr.rel (0) target = $region49
    $region48: #{encoder_forward.1} parent=1 // pred_region
      %s2370 = ssub.s32 256, 256
      %2371 = vsyncadd [#allocation14], %s2370
      %s2372 = sshll.u32 [#allocation13], 4
      %s2373 = int_to_ptr.vmem [resolvable:$true] %s2372
      %2378 = dma.vmem_to_hbm [thread:$0]  %s2373, 256, %s7, [#allocation14], 128, 128, 8
    $region49: #{encoder_forward.1} parent=1 // pred_fallthru
      _
    // Predicated region
    $region50: #{encoder_forward.1} parent=1 // pred_check
      _
    $region51: #{encoder_forward.1} parent=1 // pred_check_branch
      %2380 = sbr.rel (0) target = $region53
    $region52: #{encoder_forward.1} parent=1 // pred_region
      %2381 = dma.done [#allocation6], 1024
    $region53: #{encoder_forward.1} parent=1 // pred_fallthru
      _
    // Predicated region
    $region54: #{encoder_forward.1} parent=1 // pred_check
      _
    $region55: #{encoder_forward.1} parent=1 // pred_check_branch
      %2383 = sbr.rel (0) target = $region57
    $region56: #{encoder_forward.1} parent=1 // pred_region
      %2384 = dma.done [#allocation14], 256
    $region57: #{encoder_forward.1} parent=1 // pred_fallthru
      _
    %2385 = vsyncpa [#allocation5], 1
    %2386 = vsyncpa [#allocation8], 1
    %2387 = vsyncpa [#allocation11], 1
    %2388 = vsyncpa [#allocation6], 1
    %2389 = vsyncpa [#allocation14], 1

</llo_original>
